<compile_context>
chip_gen: v7x
topology: tpu7x:2x2x1
jax: 0.10.0
libtpu: 0.0.40
codegen_flags: <defaults>
</compile_context>

<pallas_src>
import numpy as np
import jax
import jax.numpy as jnp
from jax.experimental import pallas as pl
from jax.experimental.pallas import tpu as pltpu

TEMP = 0.07    # temperature
MOM = 0.99     # key-encoder momentum


# ----------------------------- fused encoder kernel -------------------------

def encoder_kernel(x_ref, a1_ref, a2_ref, bias_ref, cpack_ref,
                   r1_ref, c1_ref, lall_ref, r2_ref, out_ref):
    # x_ref:    (4, 28, 28) raw images of this group (query or key batch).
    # a1/a2:    (4, 29, 28) / (4, 15, 18) banded conv matrices of this encoder.
    # bias_ref: (2, 2) SMEM, [s, 0]=conv1 bias, [s, 1]=conv2 bias.
    # cpack/r1/c1/lall/r2: hoisted 0/1 selection constants (resident VMEM).
    s = pl.program_id(0)            # 0 = query encoder, 1 = key encoder
    f32 = jnp.float32

    def roll_left(v, sh):
        # out[:, l] = v[:, l + sh] (lane rotate on the XLU).  Wrapped lanes only land
        # in never-consumed padding columns of each 32-lane image block (sh <= 3).
        if sh == 0:
            return v
        return pltpu.roll(v, shift=v.shape[-1] - sh, axis=1)

    # -- pack the 4 images of this group into one (28, 128) lane slab (pure MXU) --
    w_in = None
    for j in range(4):
        term = jnp.dot(x_ref[j], cpack_ref[j], preferred_element_type=f32)
        w_in = term if w_in is None else w_in + term           # (28, 128)

    def conv_relu(v, a_ref, bias):
        # PyTorch Conv2d (cross-correlation), 4x4 kernel: row taps as a banded matmul
        # on the MXU, column taps as 3 lane rolls on the XLU, adds/relu on the VPU.
        acc = None
        for b in range(4):
            col = jnp.dot(a_ref[b], v, preferred_element_type=f32)
            col = roll_left(col, b)
            acc = col if acc is None else acc + col
        return jnp.maximum(acc + bias, 0.0)

    # conv1(pad=2)+relu: 29 valid rows / in-block cols per image
    o1 = conv_relu(w_in, a1_ref, bias_ref[s, 0])               # (29, 128)
    # pool1 (2x2, stride 2) -> 14x14, re-pad to 18x18, keep lane-slab layout (MXU)
    mr = jnp.maximum(o1[0:28, :], o1[1:29, :])
    mc = jnp.maximum(mr, roll_left(mr, 1))
    p1 = jnp.dot(jnp.dot(r1_ref[...], mc, preferred_element_type=f32),
                 c1_ref[...], preferred_element_type=f32)      # (18, 128)
    # conv2(pad=2)+relu: 15 valid rows / in-block cols
    o2 = conv_relu(p1, a2_ref, bias_ref[s, 1])                 # (15, 128)
    # pool2 -> 7x7, then un-slab: batch to rows, row-major 7x7 flatten to lanes 0..48
    mr2 = jnp.maximum(o2[0:14, :], o2[1:15, :])
    mc2 = jnp.maximum(mr2, roll_left(mr2, 1))                  # (14, 128)
    mc2p = jnp.concatenate([mc2, jnp.zeros((2, 128), f32)], axis=0)   # pad to (16, 128)
    u = jnp.dot(lall_ref[...], mc2p.T, preferred_element_type=f32)    # (28, 16)
    feat = None
    for c in range(7):
        term = jnp.dot(u[4 * c:4 * c + 4, :], r2_ref[c],
                       preferred_element_type=f32)             # (4, 64)
        feat = term if feat is None else feat + term
    out_ref[...] = feat    # image j of this group on row j, features at lanes 0..48


def _encoder_constants():
    """Host-built 0/1 constants (independent of batch size / params)."""
    e1 = np.zeros((4, 29, 28), np.float32)       # conv1 banded structure (row pad folded)
    for a in range(4):
        for r in range(29):
            c = r + a - 2
            if 0 <= c < 28:
                e1[a, r, c] = 1.0
    e2 = np.zeros((4, 15, 18), np.float32)       # conv2 banded structure
    for a in range(4):
        for r in range(15):
            e2[a, r, r + a] = 1.0
    cpack = np.zeros((4, 28, 128), np.float32)   # image j, col b -> lane 32j+2+b
    for j in range(4):
        for b in range(28):
            cpack[j, b, 32 * j + 2 + b] = 1.0
    r1 = np.zeros((18, 28), np.float32)          # pool1 row downsample + pad-by-2
    for r in range(2, 16):
        r1[r, 2 * (r - 2)] = 1.0
    c1 = np.zeros((128, 128), np.float32)        # pool1 lane downsample + pad (block-diag)
    for j in range(4):
        for t in range(14):
            c1[32 * j + 2 * t, 32 * j + 2 + t] = 1.0
    lall = np.zeros((28, 128), np.float32)       # un-slab: row 4c+j <- lane 32j+2c
    for c in range(7):
        for j in range(4):
            lall[4 * c + j, 32 * j + 2 * c] = 1.0
    r2 = np.zeros((7, 16, 64), np.float32)       # un-slab: pooled row 2r -> feature 7r+c
    for c in range(7):
        for r in range(7):
            r2[c, 2 * r, 7 * r + c] = 1.0
    return tuple(jnp.asarray(a) for a in (e1, e2, cpack, r1, c1, lall, r2))


def encode_pair(im_q, im_k, params_q, params_k):
    """One fused pallas_call, grid=(2, N//4) "parallel": step (s, g) runs encoder s
    (0=query, 1=key) on image group g.  Returns (2, N//4, 4, 64): each image's
    flattened 7x7 features (PyTorch Flatten order) on lanes 0..48 of its row."""
    n = im_q.shape[0]
    assert n % 4 == 0, "batch must be a multiple of 4 (32*N lanes multiple of 128)"
    assert im_q.shape[2:] == (28, 28) and im_k.shape[2:] == (28, 28)
    g = n // 4

    # Wrapper glue kept to a single stack + free reshape (channel dim == 1 folds away).
    x = jnp.stack([im_q.astype(jnp.float32), im_k.astype(jnp.float32)])
    x = x.reshape(2, g, 4, 28, 28)

    w1 = jnp.stack([params_q[0], params_k[0]])                 # (2, 4, 4)
    w2 = jnp.stack([params_q[2], params_k[2]])
    bias = jnp.stack([jnp.concatenate([params_q[1], params_q[3]]),
                      jnp.concatenate([params_k[1], params_k[3]])])   # (2, 2) -> SMEM

    e1, e2, cpack, r1, c1, lall, r2 = _encoder_constants()
    a1 = jnp.einsum('sab,arc->sbrc', w1, e1)                   # (2, 4, 29, 28)
    a2 = jnp.einsum('sab,arc->sbrc', w2, e2)                   # (2, 4, 15, 18)

    const = lambda shape: pl.BlockSpec(shape, lambda s, gg: (0,) * len(shape))
    return pl.pallas_call(
        encoder_kernel,
        out_shape=jax.ShapeDtypeStruct((2, g, 4, 64), jnp.float32),
        grid=(2, g),
        in_specs=[
            pl.BlockSpec((pl.Squeezed(), pl.Squeezed(), 4, 28, 28),
                         lambda s, gg: (s, gg, 0, 0, 0)),
            pl.BlockSpec((pl.Squeezed(), 4, 29, 28), lambda s, gg: (s, 0, 0, 0)),
            pl.BlockSpec((pl.Squeezed(), 4, 15, 18), lambda s, gg: (s, 0, 0, 0)),
            pl.BlockSpec(memory_space=pltpu.MemorySpace.SMEM),
            const((4, 28, 128)),
            const((18, 28)),
            const((128, 128)),
            const((28, 128)),
            const((7, 16, 64)),
        ],
        out_specs=pl.BlockSpec((pl.Squeezed(), pl.Squeezed(), 4, 64),
                               lambda s, gg: (s, gg, 0, 0)),
        compiler_params=pltpu.CompilerParams(
            dimension_semantics=("parallel", "parallel")),
    )(x, a1, a2, bias, cpack, r1, c1, lall, r2)


# ------------------------------ logits kernel -------------------------------

def logits_call(feats, queue):
    """normalize(q), l_pos = <q,k>, l_neg = q @ queue, both scaled by 1/T.
    Output is lane-aligned: l_pos at lane 127, l_neg at lanes 128..127+K; the
    consumer takes the contiguous slice [:, 127:128+K]."""
    _, g, _, fdim = feats.shape
    n = 4 * g
    c, kk = queue.shape
    kpad = ((kk + 127) // 128) * 128
    width = 128 + kpad

    def kern(f_ref, queue_ref, out_ref):
        q = f_ref[0].reshape(n, fdim)                          # pad lanes 49..63 are zero
        k = f_ref[1].reshape(n, fdim)
        sumsq = jnp.sum(q * q, axis=1, keepdims=True)
        qn = q * jax.lax.rsqrt(jnp.maximum(sumsq, 1e-24))      # F.normalize(dim=1), eps=1e-12
        lpos = jnp.sum(qn * k, axis=1, keepdims=True) * (1.0 / TEMP)          # (n, 1)
        lneg = jnp.dot(qn[:, :c], queue_ref[...],
                       preferred_element_type=jnp.float32) * (1.0 / TEMP)     # (n, K)
        lane = jax.lax.broadcasted_iota(jnp.int32, (n, 128), 1)
        out_ref[:, 0:128] = jnp.where(lane == 127, lpos, 0.0)  # l_pos at lane 127
        out_ref[:, 128:128 + kk] = lneg                        # lane-aligned l_neg

    # Queue stays one resident f32 block (K=3000 is only ~0.6 MiB; no tiling needed).
    return pl.pallas_call(
        kern,
        out_shape=jax.ShapeDtypeStruct((n, width), jnp.float32),
        grid=(1,),
        in_specs=[pl.BlockSpec((2, g, 4, fdim), lambda i: (0, 0, 0, 0)),
                  pl.BlockSpec((c, kk), lambda i: (0, 0))],
        out_specs=pl.BlockSpec((n, width), lambda i: (0, 0)),
    )(feats, queue)


# ------------------------------ MOCO forward ---------------------------------

def moco_forward(im_q, im_k, params_q, params_k, queue, queue_ptr):
    # momentum update of key encoder (tiny elementwise op on 4x4 params: JAX glue)
    params_k = jax.tree_util.tree_map(lambda pk, pq: MOM * pk + (1.0 - MOM) * pq,
                                      params_k, params_q)
    feats = encode_pair(im_q, im_k, params_q, params_k)        # (2, G, 4, 64)
    n = im_q.shape[0]
    kk = queue.shape[1]
    padded = logits_call(feats, queue)                         # (N, 128 + Kpad)
    logits = padded[:, 127:128 + kk]                           # [l_pos | l_neg] / T
    labels = jnp.zeros(n, dtype=jnp.int32)                     # torch.long -> int32
    # deQ_enQ: queue buffer update (stateful side effect, plain JAX glue).  NOTE: keys
    # are enqueued UNNORMALIZED and k is not L2-normalized, matching the spec module.
    # Matches torch only when K % batch_size == 0 (asserted in the torch module).
    k_feats = feats[1].reshape(n, 64)[:, :49]
    ptr = queue_ptr[0]
    new_queue = jax.lax.dynamic_update_slice(queue, k_feats.T, (jnp.int32(0), ptr))
    new_ptr = jnp.array([(ptr + n) % kk], dtype=jnp.int32)
    return logits, labels, params_k, new_queue, new_ptr


# --------------------------- plain-JAX reference -----------------------------

def reference_forward(im_q, im_k, params_q, params_k, queue):
    params_k = jax.tree_util.tree_map(lambda pk, pq: MOM * pk + (1.0 - MOM) * pq,
                                      params_k, params_q)

    def conv(x, w, b):
        return jax.lax.conv_general_dilated(
            x, w.reshape(1, 1, 4, 4), (1, 1), ((2, 2), (2, 2)),
            dimension_numbers=("NCHW", "OIHW", "NCHW"),
            precision=jax.lax.Precision.HIGHEST) + b.reshape(1, 1, 1, 1)

    def pool(x):
        return jax.lax.reduce_window(x, -jnp.inf, jax.lax.max,
                                     (1, 1, 2, 2), (1, 1, 2, 2), "VALID")

    def enc(x, p):
        w1, b1, w2, b2 = p
        h = pool(jax.nn.relu(conv(x, w1, b1)))
        h = pool(jax.nn.relu(conv(h, w2, b2)))
        return h.reshape(x.shape[0], -1)

    q = enc(im_q, params_q)
    q = q / jnp.maximum(jnp.linalg.norm(q, axis=1, keepdims=True), 1e-12)
    k = enc(im_k, params_k)          # NOTE: spec module does NOT normalize k
    l_pos = jnp.sum(q * k, axis=1, keepdims=True)
    l_neg = jnp.dot(q, queue, precision=jax.lax.Precision.HIGHEST)
    logits = jnp.concatenate([l_pos, l_neg], axis=1) / TEMP
    labels = jnp.zeros(logits.shape[0], jnp.int32)
    return logits, labels


# ----------------------------------- main ------------------------------------

if __name__ == "__main__":
    N, H, W = 4, 28, 28       # H=W=28 so flattened feature dim == 49; N=4 -> 128 lanes
    K = 256                   # small dictionary size (default 3000 also fits resident)

    key = jax.random.PRNGKey(0)
    ks = jax.random.split(key, 7)
    w1 = 0.3 * jax.random.normal(ks[0], (4, 4), jnp.float32)
    b1 = 0.1 * jax.random.normal(ks[1], (1,), jnp.float32)
    w2 = 0.3 * jax.random.normal(ks[2], (4, 4), jnp.float32)
    b2 = 0.1 * jax.random.normal(ks[3], (1,), jnp.float32)
    params_q = (w1, b1, w2, b2)
    params_k = tuple(jnp.array(p) for p in params_q)      # key encoder copies query params

    queue = jax.random.normal(ks[4], (49, K), jnp.float32)
    queue = queue / jnp.linalg.norm(queue, axis=0, keepdims=True)  # normalize(dim=0)
    queue_ptr = jnp.zeros((1,), jnp.int32)

    im_q = jax.random.normal(ks[5], (N, 1, H, W), jnp.float32)
    im_k = jax.random.normal(ks[6], (N, 1, H, W), jnp.float32)

    forward = jax.jit(moco_forward)
    logits, labels, new_params_k, new_queue, new_ptr = forward(
        im_q, im_k, params_q, params_k, queue, queue_ptr)
    jax.block_until_ready((logits, labels, new_queue, new_ptr))

    ref_logits, ref_labels = reference_forward(im_q, im_k, params_q, params_k, queue)
    assert logits.shape == (N, 1 + K) and labels.shape == (N,)
    assert bool(jnp.allclose(logits, ref_logits, rtol=2e-3, atol=2e-3))
    assert bool(jnp.all(labels == ref_labels))
    print("KERNEL_OK")
</pallas_src>

<mosaic_0001>
module attributes {stable_mosaic.version = 11 : i64} {
  func.func @kern(%arg0: i32, %arg1: memref<2x1x4x64xf32, #tpu.memory_space<vmem>>, %arg2: memref<49x256xf32, #tpu.memory_space<vmem>>, %arg3: memref<4x384xf32, #tpu.memory_space<vmem>>) attributes {dimension_semantics = [#tpu.dimension_semantics<arbitrary>], iteration_bounds = array<i64: 1>, scalar_prefetch = 0 : i64, scratch_operands = 0 : i64, tpu.core_type = #tpu.core_type<tc>, window_params = [{pipeline_mode = #tpu.pipeline_mode<synchronous>, transform_indices = @transform_0, window_bounds = array<i64: 2, 1, 4, 64>}, {pipeline_mode = #tpu.pipeline_mode<synchronous>, transform_indices = @transform_1, window_bounds = array<i64: 49, 256>}, {pipeline_mode = #tpu.pipeline_mode<synchronous>, transform_indices = @transform_2, window_bounds = array<i64: 4, 384>}]} {
    %c0 = arith.constant 0 : index
    %c0_0 = arith.constant 0 : index
    %c0_1 = arith.constant 0 : index
    %c0_2 = arith.constant 0 : index
    %0 = vector.load %arg1[%c0, %c0_0, %c0_1, %c0_2] : memref<2x1x4x64xf32, #tpu.memory_space<vmem>>, vector<1x1x4x64xf32>
    %1 = vector.shape_cast %0 : vector<1x1x4x64xf32> to vector<1x4x64xf32>
    %2 = vector.shape_cast %1 : vector<1x4x64xf32> to vector<4x64xf32>
    %c1 = arith.constant 1 : index
    %c0_3 = arith.constant 0 : index
    %c0_4 = arith.constant 0 : index
    %c0_5 = arith.constant 0 : index
    %3 = vector.load %arg1[%c1, %c0_3, %c0_4, %c0_5] : memref<2x1x4x64xf32, #tpu.memory_space<vmem>>, vector<1x1x4x64xf32>
    %4 = vector.shape_cast %3 : vector<1x1x4x64xf32> to vector<1x4x64xf32>
    %5 = vector.shape_cast %4 : vector<1x4x64xf32> to vector<4x64xf32>
    %6 = arith.mulf %2, %2 : vector<4x64xf32>
    %cst = arith.constant dense<0.000000e+00> : vector<4xf32>
    %7 = vector.multi_reduction <add>, %6, %cst [1] : vector<4x64xf32> to vector<4xf32>
    %8 = vector.shape_cast %7 : vector<4xf32> to vector<4x1xf32>
    %cst_6 = arith.constant 1.000000e-24 : f32
    %9 = vector.broadcast %cst_6 : f32 to vector<4x1xf32>
    %10 = arith.maximumf %8, %9 : vector<4x1xf32>
    %11 = math.rsqrt %10 : vector<4x1xf32>
    %12 = vector.broadcast %11 : vector<4x1xf32> to vector<4x64xf32>
    %13 = arith.mulf %2, %12 : vector<4x64xf32>
    %14 = arith.mulf %13, %5 : vector<4x64xf32>
    %cst_7 = arith.constant dense<0.000000e+00> : vector<4xf32>
    %15 = vector.multi_reduction <add>, %14, %cst_7 [1] : vector<4x64xf32> to vector<4xf32>
    %16 = vector.shape_cast %15 : vector<4xf32> to vector<4x1xf32>
    %cst_8 = arith.constant 14.2857141 : f32
    %17 = vector.broadcast %cst_8 : f32 to vector<4x1xf32>
    %18 = arith.mulf %16, %17 : vector<4x1xf32>
    %19 = vector.extract_strided_slice %13 {offsets = [0, 0], sizes = [4, 49], strides = [1, 1]} : vector<4x64xf32> to vector<4x49xf32>
    %c0_9 = arith.constant 0 : index
    %c0_10 = arith.constant 0 : index
    %20 = vector.load %arg2[%c0_9, %c0_10] : memref<49x256xf32, #tpu.memory_space<vmem>>, vector<49x256xf32>
    %cst_11 = arith.constant dense<0.000000e+00> : vector<4x256xf32>
    %21 = tpu.matmul %19, %20, %cst_11 {dimension_numbers = #tpu.dot_dimension_numbers<[1], [0], [0], [1], [0, 0, 1, 1], [], []>} : vector<4x49xf32>, vector<49x256xf32>, vector<4x256xf32> -> vector<4x256xf32>
    %cst_12 = arith.constant 14.2857141 : f32
    %22 = vector.broadcast %cst_12 : f32 to vector<4x256xf32>
    %23 = arith.mulf %21, %22 : vector<4x256xf32>
    %24 = tpu.iota {dimensions = array<i32: 1>} : vector<4x128xi32>
    %c127_i32 = arith.constant 127 : i32
    %25 = vector.broadcast %c127_i32 : i32 to vector<4x128xi32>
    %26 = arith.cmpi eq, %24, %25 : vector<4x128xi32>
    %cst_13 = arith.constant 0.000000e+00 : f32
    %27 = vector.shape_cast %18 : vector<4x1xf32> to vector<4x1xf32>
    %28 = vector.broadcast %27 : vector<4x1xf32> to vector<4x128xf32>
    %29 = vector.broadcast %cst_13 : f32 to vector<4x128xf32>
    %30 = arith.select %26, %28, %29 : vector<4x128xi1>, vector<4x128xf32>
    %c0_14 = arith.constant 0 : index
    %c0_15 = arith.constant 0 : index
    %31 = vector.load %arg3[%c0_14, %c0_15] : memref<4x384xf32, #tpu.memory_space<vmem>>, vector<4x128xf32>
    tpu.vector_store %arg3[%c0_14, %c0_15], %30 {strides = array<i32>} : memref<4x384xf32, #tpu.memory_space<vmem>>, vector<4x128xf32>,
    %c0_16 = arith.constant 0 : index
    %c128 = arith.constant 128 : index
    %32 = vector.load %arg3[%c0_16, %c128] : memref<4x384xf32, #tpu.memory_space<vmem>>, vector<4x256xf32>
    tpu.vector_store %arg3[%c0_16, %c128], %23 {strides = array<i32>} : memref<4x384xf32, #tpu.memory_space<vmem>>, vector<4x256xf32>,
    return
  }
  func.func @transform_0(%arg0: i32) -> (i32, i32, i32, i32) {
    %c0_i32 = arith.constant 0 : i32
    %c0_i32_0 = arith.constant 0 : i32
    %c0_i32_1 = arith.constant 0 : i32
    %c0_i32_2 = arith.constant 0 : i32
    %c0_i32_3 = arith.constant 0 : i32
    return %c0_i32, %c0_i32_0, %c0_i32_1, %c0_i32_2 : i32, i32, i32, i32
  }
  func.func @transform_1(%arg0: i32) -> (i32, i32) {
    %c0_i32 = arith.constant 0 : i32
    %c0_i32_0 = arith.constant 0 : i32
    %c0_i32_1 = arith.constant 0 : i32
    return %c0_i32, %c0_i32_0 : i32, i32
  }
  func.func @transform_2(%arg0: i32) -> (i32, i32) {
    %c0_i32 = arith.constant 0 : i32
    %c0_i32_0 = arith.constant 0 : i32
    %c0_i32_1 = arith.constant 0 : i32
    return %c0_i32, %c0_i32_0 : i32, i32
  }
}

module attributes {stable_mosaic.version = 11 : i64} {
  func.func @encoder_kernel(%arg0: i32, %arg1: i32, %arg2: memref<1x1x4x28x28xf32, #tpu.memory_space<vmem>>, %arg3: memref<1x4x29x28xf32, #tpu.memory_space<vmem>>, %arg4: memref<1x4x15x18xf32, #tpu.memory_space<vmem>>, %arg5: memref<2x2xf32, #tpu.memory_space<smem>>, %arg6: memref<4x28x128xf32, #tpu.memory_space<vmem>>, %arg7: memref<18x28xf32, #tpu.memory_space<vmem>>, %arg8: memref<128x128xf32, #tpu.memory_space<vmem>>, %arg9: memref<28x128xf32, #tpu.memory_space<vmem>>, %arg10: memref<7x16x64xf32, #tpu.memory_space<vmem>>, %arg11: memref<1x1x4x64xf32, #tpu.memory_space<vmem>>) attributes {dimension_semantics = [#tpu.dimension_semantics<parallel>, #tpu.dimension_semantics<parallel>], iteration_bounds = array<i64: 2, 1>, scalar_prefetch = 0 : i64, scratch_operands = 0 : i64, tpu.core_type = #tpu.core_type<tc>, window_params = [{transform_indices = @transform_0, window_bounds = array<i64: 1, 1, 4, 28, 28>}, {transform_indices = @transform_1, window_bounds = array<i64: 1, 4, 29, 28>}, {transform_indices = @transform_2, window_bounds = array<i64: 1, 4, 15, 18>}, {transform_indices = @transform_3, window_bounds = array<i64: 2, 2>}, {pipeline_mode = #tpu.pipeline_mode<synchronous>, transform_indices = @transform_4, window_bounds = array<i64: 4, 28, 128>}, {pipeline_mode = #tpu.pipeline_mode<synchronous>, transform_indices = @transform_5, window_bounds = array<i64: 18, 28>}, {pipeline_mode = #tpu.pipeline_mode<synchronous>, transform_indices = @transform_6, window_bounds = array<i64: 128, 128>}, {pipeline_mode = #tpu.pipeline_mode<synchronous>, transform_indices = @transform_7, window_bounds = array<i64: 28, 128>}, {pipeline_mode = #tpu.pipeline_mode<synchronous>, transform_indices = @transform_8, window_bounds = array<i64: 7, 16, 64>}, {transform_indices = @transform_9, window_bounds = array<i64: 1, 1, 4, 64>}]} {
    %c0 = arith.constant 0 : index
    %c0_0 = arith.constant 0 : index
    %c0_1 = arith.constant 0 : index
    %c0_2 = arith.constant 0 : index
    %c0_3 = arith.constant 0 : index
    %0 = vector.load %arg2[%c0, %c0_0, %c0_1, %c0_2, %c0_3] : memref<1x1x4x28x28xf32, #tpu.memory_space<vmem>>, vector<1x1x1x28x28xf32>
    %1 = vector.shape_cast %0 : vector<1x1x1x28x28xf32> to vector<28x28xf32>
    %c0_4 = arith.constant 0 : index
    %c0_5 = arith.constant 0 : index
    %c0_6 = arith.constant 0 : index
    %2 = vector.load %arg6[%c0_4, %c0_5, %c0_6] : memref<4x28x128xf32, #tpu.memory_space<vmem>>, vector<1x28x128xf32>
    %3 = vector.shape_cast %2 : vector<1x28x128xf32> to vector<28x128xf32>
    %cst = arith.constant dense<0.000000e+00> : vector<28x128xf32>
    %4 = tpu.matmul %1, %3, %cst {dimension_numbers = #tpu.dot_dimension_numbers<[1], [0], [0], [1], [0, 0, 1, 1], [], []>} : vector<28x28xf32>, vector<28x128xf32>, vector<28x128xf32> -> vector<28x128xf32>
    %c0_7 = arith.constant 0 : index
    %c0_8 = arith.constant 0 : index
    %c1 = arith.constant 1 : index
    %c0_9 = arith.constant 0 : index
    %c0_10 = arith.constant 0 : index
    %5 = vector.load %arg2[%c0_7, %c0_8, %c1, %c0_9, %c0_10] : memref<1x1x4x28x28xf32, #tpu.memory_space<vmem>>, vector<1x1x1x28x28xf32>
    %6 = vector.shape_cast %5 : vector<1x1x1x28x28xf32> to vector<28x28xf32>
    %c1_11 = arith.constant 1 : index
    %c0_12 = arith.constant 0 : index
    %c0_13 = arith.constant 0 : index
    %7 = vector.load %arg6[%c1_11, %c0_12, %c0_13] : memref<4x28x128xf32, #tpu.memory_space<vmem>>, vector<1x28x128xf32>
    %8 = vector.shape_cast %7 : vector<1x28x128xf32> to vector<28x128xf32>
    %cst_14 = arith.constant dense<0.000000e+00> : vector<28x128xf32>
    %9 = tpu.matmul %6, %8, %cst_14 {dimension_numbers = #tpu.dot_dimension_numbers<[1], [0], [0], [1], [0, 0, 1, 1], [], []>} : vector<28x28xf32>, vector<28x128xf32>, vector<28x128xf32> -> vector<28x128xf32>
    %10 = arith.addf %4, %9 : vector<28x128xf32>
    %c0_15 = arith.constant 0 : index
    %c0_16 = arith.constant 0 : index
    %c2 = arith.constant 2 : index
    %c0_17 = arith.constant 0 : index
    %c0_18 = arith.constant 0 : index
    %11 = vector.load %arg2[%c0_15, %c0_16, %c2, %c0_17, %c0_18] : memref<1x1x4x28x28xf32, #tpu.memory_space<vmem>>, vector<1x1x1x28x28xf32>
    %12 = vector.shape_cast %11 : vector<1x1x1x28x28xf32> to vector<28x28xf32>
    %c2_19 = arith.constant 2 : index
    %c0_20 = arith.constant 0 : index
    %c0_21 = arith.constant 0 : index
    %13 = vector.load %arg6[%c2_19, %c0_20, %c0_21] : memref<4x28x128xf32, #tpu.memory_space<vmem>>, vector<1x28x128xf32>
    %14 = vector.shape_cast %13 : vector<1x28x128xf32> to vector<28x128xf32>
    %cst_22 = arith.constant dense<0.000000e+00> : vector<28x128xf32>
    %15 = tpu.matmul %12, %14, %cst_22 {dimension_numbers = #tpu.dot_dimension_numbers<[1], [0], [0], [1], [0, 0, 1, 1], [], []>} : vector<28x28xf32>, vector<28x128xf32>, vector<28x128xf32> -> vector<28x128xf32>
    %16 = arith.addf %10, %15 : vector<28x128xf32>
    %c0_23 = arith.constant 0 : index
    %c0_24 = arith.constant 0 : index
    %c3 = arith.constant 3 : index
    %c0_25 = arith.constant 0 : index
    %c0_26 = arith.constant 0 : index
    %17 = vector.load %arg2[%c0_23, %c0_24, %c3, %c0_25, %c0_26] : memref<1x1x4x28x28xf32, #tpu.memory_space<vmem>>, vector<1x1x1x28x28xf32>
    %18 = vector.shape_cast %17 : vector<1x1x1x28x28xf32> to vector<28x28xf32>
    %c3_27 = arith.constant 3 : index
    %c0_28 = arith.constant 0 : index
    %c0_29 = arith.constant 0 : index
    %19 = vector.load %arg6[%c3_27, %c0_28, %c0_29] : memref<4x28x128xf32, #tpu.memory_space<vmem>>, vector<1x28x128xf32>
    %20 = vector.shape_cast %19 : vector<1x28x128xf32> to vector<28x128xf32>
    %cst_30 = arith.constant dense<0.000000e+00> : vector<28x128xf32>
    %21 = tpu.matmul %18, %20, %cst_30 {dimension_numbers = #tpu.dot_dimension_numbers<[1], [0], [0], [1], [0, 0, 1, 1], [], []>} : vector<28x28xf32>, vector<28x128xf32>, vector<28x128xf32> -> vector<28x128xf32>
    %22 = arith.addf %16, %21 : vector<28x128xf32>
    %23 = arith.index_cast %arg0 : i32 to index
    %c0_31 = arith.constant 0 : index
    %24 = memref.load %arg5[%23, %c0_31] : memref<2x2xf32, #tpu.memory_space<smem>>
    %c0_32 = arith.constant 0 : index
    %c0_33 = arith.constant 0 : index
    %c0_34 = arith.constant 0 : index
    %c0_35 = arith.constant 0 : index
    %25 = vector.load %arg3[%c0_32, %c0_33, %c0_34, %c0_35] : memref<1x4x29x28xf32, #tpu.memory_space<vmem>>, vector<1x1x29x28xf32>
    %26 = vector.shape_cast %25 : vector<1x1x29x28xf32> to vector<29x28xf32>
    %cst_36 = arith.constant dense<0.000000e+00> : vector<29x128xf32>
    %27 = tpu.matmul %26, %22, %cst_36 {dimension_numbers = #tpu.dot_dimension_numbers<[1], [0], [0], [1], [0, 0, 1, 1], [], []>} : vector<29x28xf32>, vector<28x128xf32>, vector<29x128xf32> -> vector<29x128xf32>
    %c0_37 = arith.constant 0 : index
    %c1_38 = arith.constant 1 : index
    %c0_39 = arith.constant 0 : index
    %c0_40 = arith.constant 0 : index
    %28 = vector.load %arg3[%c0_37, %c1_38, %c0_39, %c0_40] : memref<1x4x29x28xf32, #tpu.memory_space<vmem>>, vector<1x1x29x28xf32>
    %29 = vector.shape_cast %28 : vector<1x1x29x28xf32> to vector<29x28xf32>
    %cst_41 = arith.constant dense<0.000000e+00> : vector<29x128xf32>
    %30 = tpu.matmul %29, %22, %cst_41 {dimension_numbers = #tpu.dot_dimension_numbers<[1], [0], [0], [1], [0, 0, 1, 1], [], []>} : vector<29x28xf32>, vector<28x128xf32>, vector<29x128xf32> -> vector<29x128xf32>
    %c127_i32 = arith.constant 127 : i32
    %31 = tpu.dynamic_rotate %30 by %c127_i32 dim 1 : vector<29x128xf32>, i32 -> vector<29x128xf32>
    %32 = arith.addf %27, %31 : vector<29x128xf32>
    %c0_42 = arith.constant 0 : index
    %c2_43 = arith.constant 2 : index
    %c0_44 = arith.constant 0 : index
    %c0_45 = arith.constant 0 : index
    %33 = vector.load %arg3[%c0_42, %c2_43, %c0_44, %c0_45] : memref<1x4x29x28xf32, #tpu.memory_space<vmem>>, vector<1x1x29x28xf32>
    %34 = vector.shape_cast %33 : vector<1x1x29x28xf32> to vector<29x28xf32>
    %cst_46 = arith.constant dense<0.000000e+00> : vector<29x128xf32>
    %35 = tpu.matmul %34, %22, %cst_46 {dimension_numbers = #tpu.dot_dimension_numbers<[1], [0], [0], [1], [0, 0, 1, 1], [], []>} : vector<29x28xf32>, vector<28x128xf32>, vector<29x128xf32> -> vector<29x128xf32>
    %c126_i32 = arith.constant 126 : i32
    %36 = tpu.dynamic_rotate %35 by %c126_i32 dim 1 : vector<29x128xf32>, i32 -> vector<29x128xf32>
    %37 = arith.addf %32, %36 : vector<29x128xf32>
    %c0_47 = arith.constant 0 : index
    %c3_48 = arith.constant 3 : index
    %c0_49 = arith.constant 0 : index
    %c0_50 = arith.constant 0 : index
    %38 = vector.load %arg3[%c0_47, %c3_48, %c0_49, %c0_50] : memref<1x4x29x28xf32, #tpu.memory_space<vmem>>, vector<1x1x29x28xf32>
    %39 = vector.shape_cast %38 : vector<1x1x29x28xf32> to vector<29x28xf32>
    %cst_51 = arith.constant dense<0.000000e+00> : vector<29x128xf32>
    %40 = tpu.matmul %39, %22, %cst_51 {dimension_numbers = #tpu.dot_dimension_numbers<[1], [0], [0], [1], [0, 0, 1, 1], [], []>} : vector<29x28xf32>, vector<28x128xf32>, vector<29x128xf32> -> vector<29x128xf32>
    %c125_i32 = arith.constant 125 : i32
    %41 = tpu.dynamic_rotate %40 by %c125_i32 dim 1 : vector<29x128xf32>, i32 -> vector<29x128xf32>
    %42 = arith.addf %37, %41 : vector<29x128xf32>
    %43 = vector.broadcast %24 : f32 to vector<29x128xf32>
    %44 = arith.addf %42, %43 : vector<29x128xf32>
    %cst_52 = arith.constant 0.000000e+00 : f32
    %45 = vector.broadcast %cst_52 : f32 to vector<29x128xf32>
    %46 = arith.maximumf %44, %45 : vector<29x128xf32>
    %47 = vector.extract_strided_slice %46 {offsets = [0, 0], sizes = [28, 128], strides = [1, 1]} : vector<29x128xf32> to vector<28x128xf32>
    %48 = vector.extract_strided_slice %46 {offsets = [1, 0], sizes = [28, 128], strides = [1, 1]} : vector<29x128xf32> to vector<28x128xf32>
    %49 = arith.maximumf %47, %48 : vector<28x128xf32>
    %c127_i32_53 = arith.constant 127 : i32
    %50 = tpu.dynamic_rotate %49 by %c127_i32_53 dim 1 : vector<28x128xf32>, i32 -> vector<28x128xf32>
    %51 = arith.maximumf %49, %50 : vector<28x128xf32>
    %c0_54 = arith.constant 0 : index
    %c0_55 = arith.constant 0 : index
    %52 = vector.load %arg7[%c0_54, %c0_55] : memref<18x28xf32, #tpu.memory_space<vmem>>, vector<18x28xf32>
    %cst_56 = arith.constant dense<0.000000e+00> : vector<18x128xf32>
    %53 = tpu.matmul %52, %51, %cst_56 {dimension_numbers = #tpu.dot_dimension_numbers<[1], [0], [0], [1], [0, 0, 1, 1], [], []>} : vector<18x28xf32>, vector<28x128xf32>, vector<18x128xf32> -> vector<18x128xf32>
    %c0_57 = arith.constant 0 : index
    %c0_58 = arith.constant 0 : index
    %54 = vector.load %arg8[%c0_57, %c0_58] : memref<128x128xf32, #tpu.memory_space<vmem>>, vector<128x128xf32>
    %cst_59 = arith.constant dense<0.000000e+00> : vector<18x128xf32>
    %55 = tpu.matmul %53, %54, %cst_59 {dimension_numbers = #tpu.dot_dimension_numbers<[1], [0], [0], [1], [0, 0, 1, 1], [], []>} : vector<18x128xf32>, vector<128x128xf32>, vector<18x128xf32> -> vector<18x128xf32>
    %56 = arith.index_cast %arg0 : i32 to index
    %c1_60 = arith.constant 1 : index
    %57 = memref.load %arg5[%56, %c1_60] : memref<2x2xf32, #tpu.memory_space<smem>>
    %c0_61 = arith.constant 0 : index
    %c0_62 = arith.constant 0 : index
    %c0_63 = arith.constant 0 : index
    %c0_64 = arith.constant 0 : index
    %58 = vector.load %arg4[%c0_61, %c0_62, %c0_63, %c0_64] : memref<1x4x15x18xf32, #tpu.memory_space<vmem>>, vector<1x1x15x18xf32>
    %59 = vector.shape_cast %58 : vector<1x1x15x18xf32> to vector<15x18xf32>
    %cst_65 = arith.constant dense<0.000000e+00> : vector<15x128xf32>
    %60 = tpu.matmul %59, %55, %cst_65 {dimension_numbers = #tpu.dot_dimension_numbers<[1], [0], [0], [1], [0, 0, 1, 1], [], []>} : vector<15x18xf32>, vector<18x128xf32>, vector<15x128xf32> -> vector<15x128xf32>
    %c0_66 = arith.constant 0 : index
    %c1_67 = arith.constant 1 : index
    %c0_68 = arith.constant 0 : index
    %c0_69 = arith.constant 0 : index
    %61 = vector.load %arg4[%c0_66, %c1_67, %c0_68, %c0_69] : memref<1x4x15x18xf32, #tpu.memory_space<vmem>>, vector<1x1x15x18xf32>
    %62 = vector.shape_cast %61 : vector<1x1x15x18xf32> to vector<15x18xf32>
    %cst_70 = arith.constant dense<0.000000e+00> : vector<15x128xf32>
    %63 = tpu.matmul %62, %55, %cst_70 {dimension_numbers = #tpu.dot_dimension_numbers<[1], [0], [0], [1], [0, 0, 1, 1], [], []>} : vector<15x18xf32>, vector<18x128xf32>, vector<15x128xf32> -> vector<15x128xf32>
    %c127_i32_71 = arith.constant 127 : i32
    %64 = tpu.dynamic_rotate %63 by %c127_i32_71 dim 1 : vector<15x128xf32>, i32 -> vector<15x128xf32>
    %65 = arith.addf %60, %64 : vector<15x128xf32>
    %c0_72 = arith.constant 0 : index
    %c2_73 = arith.constant 2 : index
    %c0_74 = arith.constant 0 : index
    %c0_75 = arith.constant 0 : index
    %66 = vector.load %arg4[%c0_72, %c2_73, %c0_74, %c0_75] : memref<1x4x15x18xf32, #tpu.memory_space<vmem>>, vector<1x1x15x18xf32>
    %67 = vector.shape_cast %66 : vector<1x1x15x18xf32> to vector<15x18xf32>
    %cst_76 = arith.constant dense<0.000000e+00> : vector<15x128xf32>
    %68 = tpu.matmul %67, %55, %cst_76 {dimension_numbers = #tpu.dot_dimension_numbers<[1], [0], [0], [1], [0, 0, 1, 1], [], []>} : vector<15x18xf32>, vector<18x128xf32>, vector<15x128xf32> -> vector<15x128xf32>
    %c126_i32_77 = arith.constant 126 : i32
    %69 = tpu.dynamic_rotate %68 by %c126_i32_77 dim 1 : vector<15x128xf32>, i32 -> vector<15x128xf32>
    %70 = arith.addf %65, %69 : vector<15x128xf32>
    %c0_78 = arith.constant 0 : index
    %c3_79 = arith.constant 3 : index
    %c0_80 = arith.constant 0 : index
    %c0_81 = arith.constant 0 : index
    %71 = vector.load %arg4[%c0_78, %c3_79, %c0_80, %c0_81] : memref<1x4x15x18xf32, #tpu.memory_space<vmem>>, vector<1x1x15x18xf32>
    %72 = vector.shape_cast %71 : vector<1x1x15x18xf32> to vector<15x18xf32>
    %cst_82 = arith.constant dense<0.000000e+00> : vector<15x128xf32>
    %73 = tpu.matmul %72, %55, %cst_82 {dimension_numbers = #tpu.dot_dimension_numbers<[1], [0], [0], [1], [0, 0, 1, 1], [], []>} : vector<15x18xf32>, vector<18x128xf32>, vector<15x128xf32> -> vector<15x128xf32>
    %c125_i32_83 = arith.constant 125 : i32
    %74 = tpu.dynamic_rotate %73 by %c125_i32_83 dim 1 : vector<15x128xf32>, i32 -> vector<15x128xf32>
    %75 = arith.addf %70, %74 : vector<15x128xf32>
    %76 = vector.broadcast %57 : f32 to vector<15x128xf32>
    %77 = arith.addf %75, %76 : vector<15x128xf32>
    %cst_84 = arith.constant 0.000000e+00 : f32
    %78 = vector.broadcast %cst_84 : f32 to vector<15x128xf32>
    %79 = arith.maximumf %77, %78 : vector<15x128xf32>
    %80 = vector.extract_strided_slice %79 {offsets = [0, 0], sizes = [14, 128], strides = [1, 1]} : vector<15x128xf32> to vector<14x128xf32>
    %81 = vector.extract_strided_slice %79 {offsets = [1, 0], sizes = [14, 128], strides = [1, 1]} : vector<15x128xf32> to vector<14x128xf32>
    %82 = arith.maximumf %80, %81 : vector<14x128xf32>
    %c127_i32_85 = arith.constant 127 : i32
    %83 = tpu.dynamic_rotate %82 by %c127_i32_85 dim 1 : vector<14x128xf32>, i32 -> vector<14x128xf32>
    %84 = arith.maximumf %82, %83 : vector<14x128xf32>
    %cst_86 = arith.constant 0.000000e+00 : f32
    %85 = vector.broadcast %cst_86 : f32 to vector<2x128xf32>
    %86 = tpu.concatenate %84, %85 in 0 : vector<14x128xf32>, vector<2x128xf32> -> vector<16x128xf32>
    %c0_87 = arith.constant 0 : index
    %c0_88 = arith.constant 0 : index
    %87 = vector.load %arg9[%c0_87, %c0_88] : memref<28x128xf32, #tpu.memory_space<vmem>>, vector<28x128xf32>
    %88 = tpu.transpose %86, [1, 0] : vector<16x128xf32> -> vector<128x16xf32>
    %cst_89 = arith.constant dense<0.000000e+00> : vector<28x16xf32>
    %89 = tpu.matmul %87, %88, %cst_89 {dimension_numbers = #tpu.dot_dimension_numbers<[1], [0], [0], [1], [0, 0, 1, 1], [], []>} : vector<28x128xf32>, vector<128x16xf32>, vector<28x16xf32> -> vector<28x16xf32>
    %90 = vector.extract_strided_slice %89 {offsets = [0, 0], sizes = [4, 16], strides = [1, 1]} : vector<28x16xf32> to vector<4x16xf32>
    %c0_90 = arith.constant 0 : index
    %c0_91 = arith.constant 0 : index
    %c0_92 = arith.constant 0 : index
    %91 = vector.load %arg10[%c0_90, %c0_91, %c0_92] : memref<7x16x64xf32, #tpu.memory_space<vmem>>, vector<1x16x64xf32>
    %92 = vector.shape_cast %91 : vector<1x16x64xf32> to vector<16x64xf32>
    %cst_93 = arith.constant dense<0.000000e+00> : vector<4x64xf32>
    %93 = tpu.matmul %90, %92, %cst_93 {dimension_numbers = #tpu.dot_dimension_numbers<[1], [0], [0], [1], [0, 0, 1, 1], [], []>} : vector<4x16xf32>, vector<16x64xf32>, vector<4x64xf32> -> vector<4x64xf32>
    %94 = vector.extract_strided_slice %89 {offsets = [4, 0], sizes = [4, 16], strides = [1, 1]} : vector<28x16xf32> to vector<4x16xf32>
    %c1_94 = arith.constant 1 : index
    %c0_95 = arith.constant 0 : index
    %c0_96 = arith.constant 0 : index
    %95 = vector.load %arg10[%c1_94, %c0_95, %c0_96] : memref<7x16x64xf32, #tpu.memory_space<vmem>>, vector<1x16x64xf32>
    %96 = vector.shape_cast %95 : vector<1x16x64xf32> to vector<16x64xf32>
    %cst_97 = arith.constant dense<0.000000e+00> : vector<4x64xf32>
    %97 = tpu.matmul %94, %96, %cst_97 {dimension_numbers = #tpu.dot_dimension_numbers<[1], [0], [0], [1], [0, 0, 1, 1], [], []>} : vector<4x16xf32>, vector<16x64xf32>, vector<4x64xf32> -> vector<4x64xf32>
    %98 = arith.addf %93, %97 : vector<4x64xf32>
    %99 = vector.extract_strided_slice %89 {offsets = [8, 0], sizes = [4, 16], strides = [1, 1]} : vector<28x16xf32> to vector<4x16xf32>
    %c2_98 = arith.constant 2 : index
    %c0_99 = arith.constant 0 : index
    %c0_100 = arith.constant 0 : index
    %100 = vector.load %arg10[%c2_98, %c0_99, %c0_100] : memref<7x16x64xf32, #tpu.memory_space<vmem>>, vector<1x16x64xf32>
    %101 = vector.shape_cast %100 : vector<1x16x64xf32> to vector<16x64xf32>
    %cst_101 = arith.constant dense<0.000000e+00> : vector<4x64xf32>
    %102 = tpu.matmul %99, %101, %cst_101 {dimension_numbers = #tpu.dot_dimension_numbers<[1], [0], [0], [1], [0, 0, 1, 1], [], []>} : vector<4x16xf32>, vector<16x64xf32>, vector<4x64xf32> -> vector<4x64xf32>
    %103 = arith.addf %98, %102 : vector<4x64xf32>
    %104 = vector.extract_strided_slice %89 {offsets = [12, 0], sizes = [4, 16], strides = [1, 1]} : vector<28x16xf32> to vector<4x16xf32>
    %c3_102 = arith.constant 3 : index
    %c0_103 = arith.constant 0 : index
    %c0_104 = arith.constant 0 : index
    %105 = vector.load %arg10[%c3_102, %c0_103, %c0_104] : memref<7x16x64xf32, #tpu.memory_space<vmem>>, vector<1x16x64xf32>
    %106 = vector.shape_cast %105 : vector<1x16x64xf32> to vector<16x64xf32>
    %cst_105 = arith.constant dense<0.000000e+00> : vector<4x64xf32>
    %107 = tpu.matmul %104, %106, %cst_105 {dimension_numbers = #tpu.dot_dimension_numbers<[1], [0], [0], [1], [0, 0, 1, 1], [], []>} : vector<4x16xf32>, vector<16x64xf32>, vector<4x64xf32> -> vector<4x64xf32>
    %108 = arith.addf %103, %107 : vector<4x64xf32>
    %109 = vector.extract_strided_slice %89 {offsets = [16, 0], sizes = [4, 16], strides = [1, 1]} : vector<28x16xf32> to vector<4x16xf32>
    %c4 = arith.constant 4 : index
    %c0_106 = arith.constant 0 : index
    %c0_107 = arith.constant 0 : index
    %110 = vector.load %arg10[%c4, %c0_106, %c0_107] : memref<7x16x64xf32, #tpu.memory_space<vmem>>, vector<1x16x64xf32>
    %111 = vector.shape_cast %110 : vector<1x16x64xf32> to vector<16x64xf32>
    %cst_108 = arith.constant dense<0.000000e+00> : vector<4x64xf32>
    %112 = tpu.matmul %109, %111, %cst_108 {dimension_numbers = #tpu.dot_dimension_numbers<[1], [0], [0], [1], [0, 0, 1, 1], [], []>} : vector<4x16xf32>, vector<16x64xf32>, vector<4x64xf32> -> vector<4x64xf32>
    %113 = arith.addf %108, %112 : vector<4x64xf32>
    %114 = vector.extract_strided_slice %89 {offsets = [20, 0], sizes = [4, 16], strides = [1, 1]} : vector<28x16xf32> to vector<4x16xf32>
    %c5 = arith.constant 5 : index
    %c0_109 = arith.constant 0 : index
    %c0_110 = arith.constant 0 : index
    %115 = vector.load %arg10[%c5, %c0_109, %c0_110] : memref<7x16x64xf32, #tpu.memory_space<vmem>>, vector<1x16x64xf32>
    %116 = vector.shape_cast %115 : vector<1x16x64xf32> to vector<16x64xf32>
    %cst_111 = arith.constant dense<0.000000e+00> : vector<4x64xf32>
    %117 = tpu.matmul %114, %116, %cst_111 {dimension_numbers = #tpu.dot_dimension_numbers<[1], [0], [0], [1], [0, 0, 1, 1], [], []>} : vector<4x16xf32>, vector<16x64xf32>, vector<4x64xf32> -> vector<4x64xf32>
    %118 = arith.addf %113, %117 : vector<4x64xf32>
    %119 = vector.extract_strided_slice %89 {offsets = [24, 0], sizes = [4, 16], strides = [1, 1]} : vector<28x16xf32> to vector<4x16xf32>
    %c6 = arith.constant 6 : index
    %c0_112 = arith.constant 0 : index
    %c0_113 = arith.constant 0 : index
    %120 = vector.load %arg10[%c6, %c0_112, %c0_113] : memref<7x16x64xf32, #tpu.memory_space<vmem>>, vector<1x16x64xf32>
    %121 = vector.shape_cast %120 : vector<1x16x64xf32> to vector<16x64xf32>
    %cst_114 = arith.constant dense<0.000000e+00> : vector<4x64xf32>
    %122 = tpu.matmul %119, %121, %cst_114 {dimension_numbers = #tpu.dot_dimension_numbers<[1], [0], [0], [1], [0, 0, 1, 1], [], []>} : vector<4x16xf32>, vector<16x64xf32>, vector<4x64xf32> -> vector<4x64xf32>
    %123 = arith.addf %118, %122 : vector<4x64xf32>
    %c0_115 = arith.constant 0 : index
    %c0_116 = arith.constant 0 : index
    %c0_117 = arith.constant 0 : index
    %c0_118 = arith.constant 0 : index
    %124 = vector.load %arg11[%c0_115, %c0_116, %c0_117, %c0_118] : memref<1x1x4x64xf32, #tpu.memory_space<vmem>>, vector<1x1x4x64xf32>
    %125 = vector.shape_cast %124 : vector<1x1x4x64xf32> to vector<4x64xf32>
    %126 = vector.shape_cast %123 : vector<4x64xf32> to vector<1x1x4x64xf32>
    tpu.vector_store %arg11[%c0_115, %c0_116, %c0_117, %c0_118], %126 {strides = array<i32>} : memref<1x1x4x64xf32, #tpu.memory_space<vmem>>, vector<1x1x4x64xf32>,
    return
  }
  func.func @transform_0(%arg0: i32, %arg1: i32) -> (i32, i32, i32, i32, i32) {
    %c0_i32 = arith.constant 0 : i32
    %c0_i32_0 = arith.constant 0 : i32
    %c0_i32_1 = arith.constant 0 : i32
    %c0_i32_2 = arith.constant 0 : i32
    return %arg0, %arg1, %c0_i32, %c0_i32_0, %c0_i32_1 : i32, i32, i32, i32, i32
  }
  func.func @transform_1(%arg0: i32, %arg1: i32) -> (i32, i32, i32, i32) {
    %c0_i32 = arith.constant 0 : i32
    %c0_i32_0 = arith.constant 0 : i32
    %c0_i32_1 = arith.constant 0 : i32
    %c0_i32_2 = arith.constant 0 : i32
    return %arg0, %c0_i32, %c0_i32_0, %c0_i32_1 : i32, i32, i32, i32
  }
  func.func @transform_2(%arg0: i32, %arg1: i32) -> (i32, i32, i32, i32) {
    %c0_i32 = arith.constant 0 : i32
    %c0_i32_0 = arith.constant 0 : i32
    %c0_i32_1 = arith.constant 0 : i32
    %c0_i32_2 = arith.constant 0 : i32
    return %arg0, %c0_i32, %c0_i32_0, %c0_i32_1 : i32, i32, i32, i32
  }
  func.func @transform_3(%arg0: i32, %arg1: i32) -> (i32, i32) {
    %c0_i32 = arith.constant 0 : i32
    %c0_i32_0 = arith.constant 0 : i32
    %c0_i32_1 = arith.constant 0 : i32
    return %c0_i32, %c0_i32_0 : i32, i32
  }
  func.func @transform_4(%arg0: i32, %arg1: i32) -> (i32, i32, i32) {
    %c0_i32 = arith.constant 0 : i32
    %c0_i32_0 = arith.constant 0 : i32
    %c0_i32_1 = arith.constant 0 : i32
    %c0_i32_2 = arith.constant 0 : i32
    return %c0_i32, %c0_i32_0, %c0_i32_1 : i32, i32, i32
  }
  func.func @transform_5(%arg0: i32, %arg1: i32) -> (i32, i32) {
    %c0_i32 = arith.constant 0 : i32
    %c0_i32_0 = arith.constant 0 : i32
    %c0_i32_1 = arith.constant 0 : i32
    return %c0_i32, %c0_i32_0 : i32, i32
  }
  func.func @transform_6(%arg0: i32, %arg1: i32) -> (i32, i32) {
    %c0_i32 = arith.constant 0 : i32
    %c0_i32_0 = arith.constant 0 : i32
    %c0_i32_1 = arith.constant 0 : i32
    return %c0_i32, %c0_i32_0 : i32, i32
  }
  func.func @transform_7(%arg0: i32, %arg1: i32) -> (i32, i32) {
    %c0_i32 = arith.constant 0 : i32
    %c0_i32_0 = arith.constant 0 : i32
    %c0_i32_1 = arith.constant 0 : i32
    return %c0_i32, %c0_i32_0 : i32, i32
  }
  func.func @transform_8(%arg0: i32, %arg1: i32) -> (i32, i32, i32) {
    %c0_i32 = arith.constant 0 : i32
    %c0_i32_0 = arith.constant 0 : i32
    %c0_i32_1 = arith.constant 0 : i32
    %c0_i32_2 = arith.constant 0 : i32
    return %c0_i32, %c0_i32_0, %c0_i32_1 : i32, i32, i32
  }
  func.func @transform_9(%arg0: i32, %arg1: i32) -> (i32, i32, i32, i32) {
    %c0_i32 = arith.constant 0 : i32
    %c0_i32_0 = arith.constant 0 : i32
    %c0_i32_1 = arith.constant 0 : i32
    return %arg0, %arg1, %c0_i32, %c0_i32_0 : i32, i32, i32, i32
  }
}

</mosaic_0001>

<llo_original>
// kernel: moco_forward.3
$region0: #{moco_forward.3}
  #allocation0 [shape = 'u32[]', space=smem, size = 0x4, offset = 0x4, fixed_abs, tag = 'smem constant byte address 0x4 - core index']
  #allocation1 [shape = 'u32[144,128]{1,0:T(1,128)}', space=vmem, size = 0x12000, scoped, tag = 'internal scratch']
  %s0 = inlined_call_operand.vmem [shape: f32[2,1,4,64], index: 0, kind: input, shape index: {}]
  %s1 = inlined_call_operand.vmem [shape: f32[49,256], index: 1, kind: input, shape index: {}]
  %s2 = inlined_call_operand.vmem [shape: f32[4,384], index: 2, kind: output, shape index: {}]
  %s3 = sld [smem:[#allocation0]]
  $region18: #{moco_forward.3} parent=0
    _
  %s5 = ssub.s32 1, %s3
  %s6 = scalar_select 0, %s5, %s3
  // Predicated region
  $region2: #{moco_forward.3} parent=0 // pred_check
    _
  $region3: #{moco_forward.3} parent=0 // pred_check_branch
    %8 = sbr.rel (0) target = $region5
  $region4: #{moco_forward.3} parent=0 // pred_region
    _
  $region5: #{moco_forward.3} parent=0 // pred_fallthru
    _
  // Predicated region
  $region6: #{moco_forward.3} parent=0 // pred_check
    _
  $region7: #{moco_forward.3} parent=0 // pred_check_branch
    %10 = sbr.rel (0) target = $region9
  $region8: #{moco_forward.3} parent=0 // pred_region
    _
  $region9: #{moco_forward.3} parent=0 // pred_fallthru
    _
  %v11 = vld [vmem:[%s0] sm:$0xf]
  %s12 = scalar_lea.vmem %s0, 4
  %v13 = vld [vmem:[%s12] sm:$0xf]
  %v14 = vmul.f32 %v11, %v11
  %vm15 = vcmask 519168
  %v16 = vsel %vm15, %v14, 0.0
  %17 = vadd.xlane.f32.xlu0 %v16
  %v18 = vpop.xlane.xlu0 %17
  %v19 = vmax.f32 %v18, 1e-24
  %v20 = vrsqrt.pop %v19
  %v21 = vmul.f32 %v11, %v20
  %v22 = vmul.f32 %v21, %v13
  %v23 = vsel %vm15, %v22, 0.0
  %24 = vadd.xlane.f32.xlu0 %v23
  %v25 = vpop.xlane.xlu0 %24
  %v26 = vmul.f32 %v25, 14.285714
  %v27 = vld [vmem:[%s1] sm:$0xff]
  %v28 = vld [vmem:[%s1 + $0x8] sm:$0xff]
  %v29 = vld [vmem:[%s1 + $0x10] sm:$0xff]
  %v30 = vld [vmem:[%s1 + $0x18] sm:$0xff]
  %v31 = vld [vmem:[%s1 + $0x20] sm:$0xff]
  %v32 = vld [vmem:[%s1 + $0x28] sm:$0xff]
  %v33 = vld [vmem:[%s1 + $0x30] sm:$0xff]
  %v34 = vld [vmem:[%s1 + $0x38] sm:$0xff]
  %v35 = vld [vmem:[%s1 + $0x40] sm:$0xff]
  %v36 = vld [vmem:[%s1 + $0x48] sm:$0xff]
  %v37 = vld [vmem:[%s1 + $0x50] sm:$0xff]
  %v38 = vld [vmem:[%s1 + $0x58] sm:$0xff]
  %v39 = vld [vmem:[%s1 + $0x60] sm:$0x1]
  %v40 = vld [vmem:[%s1 + $0x68] sm:$0x1]
  %vm41 = vcmask 400384
  %v43 = vsel %vm41, %v21, 0
  %vm45 = vcmask 1040384
  %v47 = vsel %vm45, %v39, 0
  %v50 = vsel %vm45, %v40, 0
  %52 = vmatprep.subr.mxu0 %v28
  %53 = vmatpush1.msra.mxu0 %v27
  %54 = vmatprep.subr.mxu0 %v30
  %55 = vmatpush1.msra.mxu0 %v29
  %56 = vmatprep.subr.mxu0 %v32
  %57 = vmatpush1.msra.mxu0 %v31
  %58 = vmatprep.subr.mxu0 %v34
  %59 = vmatpush1.msra.mxu0 %v33
  %60 = vmatprep.subr.mxu0 %v36
  %61 = vmatpush1.msra.mxu0 %v35
  %62 = vmatprep.subr.mxu0 %v38
  %63 = vmatpush1.msra.mxu0 %v37
  %64 = vmatprep.subr.mxu0 %v50
  %65 = vmatpush1.msra.mxu0 %v47
  %66 = vmatprep.subr.mxu0 0.0
  %67 = vmatpush1.msra.mxu0 0.0
  %68 = vmatprep.subr.mxu0 0.0
  %69 = vmatpush1.msra.mxu0 0.0
  %70 = vmatprep.subr.mxu0 0.0
  %71 = vmatpush1.msra.mxu0 0.0
  %72 = vmatprep.subr.mxu0 0.0
  %73 = vmatpush1.msra.mxu0 0.0
  %74 = vmatprep.subr.mxu0 0.0
  %75 = vmatpush1.msra.mxu0 0.0
  %76 = vmatprep.subr.mxu0 0.0
  %77 = vmatpush1.msra.mxu0 0.0
  %78 = vmatprep.subr.mxu0 0.0
  %79 = vmatpush1.msra.mxu0 0.0
  %80 = vmatprep.subr.mxu0 0.0
  %81 = vmatpush1.msra.mxu0 0.0
  %82 = vmatprep.subr.mxu0 0.0
  %83 = vmatpush1.msra.mxu0 0.0
  %84 = vmatprep.subr.mxu0 0.0
  %85 = vmatpush1.msra.mxu0 0.0
  %86 = vmatprep.subr.mxu0 0.0
  %87 = vmatpush1.msra.mxu0 0.0
  %88 = vmatprep.subr.mxu0 0.0
  %89 = vmatpush1.msra.mxu0 0.0
  %90 = vmatprep.subr.mxu0 0.0
  %91 = vmatpush1.msra.mxu0 0.0
  %92 = vmatprep.subr.mxu0 0.0
  %93 = vmatpush1.msra.mxu0 0.0
  %94 = vmatprep.subr.mxu0 0.0
  %95 = vmatpush1.msra.mxu0 0.0
  %96 = vmatprep.subr.mxu0 0.0
  %97 = vmatpush1.msra.mxu0 0.0
  %98 = vmatprep.subr.mxu0 0.0
  %99 = vmatpush1.msra.mxu0 0.0
  %100 = vmatprep.subr.mxu0 0.0
  %101 = vmatpush1.msra.mxu0 0.0
  %102 = vmatprep.subr.mxu0 0.0
  %103 = vmatpush1.msra.mxu0 0.0
  %104 = vmatprep.subr.mxu0 0.0
  %105 = vmatpush1.msra.mxu0 0.0
  %106 = vmatprep.subr.mxu0 0.0
  %107 = vmatpush1.msra.mxu0 0.0
  %108 = vmatprep.subr.mxu0 0.0
  %109 = vmatpush1.msra.mxu0 0.0
  %110 = vmatprep.subr.mxu0 0.0
  %111 = vmatpush1.msra.mxu0 0.0
  %112 = vmatprep.subr.mxu0 0.0
  %113 = vmatpush1.msra.mxu0 0.0
  %114 = vmatprep.subr.mxu0 0.0
  %115 = vmatpush1.msra.mxu0 0.0
  %116 = vmatprep.mubr.f32.mxu0 0.0
  %117 = vmatmul.mubr.f32.gmra.mrb[0].mxu0 %v43
  %v118 = vpop.f32.mrb[0].mxu0
  %v119 = vadd.f32 0.0, %v118
  %v120 = vpop.f32.mrb[0].mxu0
  %v121 = vadd.f32 0.0, %v120
  %122 = vdwg.mxu0
  %v123 = vmul.f32 %v119, 14.285714
  %v124 = vmul.f32 %v121, 14.285714
  %v125 = vlaneseq
  %v126 = vand.u32 %v125, 127
  %vm127 = vcmp.eq.s32.totalorder %v126, 127
  %v128 = vsel %vm127, %v26, 0.0
  %129 = vst [vmem:[%s2] sm:$0xf] %v128
  %v132 = vcombine.low %v123, %v124
  %134 = vst [vmem:[%s2 + $0x4] sm:$0xff] %v132
  // Predicated region
  $region10: #{moco_forward.3} parent=0 // pred_check
    _
  $region11: #{moco_forward.3} parent=0 // pred_check_branch
    %136 = sbr.rel (0) target = $region13
  $region12: #{moco_forward.3} parent=0 // pred_region
    _
  $region13: #{moco_forward.3} parent=0 // pred_fallthru
    _
  // Predicated region
  $region14: #{moco_forward.3} parent=0 // pred_check
    _
  $region15: #{moco_forward.3} parent=0 // pred_check_branch
    %138 = sbr.rel (0) target = $region17
  $region16: #{moco_forward.3} parent=0 // pred_region
    _
  $region17: #{moco_forward.3} parent=0 // pred_fallthru
    _

// kernel: moco_forward.2
$region0: #{moco_forward.2}
  #allocation0 [shape = 'u32[]', space=smem, size = 0x4, offset = 0x4, fixed_abs, tag = 'smem constant byte address 0x4 - core index']
  #allocation1 [shape = 'u32[144,128]{1,0:T(1,128)}', space=vmem, size = 0x12000, scoped, tag = 'internal scratch']
  %s0 = inlined_call_operand.vmem [shape: f32[2,1,4,28,28], index: 0, kind: input, shape index: {}]
  %s1 = inlined_call_operand.vmem [shape: f32[2,4,29,28], index: 1, kind: input, shape index: {}]
  %s2 = inlined_call_operand.vmem [shape: f32[2,4,15,18], index: 2, kind: input, shape index: {}]
  %s3 = inlined_call_operand.vmem [shape: f32[2,2], index: 3, kind: input, shape index: {}]
  %s4 = inlined_call_operand.vmem [shape: f32[4,28,128], index: 4, kind: input, shape index: {}]
  %s5 = inlined_call_operand.vmem [shape: f32[18,28], index: 5, kind: input, shape index: {}]
  %s6 = inlined_call_operand.vmem [shape: f32[128,128], index: 6, kind: input, shape index: {}]
  %s7 = inlined_call_operand.vmem [shape: f32[28,128], index: 7, kind: input, shape index: {}]
  %s8 = inlined_call_operand.vmem [shape: f32[7,16,64], index: 8, kind: input, shape index: {}]
  %s9 = inlined_call_operand.vmem [shape: f32[2,1,4,64], index: 9, kind: output, shape index: {}]
  %s10 = sld [smem:[#allocation0]]
  $region73: #{moco_forward.2} parent=0
    _
  %s12 = ssub.s32 1, %s10
  %s13 = scalar_select 0, %s12, %s10
  $region1: #{moco_forward.2} parent=0
    #allocation2 [shape = 'u8[1024]{0}', space=smem, size = 0x400, scoped, tag = 'input window, operand 3, single buffered']
    #allocation3 [shape = 's32[2]{0}', space=sflag, size = 0x8, scoped, tag = 'scoped memory for moco_forward.2']
    %14 = vsyncpa [#allocation3], 0
    loop: start=0, step=1, limit=4
    $region2: #{moco_forward.2} parent=1 // loop_pre_header
      _
    $region3: #{moco_forward.2} parent=1 // loop_header
      %s16 = sphi 0, %s20
      %p17 = scmp.ge.s32.totalorder %s16, 4
      %s23 = sphi 0, %s35
      %s24 = sphi 0, %s31
      %s25 = sphi 0, %s23
      %s26 = sphi 0, %s24
      %s27 = sphi 0, %s25
      %s28 = sphi 0, %s26
      %s40 = sphi 0, %s42
      %s43 = sphi 0, %s40
      %s44 = sphi 0, %s43
      %s60 = sphi 0, %s44
      %s66 = sphi 0, %s68
      %s69 = sphi 0, %s66
      %s70 = sphi 0, %s69
      %s86 = sphi 0, %s70
      %s92 = sphi 0, %s94
      %s95 = sphi 0, %s92
      %s96 = sphi 0, %s95
      %s112 = sphi 0, %s96
      %s116 = sphi 0, %s116
      %s118 = sphi 0, %s116
      %s119 = sphi 0, %s118
      %s133 = sphi 0, %s119
      %s137 = sphi 0, %s137
      %s139 = sphi 0, %s137
      %s140 = sphi 0, %s139
      %s154 = sphi 0, %s140
      %s158 = sphi 0, %s158
      %s160 = sphi 0, %s158
      %s161 = sphi 0, %s160
      %s175 = sphi 0, %s161
      %s179 = sphi 0, %s179
      %s181 = sphi 0, %s179
      %s182 = sphi 0, %s181
      %s196 = sphi 0, %s182
      %s200 = sphi 0, %s200
      %s202 = sphi 0, %s200
      %s203 = sphi 0, %s202
      %s217 = sphi 0, %s203
      %s221 = sphi 0, %s221
      %s223 = sphi 0, %s221
      %s224 = sphi 0, %s223
      %s238 = sphi 0, %s224
      %s246 = sphi 0, %s248
      %s249 = sphi 0, %s246
      %s250 = sphi 0, %s249
      %s266 = sphi 0, %s250
    $region4: #{moco_forward.2} parent=1 // loop_header_branch
      %19 = sbr.rel (%p17) target = $region8
    $region5: #{moco_forward.2} parent=1 // loop_body
      %s21 = ssub.s32 %s16, 1
      %s22 = ssub.s32 %s16, 2
      %s29 = sadd.s32 1, %s24
      %p30 = scmp.ge.s32.totalorder %s29, 1
      %s31 = scalar_select %p30, 0, %s29
      %s32 = sadd.s32 1, %s23
      %s33 = scalar_select %p30, %s32, %s23
      %p34 = scmp.ge.s32.totalorder %s33, 2
      %s35 = scalar_select %p34, 0, %s33
      %s36 = ssub.s32 %s23, %s35
      %s37 = ssub.s32 %s24, %s31
      %s38 = sor.u32 %s36, %s37
      %p39 = scmp.eq.s32.totalorder %s38, 0
      %s41 = sadd.s32 %s40, 1
      %s42 = scalar_select %p39, %s40, %s41
      %p45 = pneg %p39
      %p46 = scmp.eq.s32.totalorder %s16, 1
      %p47 = por %p45, %p46
      %p48 = scmp.ne.s32.totalorder %s40, %s43
      %p49 = scmp.eq.s32.totalorder %s16, 0
      %p50 = por %p48, %p49
      %p51 = scmp.ne.s32.totalorder %s40, %s43
      %p52 = scmp.eq.s32.totalorder %s21, 1
      %p53 = por %p51, %p52
      %p54 = scmp.ne.s32.totalorder %s43, %s44
      %p55 = scmp.eq.s32.totalorder %s21, 0
      %p56 = por %p54, %p55
      %p57 = scmp.ne.s32.totalorder %s43, %s44
      %p58 = scmp.eq.s32.totalorder %s22, 1
      %p59 = por %p57, %p58
      %p61 = scmp.ne.s32.totalorder %s44, %s60
      %p62 = scmp.eq.s32.totalorder %s22, 0
      %p63 = por %p61, %p62
      %s64 = ssub.s32 %s23, %s35
      %p65 = scmp.eq.s32.totalorder %s64, 0
      %s67 = sadd.s32 %s66, 1
      %s68 = scalar_select %p65, %s66, %s67
      %p71 = pneg %p65
      %p72 = scmp.eq.s32.totalorder %s16, 1
      %p73 = por %p71, %p72
      %p74 = scmp.ne.s32.totalorder %s66, %s69
      %p75 = scmp.eq.s32.totalorder %s16, 0
      %p76 = por %p74, %p75
      %p77 = scmp.ne.s32.totalorder %s66, %s69
      %p78 = scmp.eq.s32.totalorder %s21, 1
      %p79 = por %p77, %p78
      %p80 = scmp.ne.s32.totalorder %s69, %s70
      %p81 = scmp.eq.s32.totalorder %s21, 0
      %p82 = por %p80, %p81
      %p83 = scmp.ne.s32.totalorder %s69, %s70
      %p84 = scmp.eq.s32.totalorder %s22, 1
      %p85 = por %p83, %p84
      %p87 = scmp.ne.s32.totalorder %s70, %s86
      %p88 = scmp.eq.s32.totalorder %s22, 0
      %p89 = por %p87, %p88
      %s90 = ssub.s32 %s23, %s35
      %p91 = scmp.eq.s32.totalorder %s90, 0
      %s93 = sadd.s32 %s92, 1
      %s94 = scalar_select %p91, %s92, %s93
      %p97 = pneg %p91
      %p98 = scmp.eq.s32.totalorder %s16, 1
      %p99 = por %p97, %p98
      %p100 = scmp.ne.s32.totalorder %s92, %s95
      %p101 = scmp.eq.s32.totalorder %s16, 0
      %p102 = por %p100, %p101
      %p103 = scmp.ne.s32.totalorder %s92, %s95
      %p104 = scmp.eq.s32.totalorder %s21, 1
      %p105 = por %p103, %p104
      %p106 = scmp.ne.s32.totalorder %s95, %s96
      %p107 = scmp.eq.s32.totalorder %s21, 0
      %p108 = por %p106, %p107
      %p109 = scmp.ne.s32.totalorder %s95, %s96
      %p110 = scmp.eq.s32.totalorder %s22, 1
      %p111 = por %p109, %p110
      %p113 = scmp.ne.s32.totalorder %s96, %s112
      %p114 = scmp.eq.s32.totalorder %s22, 0
      %p115 = por %p113, %p114
      %s117 = sadd.s32 %s116, 1
      %p120 = scmp.eq.s32.totalorder %s16, 1
      %p121 = scmp.ne.s32.totalorder %s116, %s118
      %p122 = scmp.eq.s32.totalorder %s16, 0
      %p123 = por %p121, %p122
      %p124 = scmp.ne.s32.totalorder %s116, %s118
      %p125 = scmp.eq.s32.totalorder %s21, 1
      %p126 = por %p124, %p125
      %p127 = scmp.ne.s32.totalorder %s118, %s119
      %p128 = scmp.eq.s32.totalorder %s21, 0
      %p129 = por %p127, %p128
      %p130 = scmp.ne.s32.totalorder %s118, %s119
      %p131 = scmp.eq.s32.totalorder %s22, 1
      %p132 = por %p130, %p131
      %p134 = scmp.ne.s32.totalorder %s119, %s133
      %p135 = scmp.eq.s32.totalorder %s22, 0
      %p136 = por %p134, %p135
      %s138 = sadd.s32 %s137, 1
      %p141 = scmp.eq.s32.totalorder %s16, 1
      %p142 = scmp.ne.s32.totalorder %s137, %s139
      %p143 = scmp.eq.s32.totalorder %s16, 0
      %p144 = por %p142, %p143
      %p145 = scmp.ne.s32.totalorder %s137, %s139
      %p146 = scmp.eq.s32.totalorder %s21, 1
      %p147 = por %p145, %p146
      %p148 = scmp.ne.s32.totalorder %s139, %s140
      %p149 = scmp.eq.s32.totalorder %s21, 0
      %p150 = por %p148, %p149
      %p151 = scmp.ne.s32.totalorder %s139, %s140
      %p152 = scmp.eq.s32.totalorder %s22, 1
      %p153 = por %p151, %p152
      %p155 = scmp.ne.s32.totalorder %s140, %s154
      %p156 = scmp.eq.s32.totalorder %s22, 0
      %p157 = por %p155, %p156
      %s159 = sadd.s32 %s158, 1
      %p162 = scmp.eq.s32.totalorder %s16, 1
      %p163 = scmp.ne.s32.totalorder %s158, %s160
      %p164 = scmp.eq.s32.totalorder %s16, 0
      %p165 = por %p163, %p164
      %p166 = scmp.ne.s32.totalorder %s158, %s160
      %p167 = scmp.eq.s32.totalorder %s21, 1
      %p168 = por %p166, %p167
      %p169 = scmp.ne.s32.totalorder %s160, %s161
      %p170 = scmp.eq.s32.totalorder %s21, 0
      %p171 = por %p169, %p170
      %p172 = scmp.ne.s32.totalorder %s160, %s161
      %p173 = scmp.eq.s32.totalorder %s22, 1
      %p174 = por %p172, %p173
      %p176 = scmp.ne.s32.totalorder %s161, %s175
      %p177 = scmp.eq.s32.totalorder %s22, 0
      %p178 = por %p176, %p177
      %s180 = sadd.s32 %s179, 1
      %p183 = scmp.eq.s32.totalorder %s16, 1
      %p184 = scmp.ne.s32.totalorder %s179, %s181
      %p185 = scmp.eq.s32.totalorder %s16, 0
      %p186 = por %p184, %p185
      %p187 = scmp.ne.s32.totalorder %s179, %s181
      %p188 = scmp.eq.s32.totalorder %s21, 1
      %p189 = por %p187, %p188
      %p190 = scmp.ne.s32.totalorder %s181, %s182
      %p191 = scmp.eq.s32.totalorder %s21, 0
      %p192 = por %p190, %p191
      %p193 = scmp.ne.s32.totalorder %s181, %s182
      %p194 = scmp.eq.s32.totalorder %s22, 1
      %p195 = por %p193, %p194
      %p197 = scmp.ne.s32.totalorder %s182, %s196
      %p198 = scmp.eq.s32.totalorder %s22, 0
      %p199 = por %p197, %p198
      %s201 = sadd.s32 %s200, 1
      %p204 = scmp.eq.s32.totalorder %s16, 1
      %p205 = scmp.ne.s32.totalorder %s200, %s202
      %p206 = scmp.eq.s32.totalorder %s16, 0
      %p207 = por %p205, %p206
      %p208 = scmp.ne.s32.totalorder %s200, %s202
      %p209 = scmp.eq.s32.totalorder %s21, 1
      %p210 = por %p208, %p209
      %p211 = scmp.ne.s32.totalorder %s202, %s203
      %p212 = scmp.eq.s32.totalorder %s21, 0
      %p213 = por %p211, %p212
      %p214 = scmp.ne.s32.totalorder %s202, %s203
      %p215 = scmp.eq.s32.totalorder %s22, 1
      %p216 = por %p214, %p215
      %p218 = scmp.ne.s32.totalorder %s203, %s217
      %p219 = scmp.eq.s32.totalorder %s22, 0
      %p220 = por %p218, %p219
      %s222 = sadd.s32 %s221, 1
      %p225 = scmp.eq.s32.totalorder %s16, 1
      %p226 = scmp.ne.s32.totalorder %s221, %s223
      %p227 = scmp.eq.s32.totalorder %s16, 0
      %p228 = por %p226, %p227
      %p229 = scmp.ne.s32.totalorder %s221, %s223
      %p230 = scmp.eq.s32.totalorder %s21, 1
      %p231 = por %p229, %p230
      %p232 = scmp.ne.s32.totalorder %s223, %s224
      %p233 = scmp.eq.s32.totalorder %s21, 0
      %p234 = por %p232, %p233
      %p235 = scmp.ne.s32.totalorder %s223, %s224
      %p236 = scmp.eq.s32.totalorder %s22, 1
      %p237 = por %p235, %p236
      %p239 = scmp.ne.s32.totalorder %s224, %s238
      %p240 = scmp.eq.s32.totalorder %s22, 0
      %p241 = por %p239, %p240
      %s242 = ssub.s32 %s23, %s35
      %s243 = ssub.s32 %s24, %s31
      %s244 = sor.u32 %s242, %s243
      %p245 = scmp.eq.s32.totalorder %s244, 0
      %s247 = sadd.s32 %s246, 1
      %s248 = scalar_select %p245, %s246, %s247
      %p251 = pneg %p245
      %p252 = scmp.eq.s32.totalorder %s16, 1
      %p253 = por %p251, %p252
      %p254 = scmp.ne.s32.totalorder %s246, %s249
      %p255 = scmp.eq.s32.totalorder %s16, 0
      %p256 = por %p254, %p255
      %p257 = scmp.ne.s32.totalorder %s246, %s249
      %p258 = scmp.eq.s32.totalorder %s21, 1
      %p259 = por %p257, %p258
      %p260 = scmp.ne.s32.totalorder %s249, %s250
      %p261 = scmp.eq.s32.totalorder %s21, 0
      %p262 = por %p260, %p261
      %p263 = scmp.ne.s32.totalorder %s249, %s250
      %p264 = scmp.eq.s32.totalorder %s22, 1
      %p265 = por %p263, %p264
      %p267 = scmp.ne.s32.totalorder %s250, %s266
      %p268 = scmp.eq.s32.totalorder %s22, 0
      %p269 = por %p267, %p268
      %p270 = scmp.le.s32.totalorder 1, %s16
      %p271 = scmp.lt.s32.totalorder %s16, 3
      %p272 = pnand %p270, %p271
      %p273 = pneg %p272
      // Predicated region
      $region9: #{moco_forward.2} parent=5 // pred_check
        _
      $region10: #{moco_forward.2} parent=5 // pred_check_branch
        %275 = sbr.rel (%p272) target = $region12
      $region11: #{moco_forward.2} parent=5 // pred_region
        %s276 = ssub.s32 %s16, 1
        // Predicated region
        $region13: #{moco_forward.2} parent=11 // pred_check
          %p277 = pneg %p129
        $region14: #{moco_forward.2} parent=11 // pred_check_branch
          %279 = sbr.rel (%p277) target = $region16
        $region15: #{moco_forward.2} parent=11 // pred_region
          %s281 = ssub.s32 32, 32
          %282 = vsyncadd [#allocation3], %s281
          %s284 = sshll.u32 %s3, 4
          %s285 = int_to_ptr.vmem [resolvable:$true] %s284
          %287 = dma.vmem_to_smem %s285, 32, [#allocation2], [#allocation3]
        $region16: #{moco_forward.2} parent=11 // pred_fallthru
          _
        // Predicated region
        $region17: #{moco_forward.2} parent=11 // pred_check
          %p288 = pneg %p150
        $region18: #{moco_forward.2} parent=11 // pred_check_branch
          %290 = sbr.rel (%p288) target = $region20
        $region19: #{moco_forward.2} parent=11 // pred_region
          _
        $region20: #{moco_forward.2} parent=11 // pred_fallthru
          _
        // Predicated region
        $region21: #{moco_forward.2} parent=11 // pred_check
          %p291 = pneg %p171
        $region22: #{moco_forward.2} parent=11 // pred_check_branch
          %293 = sbr.rel (%p291) target = $region24
        $region23: #{moco_forward.2} parent=11 // pred_region
          _
        $region24: #{moco_forward.2} parent=11 // pred_fallthru
          _
        // Predicated region
        $region25: #{moco_forward.2} parent=11 // pred_check
          %p294 = pneg %p192
        $region26: #{moco_forward.2} parent=11 // pred_check_branch
          %296 = sbr.rel (%p294) target = $region28
        $region27: #{moco_forward.2} parent=11 // pred_region
          _
        $region28: #{moco_forward.2} parent=11 // pred_fallthru
          _
        // Predicated region
        $region29: #{moco_forward.2} parent=11 // pred_check
          %p297 = pneg %p213
        $region30: #{moco_forward.2} parent=11 // pred_check_branch
          %299 = sbr.rel (%p297) target = $region32
        $region31: #{moco_forward.2} parent=11 // pred_region
          _
        $region32: #{moco_forward.2} parent=11 // pred_fallthru
          _
        // Predicated region
        $region33: #{moco_forward.2} parent=11 // pred_check
          %p300 = pneg %p234
        $region34: #{moco_forward.2} parent=11 // pred_check_branch
          %302 = sbr.rel (%p300) target = $region36
        $region35: #{moco_forward.2} parent=11 // pred_region
          _
        $region36: #{moco_forward.2} parent=11 // pred_fallthru
          _
      $region12: #{moco_forward.2} parent=5 // pred_fallthru
        _
      %p303 = scmp.lt.s32.totalorder %s16, 2
      // Predicated region
      $region37: #{moco_forward.2} parent=5 // pred_check
        %p304 = pneg %p303
      $region38: #{moco_forward.2} parent=5 // pred_check_branch
        %306 = sbr.rel (%p304) target = $region40
      $region39: #{moco_forward.2} parent=5 // pred_region
        // Predicated region
        $region41: #{moco_forward.2} parent=39 // pred_check
          %p307 = pneg %p50
        $region42: #{moco_forward.2} parent=39 // pred_check_branch
          %309 = sbr.rel (%p307) target = $region44
        $region43: #{moco_forward.2} parent=39 // pred_region
          %p310 = scmp.lt.s32.totalorder %s23, 1
          %s311 = scalar_select %p310, %s23, 1
          %p312 = scmp.lt.s32.totalorder %s24, 0
          %s313 = scalar_select %p312, %s24, 0
          %s314 = smul.addr %s313, 16
          %s315 = smul.addr %s311, 16
          %s316 = sadd.s32 %s314, %s315
          %s317 = smul.addr %s316, 8
          %s318 = scalar_lea.vmem %s0, %s317
        $region44: #{moco_forward.2} parent=39 // pred_fallthru
          _
        // Predicated region
        $region45: #{moco_forward.2} parent=39 // pred_check
          %p319 = pneg %p76
        $region46: #{moco_forward.2} parent=39 // pred_check_branch
          %321 = sbr.rel (%p319) target = $region48
        $region47: #{moco_forward.2} parent=39 // pred_region
          %p322 = scmp.lt.s32.totalorder %s23, 1
          %s323 = scalar_select %p322, %s23, 1
          %s324 = smul.addr %s323, 16
          %s325 = smul.addr %s324, 8
          %s326 = scalar_lea.vmem %s1, %s325
        $region48: #{moco_forward.2} parent=39 // pred_fallthru
          _
        // Predicated region
        $region49: #{moco_forward.2} parent=39 // pred_check
          %p327 = pneg %p102
        $region50: #{moco_forward.2} parent=39 // pred_check_branch
          %329 = sbr.rel (%p327) target = $region52
        $region51: #{moco_forward.2} parent=39 // pred_region
          %p330 = scmp.lt.s32.totalorder %s23, 1
          %s331 = scalar_select %p330, %s23, 1
          %s332 = smul.addr %s331, 8
          %s333 = smul.addr %s332, 8
          %s334 = scalar_lea.vmem %s2, %s333
        $region52: #{moco_forward.2} parent=39 // pred_fallthru
          _
      $region40: #{moco_forward.2} parent=5 // pred_fallthru
        _
      %p335 = scmp.le.s32.totalorder 1, %s16
      %p336 = scmp.lt.s32.totalorder %s16, 3
      %p337 = pnand %p335, %p336
      %p338 = pneg %p337
      // Predicated region
      $region53: #{moco_forward.2} parent=5 // pred_check
        _
      $region54: #{moco_forward.2} parent=5 // pred_check_branch
        %340 = sbr.rel (%p337) target = $region56
      $region55: #{moco_forward.2} parent=5 // pred_region
        %s341 = ssub.s32 %s16, 1
        // Predicated region
        $region57: #{moco_forward.2} parent=55 // pred_check
          %p342 = pneg %p129
        $region58: #{moco_forward.2} parent=55 // pred_check_branch
          %344 = sbr.rel (%p342) target = $region60
        $region59: #{moco_forward.2} parent=55 // pred_region
          %345 = dma.done [#allocation3], 32
        $region60: #{moco_forward.2} parent=55 // pred_fallthru
          _
        %346 = sfence
        %p347 = scmp.lt.s32.totalorder %s25, 1
        %s348 = scalar_select %p347, %s25, 1
        %p349 = scmp.lt.s32.totalorder %s26, 0
        %s350 = scalar_select %p349, %s26, 0
        %s351 = smul.addr %s350, 16
        %s352 = smul.addr %s348, 16
        %s353 = sadd.s32 %s351, %s352
        %s354 = smul.addr %s353, 8
        %s355 = scalar_lea.vmem %s0, %s354
        %p356 = pneg %p56
        %p357 = pneg %p53
        %p358 = scmp.lt.s32.totalorder %s25, 1
        %s359 = scalar_select %p358, %s25, 1
        %s360 = smul.addr %s359, 16
        %s361 = smul.addr %s360, 8
        %s362 = scalar_lea.vmem %s1, %s361
        %p363 = pneg %p82
        %p364 = pneg %p79
        %p365 = scmp.lt.s32.totalorder %s25, 1
        %s366 = scalar_select %p365, %s25, 1
        %s367 = smul.addr %s366, 8
        %s368 = smul.addr %s367, 8
        %s369 = scalar_lea.vmem %s2, %s368
        %p370 = pneg %p108
        %p371 = pneg %p105
        %p372 = pneg %p129
        %p373 = pneg %p126
        %p374 = pneg %p150
        %p375 = pneg %p147
        %p376 = pneg %p171
        %p377 = pneg %p168
        %p378 = pneg %p192
        %p379 = pneg %p189
        %p380 = pneg %p213
        %p381 = pneg %p210
        %p382 = pneg %p234
        %p383 = pneg %p231
        %p384 = pneg %p262
        %p385 = pneg %p259
        %p386 = scmp.lt.s32.totalorder %s25, 1
        %s387 = scalar_select %p386, %s25, 1
        %p388 = scmp.lt.s32.totalorder %s26, 0
        %s389 = scalar_select %p388, %s26, 0
        %s390 = sadd.s32 %s389, %s387
        %s391 = smul.addr %s390, 4
        %s392 = scalar_lea.vmem %s9, %s391
        %p393 = scmp.lt.s32.totalorder %s25, 1
        %s394 = scalar_select %p393, %s25, 1
        %p395 = scmp.lt.s32.totalorder %s26, 0
        %s396 = scalar_select %p395, %s26, 0
        %s397 = smul.addr %s396, 16
        %s398 = smul.addr %s394, 16
        %s399 = sadd.s32 %s397, %s398
        %s400 = smul.addr %s399, 8
        %s401 = scalar_lea.vmem %s0, %s400
        %p402 = scmp.lt.s32.totalorder %s25, 1
        %s403 = scalar_select %p402, %s25, 1
        %s404 = smul.addr %s403, 16
        %s405 = smul.addr %s404, 8
        %s406 = scalar_lea.vmem %s1, %s405
        %p407 = scmp.lt.s32.totalorder %s25, 1
        %s408 = scalar_select %p407, %s25, 1
        %s409 = smul.addr %s408, 8
        %s410 = smul.addr %s409, 8
        %s411 = scalar_lea.vmem %s2, %s410
        %p412 = scmp.lt.s32.totalorder %s25, 1
        %s413 = scalar_select %p412, %s25, 1
        %p414 = scmp.lt.s32.totalorder %s26, 0
        %s415 = scalar_select %p414, %s26, 0
        %s416 = sadd.s32 %s415, %s413
        %s417 = smul.addr %s416, 4
        %s418 = scalar_lea.vmem %s9, %s417
        %v419 = vld [vmem:[%s401] sm:$0xff]
        %v420 = vld [vmem:[%s401 + $0x8] sm:$0xff]
        %v421 = vld [vmem:[%s401 + $0x10] sm:$0xff]
        %v422 = vld [vmem:[%s401 + $0x18] sm:$0xf]
        %v423 = vld [vmem:[%s4] sm:$0xff]
        %v424 = vld [vmem:[%s4 + $0x8] sm:$0xff]
        %v425 = vld [vmem:[%s4 + $0x10] sm:$0xff]
        %v426 = vld [vmem:[%s4 + $0x18] sm:$0xf]
        %s427 = scalar_lea.vmem %s401, 32
        %v428 = vld [vmem:[%s427] sm:$0xff]
        %v429 = vld [vmem:[%s427 + $0x8] sm:$0xff]
        %v430 = vld [vmem:[%s427 + $0x10] sm:$0xff]
        %v431 = vld [vmem:[%s427 + $0x18] sm:$0xf]
        %s432 = scalar_lea.vmem %s4, 32
        %v433 = vld [vmem:[%s432] sm:$0xff]
        %v434 = vld [vmem:[%s432 + $0x8] sm:$0xff]
        %v435 = vld [vmem:[%s432 + $0x10] sm:$0xff]
        %v436 = vld [vmem:[%s432 + $0x18] sm:$0xf]
        %vm437 = vcmask 228352
        %v439 = vsel %vm437, %v428, 0
        %v442 = vsel %vm437, %v429, 0
        %v445 = vsel %vm437, %v430, 0
        %v448 = vsel %vm437, %v431, 0
        %vm450 = vcmask 1043456
        %v452 = vsel %vm450, %v436, 0
        %454 = vmatprep.subr.mxu0 0.0
        %455 = vmatpush1.msra.mxu0 %v433
        %456 = vmatprep.subr.mxu0 0.0
        %457 = vmatpush1.msra.mxu0 %v434
        %458 = vmatprep.subr.mxu0 0.0
        %459 = vmatpush1.msra.mxu0 %v435
        %460 = vmatprep.subr.mxu0 0.0
        %461 = vmatpush1.msra.mxu0 %v452
        %462 = vmatprep.subr.mxu0 0.0
        %463 = vmatpush1.msra.mxu0 0.0
        %464 = vmatprep.subr.mxu0 0.0
        %465 = vmatpush1.msra.mxu0 0.0
        %466 = vmatprep.subr.mxu0 0.0
        %467 = vmatpush1.msra.mxu0 0.0
        %468 = vmatprep.subr.mxu0 0.0
        %469 = vmatpush1.msra.mxu0 0.0
        %470 = vmatprep.subr.mxu0 0.0
        %471 = vmatpush1.msra.mxu0 0.0
        %472 = vmatprep.subr.mxu0 0.0
        %473 = vmatpush1.msra.mxu0 0.0
        %474 = vmatprep.subr.mxu0 0.0
        %475 = vmatpush1.msra.mxu0 0.0
        %476 = vmatprep.subr.mxu0 0.0
        %477 = vmatpush1.msra.mxu0 0.0
        %478 = vmatprep.subr.mxu0 0.0
        %479 = vmatpush1.msra.mxu0 0.0
        %480 = vmatprep.subr.mxu0 0.0
        %481 = vmatpush1.msra.mxu0 0.0
        %482 = vmatprep.subr.mxu0 0.0
        %483 = vmatpush1.msra.mxu0 0.0
        %484 = vmatprep.subr.mxu0 0.0
        %485 = vmatpush1.msra.mxu0 0.0
        %486 = vmatprep.subr.mxu0 0.0
        %487 = vmatpush1.msra.mxu0 0.0
        %488 = vmatprep.subr.mxu0 0.0
        %489 = vmatpush1.msra.mxu0 0.0
        %490 = vmatprep.subr.mxu0 0.0
        %491 = vmatpush1.msra.mxu0 0.0
        %492 = vmatprep.subr.mxu0 0.0
        %493 = vmatpush1.msra.mxu0 0.0
        %494 = vmatprep.subr.mxu0 0.0
        %495 = vmatpush1.msra.mxu0 0.0
        %496 = vmatprep.subr.mxu0 0.0
        %497 = vmatpush1.msra.mxu0 0.0
        %498 = vmatprep.subr.mxu0 0.0
        %499 = vmatpush1.msra.mxu0 0.0
        %500 = vmatprep.subr.mxu0 0.0
        %501 = vmatpush1.msra.mxu0 0.0
        %502 = vmatprep.subr.mxu0 0.0
        %503 = vmatpush1.msra.mxu0 0.0
        %504 = vmatprep.subr.mxu0 0.0
        %505 = vmatpush1.msra.mxu0 0.0
        %506 = vmatprep.subr.mxu0 0.0
        %507 = vmatpush1.msra.mxu0 0.0
        %508 = vmatprep.subr.mxu0 0.0
        %509 = vmatpush1.msra.mxu0 0.0
        %510 = vmatprep.subr.mxu0 0.0
        %511 = vmatpush1.msra.mxu0 0.0
        %512 = vmatprep.subr.mxu0 0.0
        %513 = vmatpush1.msra.mxu0 0.0
        %514 = vmatprep.subr.mxu0 0.0
        %515 = vmatpush1.msra.mxu0 0.0
        %516 = vmatprep.subr.mxu0 0.0
        %517 = vmatpush1.msra.mxu0 0.0
        %518 = vmatprep.mubr.f32.mxu0 0.0
        %519 = vmatmul.mubr.f32.gmra.mrb[0].mxu0 %v439
        %v520 = vpop.f32.mrb[0].mxu0
        %v521 = vadd.f32 0.0, %v520
        %v522 = vpop.f32.mrb[0].mxu0
        %523 = vmatprep.mubr.f32.mxu0 0.0
        %524 = vmatmul.mubr.f32.gmra.mrb[0].mxu0 %v442
        %v525 = vpop.f32.mrb[0].mxu0
        %v526 = vadd.f32 0.0, %v525
        %v527 = vpop.f32.mrb[0].mxu0
        %528 = vmatprep.mubr.f32.mxu0 0.0
        %529 = vmatmul.mubr.f32.gmra.mrb[0].mxu0 %v445
        %v530 = vpop.f32.mrb[0].mxu0
        %v531 = vadd.f32 0.0, %v530
        %v532 = vpop.f32.mrb[0].mxu0
        %533 = vmatprep.mubr.f32.mxu0 0.0
        %534 = vmatmul.mubr.f32.gmra.mrb[0].mxu0 %v448
        %v535 = vpop.f32.mrb[0].mxu0
        %v536 = vadd.f32 0.0, %v535
        %v537 = vpop.f32.mrb[0].mxu0
        %538 = vdwg.mxu0
        %v540 = vsel %vm437, %v419, 0
        %v543 = vsel %vm437, %v420, 0
        %v546 = vsel %vm437, %v421, 0
        %v549 = vsel %vm437, %v422, 0
        %v552 = vsel %vm450, %v426, 0
        %554 = vmatprep.subr.mxu0 0.0
        %555 = vmatpush1.msra.mxu0 %v423
        %556 = vmatprep.subr.mxu0 0.0
        %557 = vmatpush1.msra.mxu0 %v424
        %558 = vmatprep.subr.mxu0 0.0
        %559 = vmatpush1.msra.mxu0 %v425
        %560 = vmatprep.subr.mxu0 0.0
        %561 = vmatpush1.msra.mxu0 %v552
        %562 = vmatprep.subr.mxu0 0.0
        %563 = vmatpush1.msra.mxu0 0.0
        %564 = vmatprep.subr.mxu0 0.0
        %565 = vmatpush1.msra.mxu0 0.0
        %566 = vmatprep.subr.mxu0 0.0
        %567 = vmatpush1.msra.mxu0 0.0
        %568 = vmatprep.subr.mxu0 0.0
        %569 = vmatpush1.msra.mxu0 0.0
        %570 = vmatprep.subr.mxu0 0.0
        %571 = vmatpush1.msra.mxu0 0.0
        %572 = vmatprep.subr.mxu0 0.0
        %573 = vmatpush1.msra.mxu0 0.0
        %574 = vmatprep.subr.mxu0 0.0
        %575 = vmatpush1.msra.mxu0 0.0
        %576 = vmatprep.subr.mxu0 0.0
        %577 = vmatpush1.msra.mxu0 0.0
        %578 = vmatprep.subr.mxu0 0.0
        %579 = vmatpush1.msra.mxu0 0.0
        %580 = vmatprep.subr.mxu0 0.0
        %581 = vmatpush1.msra.mxu0 0.0
        %582 = vmatprep.subr.mxu0 0.0
        %583 = vmatpush1.msra.mxu0 0.0
        %584 = vmatprep.subr.mxu0 0.0
        %585 = vmatpush1.msra.mxu0 0.0
        %586 = vmatprep.subr.mxu0 0.0
        %587 = vmatpush1.msra.mxu0 0.0
        %588 = vmatprep.subr.mxu0 0.0
        %589 = vmatpush1.msra.mxu0 0.0
        %590 = vmatprep.subr.mxu0 0.0
        %591 = vmatpush1.msra.mxu0 0.0
        %592 = vmatprep.subr.mxu0 0.0
        %593 = vmatpush1.msra.mxu0 0.0
        %594 = vmatprep.subr.mxu0 0.0
        %595 = vmatpush1.msra.mxu0 0.0
        %596 = vmatprep.subr.mxu0 0.0
        %597 = vmatpush1.msra.mxu0 0.0
        %598 = vmatprep.subr.mxu0 0.0
        %599 = vmatpush1.msra.mxu0 0.0
        %600 = vmatprep.subr.mxu0 0.0
        %601 = vmatpush1.msra.mxu0 0.0
        %602 = vmatprep.subr.mxu0 0.0
        %603 = vmatpush1.msra.mxu0 0.0
        %604 = vmatprep.subr.mxu0 0.0
        %605 = vmatpush1.msra.mxu0 0.0
        %606 = vmatprep.subr.mxu0 0.0
        %607 = vmatpush1.msra.mxu0 0.0
        %608 = vmatprep.subr.mxu0 0.0
        %609 = vmatpush1.msra.mxu0 0.0
        %610 = vmatprep.subr.mxu0 0.0
        %611 = vmatpush1.msra.mxu0 0.0
        %612 = vmatprep.subr.mxu0 0.0
        %613 = vmatpush1.msra.mxu0 0.0
        %614 = vmatprep.subr.mxu0 0.0
        %615 = vmatpush1.msra.mxu0 0.0
        %616 = vmatprep.subr.mxu0 0.0
        %617 = vmatpush1.msra.mxu0 0.0
        %618 = vmatprep.mubr.f32.mxu0 0.0
        %619 = vmatmul.mubr.f32.gmra.mrb[0].mxu0 %v540
        %v620 = vpop.f32.mrb[0].mxu0
        %v621 = vadd.f32 %v521, %v620
        %v622 = vpop.f32.mrb[0].mxu0
        %623 = vmatprep.mubr.f32.mxu0 0.0
        %624 = vmatmul.mubr.f32.gmra.mrb[0].mxu0 %v543
        %v625 = vpop.f32.mrb[0].mxu0
        %v626 = vadd.f32 %v526, %v625
        %v627 = vpop.f32.mrb[0].mxu0
        %628 = vmatprep.mubr.f32.mxu0 0.0
        %629 = vmatmul.mubr.f32.gmra.mrb[0].mxu0 %v546
        %v630 = vpop.f32.mrb[0].mxu0
        %v631 = vadd.f32 %v531, %v630
        %v632 = vpop.f32.mrb[0].mxu0
        %633 = vmatprep.mubr.f32.mxu0 0.0
        %634 = vmatmul.mubr.f32.gmra.mrb[0].mxu0 %v549
        %v635 = vpop.f32.mrb[0].mxu0
        %v636 = vadd.f32 %v536, %v635
        %v637 = vpop.f32.mrb[0].mxu0
        %638 = vdwg.mxu0
        %s639 = scalar_lea.vmem %s401, 64
        %v640 = vld [vmem:[%s639] sm:$0xff]
        %v641 = vld [vmem:[%s639 + $0x8] sm:$0xff]
        %v642 = vld [vmem:[%s639 + $0x10] sm:$0xff]
        %v643 = vld [vmem:[%s639 + $0x18] sm:$0xf]
        %s644 = scalar_lea.vmem %s4, 64
        %v645 = vld [vmem:[%s644] sm:$0xff]
        %v646 = vld [vmem:[%s644 + $0x8] sm:$0xff]
        %v647 = vld [vmem:[%s644 + $0x10] sm:$0xff]
        %v648 = vld [vmem:[%s644 + $0x18] sm:$0xf]
        %v650 = vsel %vm437, %v640, 0
        %v653 = vsel %vm437, %v641, 0
        %v656 = vsel %vm437, %v642, 0
        %v659 = vsel %vm437, %v643, 0
        %v662 = vsel %vm450, %v648, 0
        %664 = vmatprep.subr.mxu0 0.0
        %665 = vmatpush1.msra.mxu0 %v645
        %666 = vmatprep.subr.mxu0 0.0
        %667 = vmatpush1.msra.mxu0 %v646
        %668 = vmatprep.subr.mxu0 0.0
        %669 = vmatpush1.msra.mxu0 %v647
        %670 = vmatprep.subr.mxu0 0.0
        %671 = vmatpush1.msra.mxu0 %v662
        %672 = vmatprep.subr.mxu0 0.0
        %673 = vmatpush1.msra.mxu0 0.0
        %674 = vmatprep.subr.mxu0 0.0
        %675 = vmatpush1.msra.mxu0 0.0
        %676 = vmatprep.subr.mxu0 0.0
        %677 = vmatpush1.msra.mxu0 0.0
        %678 = vmatprep.subr.mxu0 0.0
        %679 = vmatpush1.msra.mxu0 0.0
        %680 = vmatprep.subr.mxu0 0.0
        %681 = vmatpush1.msra.mxu0 0.0
        %682 = vmatprep.subr.mxu0 0.0
        %683 = vmatpush1.msra.mxu0 0.0
        %684 = vmatprep.subr.mxu0 0.0
        %685 = vmatpush1.msra.mxu0 0.0
        %686 = vmatprep.subr.mxu0 0.0
        %687 = vmatpush1.msra.mxu0 0.0
        %688 = vmatprep.subr.mxu0 0.0
        %689 = vmatpush1.msra.mxu0 0.0
        %690 = vmatprep.subr.mxu0 0.0
        %691 = vmatpush1.msra.mxu0 0.0
        %692 = vmatprep.subr.mxu0 0.0
        %693 = vmatpush1.msra.mxu0 0.0
        %694 = vmatprep.subr.mxu0 0.0
        %695 = vmatpush1.msra.mxu0 0.0
        %696 = vmatprep.subr.mxu0 0.0
        %697 = vmatpush1.msra.mxu0 0.0
        %698 = vmatprep.subr.mxu0 0.0
        %699 = vmatpush1.msra.mxu0 0.0
        %700 = vmatprep.subr.mxu0 0.0
        %701 = vmatpush1.msra.mxu0 0.0
        %702 = vmatprep.subr.mxu0 0.0
        %703 = vmatpush1.msra.mxu0 0.0
        %704 = vmatprep.subr.mxu0 0.0
        %705 = vmatpush1.msra.mxu0 0.0
        %706 = vmatprep.subr.mxu0 0.0
        %707 = vmatpush1.msra.mxu0 0.0
        %708 = vmatprep.subr.mxu0 0.0
        %709 = vmatpush1.msra.mxu0 0.0
        %710 = vmatprep.subr.mxu0 0.0
        %711 = vmatpush1.msra.mxu0 0.0
        %712 = vmatprep.subr.mxu0 0.0
        %713 = vmatpush1.msra.mxu0 0.0
        %714 = vmatprep.subr.mxu0 0.0
        %715 = vmatpush1.msra.mxu0 0.0
        %716 = vmatprep.subr.mxu0 0.0
        %717 = vmatpush1.msra.mxu0 0.0
        %718 = vmatprep.subr.mxu0 0.0
        %719 = vmatpush1.msra.mxu0 0.0
        %720 = vmatprep.subr.mxu0 0.0
        %721 = vmatpush1.msra.mxu0 0.0
        %722 = vmatprep.subr.mxu0 0.0
        %723 = vmatpush1.msra.mxu0 0.0
        %724 = vmatprep.subr.mxu0 0.0
        %725 = vmatpush1.msra.mxu0 0.0
        %726 = vmatprep.subr.mxu0 0.0
        %727 = vmatpush1.msra.mxu0 0.0
        %728 = vmatprep.mubr.f32.mxu0 0.0
        %729 = vmatmul.mubr.f32.gmra.mrb[0].mxu0 %v650
        %v730 = vpop.f32.mrb[0].mxu0
        %v731 = vadd.f32 0.0, %v730
        %v732 = vpop.f32.mrb[0].mxu0
        %733 = vmatprep.mubr.f32.mxu0 0.0
        %734 = vmatmul.mubr.f32.gmra.mrb[0].mxu0 %v653
        %v735 = vpop.f32.mrb[0].mxu0
        %v736 = vadd.f32 0.0, %v735
        %v737 = vpop.f32.mrb[0].mxu0
        %738 = vmatprep.mubr.f32.mxu0 0.0
        %739 = vmatmul.mubr.f32.gmra.mrb[0].mxu0 %v656
        %v740 = vpop.f32.mrb[0].mxu0
        %v741 = vadd.f32 0.0, %v740
        %v742 = vpop.f32.mrb[0].mxu0
        %743 = vmatprep.mubr.f32.mxu0 0.0
        %744 = vmatmul.mubr.f32.gmra.mrb[0].mxu0 %v659
        %v745 = vpop.f32.mrb[0].mxu0
        %v746 = vadd.f32 0.0, %v745
        %v747 = vpop.f32.mrb[0].mxu0
        %748 = vdwg.mxu0
        %v749 = vadd.f32 %v621, %v731
        %v750 = vadd.f32 %v626, %v736
        %v751 = vadd.f32 %v631, %v741
        %v752 = vadd.f32 %v636, %v746
        %s753 = scalar_lea.vmem %s401, 96
        %v754 = vld [vmem:[%s753] sm:$0xff]
        %v755 = vld [vmem:[%s753 + $0x8] sm:$0xff]
        %v756 = vld [vmem:[%s753 + $0x10] sm:$0xff]
        %v757 = vld [vmem:[%s753 + $0x18] sm:$0xf]
        %s758 = scalar_lea.vmem %s4, 96
        %v759 = vld [vmem:[%s758] sm:$0xff]
        %v760 = vld [vmem:[%s758 + $0x8] sm:$0xff]
        %v761 = vld [vmem:[%s758 + $0x10] sm:$0xff]
        %v762 = vld [vmem:[%s758 + $0x18] sm:$0xf]
        %v764 = vsel %vm437, %v754, 0
        %v767 = vsel %vm437, %v755, 0
        %v770 = vsel %vm437, %v756, 0
        %v773 = vsel %vm437, %v757, 0
        %v776 = vsel %vm450, %v762, 0
        %778 = vmatprep.subr.mxu0 0.0
        %779 = vmatpush1.msra.mxu0 %v759
        %780 = vmatprep.subr.mxu0 0.0
        %781 = vmatpush1.msra.mxu0 %v760
        %782 = vmatprep.subr.mxu0 0.0
        %783 = vmatpush1.msra.mxu0 %v761
        %784 = vmatprep.subr.mxu0 0.0
        %785 = vmatpush1.msra.mxu0 %v776
        %786 = vmatprep.subr.mxu0 0.0
        %787 = vmatpush1.msra.mxu0 0.0
        %788 = vmatprep.subr.mxu0 0.0
        %789 = vmatpush1.msra.mxu0 0.0
        %790 = vmatprep.subr.mxu0 0.0
        %791 = vmatpush1.msra.mxu0 0.0
        %792 = vmatprep.subr.mxu0 0.0
        %793 = vmatpush1.msra.mxu0 0.0
        %794 = vmatprep.subr.mxu0 0.0
        %795 = vmatpush1.msra.mxu0 0.0
        %796 = vmatprep.subr.mxu0 0.0
        %797 = vmatpush1.msra.mxu0 0.0
        %798 = vmatprep.subr.mxu0 0.0
        %799 = vmatpush1.msra.mxu0 0.0
        %800 = vmatprep.subr.mxu0 0.0
        %801 = vmatpush1.msra.mxu0 0.0
        %802 = vmatprep.subr.mxu0 0.0
        %803 = vmatpush1.msra.mxu0 0.0
        %804 = vmatprep.subr.mxu0 0.0
        %805 = vmatpush1.msra.mxu0 0.0
        %806 = vmatprep.subr.mxu0 0.0
        %807 = vmatpush1.msra.mxu0 0.0
        %808 = vmatprep.subr.mxu0 0.0
        %809 = vmatpush1.msra.mxu0 0.0
        %810 = vmatprep.subr.mxu0 0.0
        %811 = vmatpush1.msra.mxu0 0.0
        %812 = vmatprep.subr.mxu0 0.0
        %813 = vmatpush1.msra.mxu0 0.0
        %814 = vmatprep.subr.mxu0 0.0
        %815 = vmatpush1.msra.mxu0 0.0
        %816 = vmatprep.subr.mxu0 0.0
        %817 = vmatpush1.msra.mxu0 0.0
        %818 = vmatprep.subr.mxu0 0.0
        %819 = vmatpush1.msra.mxu0 0.0
        %820 = vmatprep.subr.mxu0 0.0
        %821 = vmatpush1.msra.mxu0 0.0
        %822 = vmatprep.subr.mxu0 0.0
        %823 = vmatpush1.msra.mxu0 0.0
        %824 = vmatprep.subr.mxu0 0.0
        %825 = vmatpush1.msra.mxu0 0.0
        %826 = vmatprep.subr.mxu0 0.0
        %827 = vmatpush1.msra.mxu0 0.0
        %828 = vmatprep.subr.mxu0 0.0
        %829 = vmatpush1.msra.mxu0 0.0
        %830 = vmatprep.subr.mxu0 0.0
        %831 = vmatpush1.msra.mxu0 0.0
        %832 = vmatprep.subr.mxu0 0.0
        %833 = vmatpush1.msra.mxu0 0.0
        %834 = vmatprep.subr.mxu0 0.0
        %835 = vmatpush1.msra.mxu0 0.0
        %836 = vmatprep.subr.mxu0 0.0
        %837 = vmatpush1.msra.mxu0 0.0
        %838 = vmatprep.subr.mxu0 0.0
        %839 = vmatpush1.msra.mxu0 0.0
        %840 = vmatprep.subr.mxu0 0.0
        %841 = vmatpush1.msra.mxu0 0.0
        %842 = vmatprep.mubr.f32.mxu0 0.0
        %843 = vmatmul.mubr.f32.gmra.mrb[0].mxu0 %v764
        %v844 = vpop.f32.mrb[0].mxu0
        %v845 = vadd.f32 0.0, %v844
        %v846 = vpop.f32.mrb[0].mxu0
        %847 = vmatprep.mubr.f32.mxu0 0.0
        %848 = vmatmul.mubr.f32.gmra.mrb[0].mxu0 %v767
        %v849 = vpop.f32.mrb[0].mxu0
        %v850 = vadd.f32 0.0, %v849
        %v851 = vpop.f32.mrb[0].mxu0
        %852 = vmatprep.mubr.f32.mxu0 0.0
        %853 = vmatmul.mubr.f32.gmra.mrb[0].mxu0 %v770
        %v854 = vpop.f32.mrb[0].mxu0
        %v855 = vadd.f32 0.0, %v854
        %v856 = vpop.f32.mrb[0].mxu0
        %857 = vmatprep.mubr.f32.mxu0 0.0
        %858 = vmatmul.mubr.f32.gmra.mrb[0].mxu0 %v773
        %v859 = vpop.f32.mrb[0].mxu0
        %v860 = vadd.f32 0.0, %v859
        %v861 = vpop.f32.mrb[0].mxu0
        %862 = vdwg.mxu0
        %v863 = vadd.f32 %v749, %v845
        %v864 = vadd.f32 %v750, %v850
        %v865 = vadd.f32 %v751, %v855
        %v866 = vadd.f32 %v752, %v860
        %s867 = smul.u32 %s25, 128
        %s868 = sld [smem:[#allocation2 + %s867]]
        %v869 = vld [vmem:[%s406] sm:$0xff]
        %v870 = vld [vmem:[%s406 + $0x8] sm:$0xff]
        %v871 = vld [vmem:[%s406 + $0x10] sm:$0xff]
        %v872 = vld [vmem:[%s406 + $0x18] sm:$0x1f]
        %s873 = scalar_lea.vmem %s406, 32
        %v874 = vld [vmem:[%s873] sm:$0xff]
        %v875 = vld [vmem:[%s873 + $0x8] sm:$0xff]
        %v876 = vld [vmem:[%s873 + $0x10] sm:$0xff]
        %v877 = vld [vmem:[%s873 + $0x18] sm:$0x1f]
        %v879 = vsel %vm437, %v874, 0
        %v882 = vsel %vm437, %v875, 0
        %v885 = vsel %vm437, %v876, 0
        %v888 = vsel %vm437, %v877, 0
        %v891 = vsel %vm450, %v866, 0
        %893 = vmatprep.subr.mxu0 0.0
        %894 = vmatpush1.msra.mxu0 %v863
        %895 = vmatprep.subr.mxu0 0.0
        %896 = vmatpush1.msra.mxu0 %v864
        %897 = vmatprep.subr.mxu0 0.0
        %898 = vmatpush1.msra.mxu0 %v865
        %899 = vmatprep.subr.mxu0 0.0
        %900 = vmatpush1.msra.mxu0 %v891
        %901 = vmatprep.subr.mxu0 0.0
        %902 = vmatpush1.msra.mxu0 0.0
        %903 = vmatprep.subr.mxu0 0.0
        %904 = vmatpush1.msra.mxu0 0.0
        %905 = vmatprep.subr.mxu0 0.0
        %906 = vmatpush1.msra.mxu0 0.0
        %907 = vmatprep.subr.mxu0 0.0
        %908 = vmatpush1.msra.mxu0 0.0
        %909 = vmatprep.subr.mxu0 0.0
        %910 = vmatpush1.msra.mxu0 0.0
        %911 = vmatprep.subr.mxu0 0.0
        %912 = vmatpush1.msra.mxu0 0.0
        %913 = vmatprep.subr.mxu0 0.0
        %914 = vmatpush1.msra.mxu0 0.0
        %915 = vmatprep.subr.mxu0 0.0
        %916 = vmatpush1.msra.mxu0 0.0
        %917 = vmatprep.subr.mxu0 0.0
        %918 = vmatpush1.msra.mxu0 0.0
        %919 = vmatprep.subr.mxu0 0.0
        %920 = vmatpush1.msra.mxu0 0.0
        %921 = vmatprep.subr.mxu0 0.0
        %922 = vmatpush1.msra.mxu0 0.0
        %923 = vmatprep.subr.mxu0 0.0
        %924 = vmatpush1.msra.mxu0 0.0
        %925 = vmatprep.subr.mxu0 0.0
        %926 = vmatpush1.msra.mxu0 0.0
        %927 = vmatprep.subr.mxu0 0.0
        %928 = vmatpush1.msra.mxu0 0.0
        %929 = vmatprep.subr.mxu0 0.0
        %930 = vmatpush1.msra.mxu0 0.0
        %931 = vmatprep.subr.mxu0 0.0
        %932 = vmatpush1.msra.mxu0 0.0
        %933 = vmatprep.subr.mxu0 0.0
        %934 = vmatpush1.msra.mxu0 0.0
        %935 = vmatprep.subr.mxu0 0.0
        %936 = vmatpush1.msra.mxu0 0.0
        %937 = vmatprep.subr.mxu0 0.0
        %938 = vmatpush1.msra.mxu0 0.0
        %939 = vmatprep.subr.mxu0 0.0
        %940 = vmatpush1.msra.mxu0 0.0
        %941 = vmatprep.subr.mxu0 0.0
        %942 = vmatpush1.msra.mxu0 0.0
        %943 = vmatprep.subr.mxu0 0.0
        %944 = vmatpush1.msra.mxu0 0.0
        %945 = vmatprep.subr.mxu0 0.0
        %946 = vmatpush1.msra.mxu0 0.0
        %947 = vmatprep.subr.mxu0 0.0
        %948 = vmatpush1.msra.mxu0 0.0
        %949 = vmatprep.subr.mxu0 0.0
        %950 = vmatpush1.msra.mxu0 0.0
        %951 = vmatprep.subr.mxu0 0.0
        %952 = vmatpush1.msra.mxu0 0.0
        %953 = vmatprep.subr.mxu0 0.0
        %954 = vmatpush1.msra.mxu0 0.0
        %955 = vmatprep.subr.mxu0 0.0
        %956 = vmatpush1.msra.mxu0 0.0
        %957 = vmatprep.mubr.f32.mxu0 0.0
        %958 = vmatmul.mubr.f32.gmra.mrb[0].mxu0 %v879
        %v959 = vpop.f32.mrb[0].mxu0
        %v960 = vadd.f32 0.0, %v959
        %v961 = vpop.f32.mrb[0].mxu0
        %962 = vmatprep.mubr.f32.mxu0 0.0
        %963 = vmatmul.mubr.f32.gmra.mrb[0].mxu0 %v882
        %v964 = vpop.f32.mrb[0].mxu0
        %v965 = vadd.f32 0.0, %v964
        %v966 = vpop.f32.mrb[0].mxu0
        %967 = vmatprep.mubr.f32.mxu0 0.0
        %968 = vmatmul.mubr.f32.gmra.mrb[0].mxu0 %v885
        %v969 = vpop.f32.mrb[0].mxu0
        %v970 = vadd.f32 0.0, %v969
        %v971 = vpop.f32.mrb[0].mxu0
        %972 = vmatprep.mubr.f32.mxu0 0.0
        %973 = vmatmul.mubr.f32.gmra.mrb[0].mxu0 %v888
        %v974 = vpop.f32.mrb[0].mxu0
        %v975 = vadd.f32 0.0, %v974
        %v976 = vpop.f32.mrb[0].mxu0
        %977 = vdwg.mxu0
        %978 = vrot.lane.b32.xlu0 %v960, 127
        %v979 = vpop.permute.xlu0 %978
        %980 = vrot.lane.b32.xlu0 %v965, 127
        %v981 = vpop.permute.xlu0 %980
        %982 = vrot.lane.b32.xlu0 %v970, 127
        %v983 = vpop.permute.xlu0 %982
        %984 = vrot.lane.b32.xlu0 %v975, 127
        %v985 = vpop.permute.xlu0 %984
        %v987 = vsel %vm437, %v869, 0
        %v990 = vsel %vm437, %v870, 0
        %v993 = vsel %vm437, %v871, 0
        %v996 = vsel %vm437, %v872, 0
        %998 = vmatprep.subr.mxu0 0.0
        %999 = vmatpush1.msra.mxu0 %v863
        %1000 = vmatprep.subr.mxu0 0.0
        %1001 = vmatpush1.msra.mxu0 %v864
        %1002 = vmatprep.subr.mxu0 0.0
        %1003 = vmatpush1.msra.mxu0 %v865
        %1004 = vmatprep.subr.mxu0 0.0
        %1005 = vmatpush1.msra.mxu0 %v891
        %1006 = vmatprep.subr.mxu0 0.0
        %1007 = vmatpush1.msra.mxu0 0.0
        %1008 = vmatprep.subr.mxu0 0.0
        %1009 = vmatpush1.msra.mxu0 0.0
        %1010 = vmatprep.subr.mxu0 0.0
        %1011 = vmatpush1.msra.mxu0 0.0
        %1012 = vmatprep.subr.mxu0 0.0
        %1013 = vmatpush1.msra.mxu0 0.0
        %1014 = vmatprep.subr.mxu0 0.0
        %1015 = vmatpush1.msra.mxu0 0.0
        %1016 = vmatprep.subr.mxu0 0.0
        %1017 = vmatpush1.msra.mxu0 0.0
        %1018 = vmatprep.subr.mxu0 0.0
        %1019 = vmatpush1.msra.mxu0 0.0
        %1020 = vmatprep.subr.mxu0 0.0
        %1021 = vmatpush1.msra.mxu0 0.0
        %1022 = vmatprep.subr.mxu0 0.0
        %1023 = vmatpush1.msra.mxu0 0.0
        %1024 = vmatprep.subr.mxu0 0.0
        %1025 = vmatpush1.msra.mxu0 0.0
        %1026 = vmatprep.subr.mxu0 0.0
        %1027 = vmatpush1.msra.mxu0 0.0
        %1028 = vmatprep.subr.mxu0 0.0
        %1029 = vmatpush1.msra.mxu0 0.0
        %1030 = vmatprep.subr.mxu0 0.0
        %1031 = vmatpush1.msra.mxu0 0.0
        %1032 = vmatprep.subr.mxu0 0.0
        %1033 = vmatpush1.msra.mxu0 0.0
        %1034 = vmatprep.subr.mxu0 0.0
        %1035 = vmatpush1.msra.mxu0 0.0
        %1036 = vmatprep.subr.mxu0 0.0
        %1037 = vmatpush1.msra.mxu0 0.0
        %1038 = vmatprep.subr.mxu0 0.0
        %1039 = vmatpush1.msra.mxu0 0.0
        %1040 = vmatprep.subr.mxu0 0.0
        %1041 = vmatpush1.msra.mxu0 0.0
        %1042 = vmatprep.subr.mxu0 0.0
        %1043 = vmatpush1.msra.mxu0 0.0
        %1044 = vmatprep.subr.mxu0 0.0
        %1045 = vmatpush1.msra.mxu0 0.0
        %1046 = vmatprep.subr.mxu0 0.0
        %1047 = vmatpush1.msra.mxu0 0.0
        %1048 = vmatprep.subr.mxu0 0.0
        %1049 = vmatpush1.msra.mxu0 0.0
        %1050 = vmatprep.subr.mxu0 0.0
        %1051 = vmatpush1.msra.mxu0 0.0
        %1052 = vmatprep.subr.mxu0 0.0
        %1053 = vmatpush1.msra.mxu0 0.0
        %1054 = vmatprep.subr.mxu0 0.0
        %1055 = vmatpush1.msra.mxu0 0.0
        %1056 = vmatprep.subr.mxu0 0.0
        %1057 = vmatpush1.msra.mxu0 0.0
        %1058 = vmatprep.subr.mxu0 0.0
        %1059 = vmatpush1.msra.mxu0 0.0
        %1060 = vmatprep.subr.mxu0 0.0
        %1061 = vmatpush1.msra.mxu0 0.0
        %1062 = vmatprep.mubr.f32.mxu0 0.0
        %1063 = vmatmul.mubr.f32.gmra.mrb[0].mxu0 %v987
        %v1064 = vpop.f32.mrb[0].mxu0
        %v1065 = vadd.f32 %v979, %v1064
        %v1066 = vpop.f32.mrb[0].mxu0
        %1067 = vmatprep.mubr.f32.mxu0 0.0
        %1068 = vmatmul.mubr.f32.gmra.mrb[0].mxu0 %v990
        %v1069 = vpop.f32.mrb[0].mxu0
        %v1070 = vadd.f32 %v981, %v1069
        %v1071 = vpop.f32.mrb[0].mxu0
        %1072 = vmatprep.mubr.f32.mxu0 0.0
        %1073 = vmatmul.mubr.f32.gmra.mrb[0].mxu0 %v993
        %v1074 = vpop.f32.mrb[0].mxu0
        %v1075 = vadd.f32 %v983, %v1074
        %v1076 = vpop.f32.mrb[0].mxu0
        %1077 = vmatprep.mubr.f32.mxu0 0.0
        %1078 = vmatmul.mubr.f32.gmra.mrb[0].mxu0 %v996
        %v1079 = vpop.f32.mrb[0].mxu0
        %v1080 = vadd.f32 %v985, %v1079
        %v1081 = vpop.f32.mrb[0].mxu0
        %1082 = vdwg.mxu0
        %s1083 = scalar_lea.vmem %s406, 64
        %v1084 = vld [vmem:[%s1083] sm:$0xff]
        %v1085 = vld [vmem:[%s1083 + $0x8] sm:$0xff]
        %v1086 = vld [vmem:[%s1083 + $0x10] sm:$0xff]
        %v1087 = vld [vmem:[%s1083 + $0x18] sm:$0x1f]
        %v1089 = vsel %vm437, %v1084, 0
        %v1092 = vsel %vm437, %v1085, 0
        %v1095 = vsel %vm437, %v1086, 0
        %v1098 = vsel %vm437, %v1087, 0
        %1100 = vmatprep.subr.mxu0 0.0
        %1101 = vmatpush1.msra.mxu0 %v863
        %1102 = vmatprep.subr.mxu0 0.0
        %1103 = vmatpush1.msra.mxu0 %v864
        %1104 = vmatprep.subr.mxu0 0.0
        %1105 = vmatpush1.msra.mxu0 %v865
        %1106 = vmatprep.subr.mxu0 0.0
        %1107 = vmatpush1.msra.mxu0 %v891
        %1108 = vmatprep.subr.mxu0 0.0
        %1109 = vmatpush1.msra.mxu0 0.0
        %1110 = vmatprep.subr.mxu0 0.0
        %1111 = vmatpush1.msra.mxu0 0.0
        %1112 = vmatprep.subr.mxu0 0.0
        %1113 = vmatpush1.msra.mxu0 0.0
        %1114 = vmatprep.subr.mxu0 0.0
        %1115 = vmatpush1.msra.mxu0 0.0
        %1116 = vmatprep.subr.mxu0 0.0
        %1117 = vmatpush1.msra.mxu0 0.0
        %1118 = vmatprep.subr.mxu0 0.0
        %1119 = vmatpush1.msra.mxu0 0.0
        %1120 = vmatprep.subr.mxu0 0.0
        %1121 = vmatpush1.msra.mxu0 0.0
        %1122 = vmatprep.subr.mxu0 0.0
        %1123 = vmatpush1.msra.mxu0 0.0
        %1124 = vmatprep.subr.mxu0 0.0
        %1125 = vmatpush1.msra.mxu0 0.0
        %1126 = vmatprep.subr.mxu0 0.0
        %1127 = vmatpush1.msra.mxu0 0.0
        %1128 = vmatprep.subr.mxu0 0.0
        %1129 = vmatpush1.msra.mxu0 0.0
        %1130 = vmatprep.subr.mxu0 0.0
        %1131 = vmatpush1.msra.mxu0 0.0
        %1132 = vmatprep.subr.mxu0 0.0
        %1133 = vmatpush1.msra.mxu0 0.0
        %1134 = vmatprep.subr.mxu0 0.0
        %1135 = vmatpush1.msra.mxu0 0.0
        %1136 = vmatprep.subr.mxu0 0.0
        %1137 = vmatpush1.msra.mxu0 0.0
        %1138 = vmatprep.subr.mxu0 0.0
        %1139 = vmatpush1.msra.mxu0 0.0
        %1140 = vmatprep.subr.mxu0 0.0
        %1141 = vmatpush1.msra.mxu0 0.0
        %1142 = vmatprep.subr.mxu0 0.0
        %1143 = vmatpush1.msra.mxu0 0.0
        %1144 = vmatprep.subr.mxu0 0.0
        %1145 = vmatpush1.msra.mxu0 0.0
        %1146 = vmatprep.subr.mxu0 0.0
        %1147 = vmatpush1.msra.mxu0 0.0
        %1148 = vmatprep.subr.mxu0 0.0
        %1149 = vmatpush1.msra.mxu0 0.0
        %1150 = vmatprep.subr.mxu0 0.0
        %1151 = vmatpush1.msra.mxu0 0.0
        %1152 = vmatprep.subr.mxu0 0.0
        %1153 = vmatpush1.msra.mxu0 0.0
        %1154 = vmatprep.subr.mxu0 0.0
        %1155 = vmatpush1.msra.mxu0 0.0
        %1156 = vmatprep.subr.mxu0 0.0
        %1157 = vmatpush1.msra.mxu0 0.0
        %1158 = vmatprep.subr.mxu0 0.0
        %1159 = vmatpush1.msra.mxu0 0.0
        %1160 = vmatprep.subr.mxu0 0.0
        %1161 = vmatpush1.msra.mxu0 0.0
        %1162 = vmatprep.subr.mxu0 0.0
        %1163 = vmatpush1.msra.mxu0 0.0
        %1164 = vmatprep.mubr.f32.mxu0 0.0
        %1165 = vmatmul.mubr.f32.gmra.mrb[0].mxu0 %v1089
        %v1166 = vpop.f32.mrb[0].mxu0
        %v1167 = vadd.f32 0.0, %v1166
        %v1168 = vpop.f32.mrb[0].mxu0
        %1169 = vmatprep.mubr.f32.mxu0 0.0
        %1170 = vmatmul.mubr.f32.gmra.mrb[0].mxu0 %v1092
        %v1171 = vpop.f32.mrb[0].mxu0
        %v1172 = vadd.f32 0.0, %v1171
        %v1173 = vpop.f32.mrb[0].mxu0
        %1174 = vmatprep.mubr.f32.mxu0 0.0
        %1175 = vmatmul.mubr.f32.gmra.mrb[0].mxu0 %v1095
        %v1176 = vpop.f32.mrb[0].mxu0
        %v1177 = vadd.f32 0.0, %v1176
        %v1178 = vpop.f32.mrb[0].mxu0
        %1179 = vmatprep.mubr.f32.mxu0 0.0
        %1180 = vmatmul.mubr.f32.gmra.mrb[0].mxu0 %v1098
        %v1181 = vpop.f32.mrb[0].mxu0
        %v1182 = vadd.f32 0.0, %v1181
        %v1183 = vpop.f32.mrb[0].mxu0
        %1184 = vdwg.mxu0
        %1185 = vrot.lane.b32.xlu0 %v1167, 126
        %v1186 = vpop.permute.xlu0 %1185
        %1187 = vrot.lane.b32.xlu0 %v1172, 126
        %v1188 = vpop.permute.xlu0 %1187
        %1189 = vrot.lane.b32.xlu0 %v1177, 126
        %v1190 = vpop.permute.xlu0 %1189
        %1191 = vrot.lane.b32.xlu0 %v1182, 126
        %v1192 = vpop.permute.xlu0 %1191
        %v1193 = vadd.f32 %v1065, %v1186
        %v1194 = vadd.f32 %v1070, %v1188
        %v1195 = vadd.f32 %v1075, %v1190
        %v1196 = vadd.f32 %v1080, %v1192
        %s1197 = scalar_lea.vmem %s406, 96
        %v1198 = vld [vmem:[%s1197] sm:$0xff]
        %v1199 = vld [vmem:[%s1197 + $0x8] sm:$0xff]
        %v1200 = vld [vmem:[%s1197 + $0x10] sm:$0xff]
        %v1201 = vld [vmem:[%s1197 + $0x18] sm:$0x1f]
        %v1203 = vsel %vm437, %v1198, 0
        %v1206 = vsel %vm437, %v1199, 0
        %v1209 = vsel %vm437, %v1200, 0
        %v1212 = vsel %vm437, %v1201, 0
        %1214 = vmatprep.subr.mxu0 0.0
        %1215 = vmatpush1.msra.mxu0 %v863
        %1216 = vmatprep.subr.mxu0 0.0
        %1217 = vmatpush1.msra.mxu0 %v864
        %1218 = vmatprep.subr.mxu0 0.0
        %1219 = vmatpush1.msra.mxu0 %v865
        %1220 = vmatprep.subr.mxu0 0.0
        %1221 = vmatpush1.msra.mxu0 %v891
        %1222 = vmatprep.subr.mxu0 0.0
        %1223 = vmatpush1.msra.mxu0 0.0
        %1224 = vmatprep.subr.mxu0 0.0
        %1225 = vmatpush1.msra.mxu0 0.0
        %1226 = vmatprep.subr.mxu0 0.0
        %1227 = vmatpush1.msra.mxu0 0.0
        %1228 = vmatprep.subr.mxu0 0.0
        %1229 = vmatpush1.msra.mxu0 0.0
        %1230 = vmatprep.subr.mxu0 0.0
        %1231 = vmatpush1.msra.mxu0 0.0
        %1232 = vmatprep.subr.mxu0 0.0
        %1233 = vmatpush1.msra.mxu0 0.0
        %1234 = vmatprep.subr.mxu0 0.0
        %1235 = vmatpush1.msra.mxu0 0.0
        %1236 = vmatprep.subr.mxu0 0.0
        %1237 = vmatpush1.msra.mxu0 0.0
        %1238 = vmatprep.subr.mxu0 0.0
        %1239 = vmatpush1.msra.mxu0 0.0
        %1240 = vmatprep.subr.mxu0 0.0
        %1241 = vmatpush1.msra.mxu0 0.0
        %1242 = vmatprep.subr.mxu0 0.0
        %1243 = vmatpush1.msra.mxu0 0.0
        %1244 = vmatprep.subr.mxu0 0.0
        %1245 = vmatpush1.msra.mxu0 0.0
        %1246 = vmatprep.subr.mxu0 0.0
        %1247 = vmatpush1.msra.mxu0 0.0
        %1248 = vmatprep.subr.mxu0 0.0
        %1249 = vmatpush1.msra.mxu0 0.0
        %1250 = vmatprep.subr.mxu0 0.0
        %1251 = vmatpush1.msra.mxu0 0.0
        %1252 = vmatprep.subr.mxu0 0.0
        %1253 = vmatpush1.msra.mxu0 0.0
        %1254 = vmatprep.subr.mxu0 0.0
        %1255 = vmatpush1.msra.mxu0 0.0
        %1256 = vmatprep.subr.mxu0 0.0
        %1257 = vmatpush1.msra.mxu0 0.0
        %1258 = vmatprep.subr.mxu0 0.0
        %1259 = vmatpush1.msra.mxu0 0.0
        %1260 = vmatprep.subr.mxu0 0.0
        %1261 = vmatpush1.msra.mxu0 0.0
        %1262 = vmatprep.subr.mxu0 0.0
        %1263 = vmatpush1.msra.mxu0 0.0
        %1264 = vmatprep.subr.mxu0 0.0
        %1265 = vmatpush1.msra.mxu0 0.0
        %1266 = vmatprep.subr.mxu0 0.0
        %1267 = vmatpush1.msra.mxu0 0.0
        %1268 = vmatprep.subr.mxu0 0.0
        %1269 = vmatpush1.msra.mxu0 0.0
        %1270 = vmatprep.subr.mxu0 0.0
        %1271 = vmatpush1.msra.mxu0 0.0
        %1272 = vmatprep.subr.mxu0 0.0
        %1273 = vmatpush1.msra.mxu0 0.0
        %1274 = vmatprep.subr.mxu0 0.0
        %1275 = vmatpush1.msra.mxu0 0.0
        %1276 = vmatprep.subr.mxu0 0.0
        %1277 = vmatpush1.msra.mxu0 0.0
        %1278 = vmatprep.mubr.f32.mxu0 0.0
        %1279 = vmatmul.mubr.f32.gmra.mrb[0].mxu0 %v1203
        %v1280 = vpop.f32.mrb[0].mxu0
        %v1281 = vadd.f32 0.0, %v1280
        %v1282 = vpop.f32.mrb[0].mxu0
        %1283 = vmatprep.mubr.f32.mxu0 0.0
        %1284 = vmatmul.mubr.f32.gmra.mrb[0].mxu0 %v1206
        %v1285 = vpop.f32.mrb[0].mxu0
        %v1286 = vadd.f32 0.0, %v1285
        %v1287 = vpop.f32.mrb[0].mxu0
        %1288 = vmatprep.mubr.f32.mxu0 0.0
        %1289 = vmatmul.mubr.f32.gmra.mrb[0].mxu0 %v1209
        %v1290 = vpop.f32.mrb[0].mxu0
        %v1291 = vadd.f32 0.0, %v1290
        %v1292 = vpop.f32.mrb[0].mxu0
        %1293 = vmatprep.mubr.f32.mxu0 0.0
        %1294 = vmatmul.mubr.f32.gmra.mrb[0].mxu0 %v1212
        %v1295 = vpop.f32.mrb[0].mxu0
        %v1296 = vadd.f32 0.0, %v1295
        %v1297 = vpop.f32.mrb[0].mxu0
        %1298 = vdwg.mxu0
        %1299 = vrot.lane.b32.xlu0 %v1281, 125
        %v1300 = vpop.permute.xlu0 %1299
        %1301 = vrot.lane.b32.xlu0 %v1286, 125
        %v1302 = vpop.permute.xlu0 %1301
        %1303 = vrot.lane.b32.xlu0 %v1291, 125
        %v1304 = vpop.permute.xlu0 %1303
        %1305 = vrot.lane.b32.xlu0 %v1296, 125
        %v1306 = vpop.permute.xlu0 %1305
        %v1307 = vadd.f32 %v1193, %v1300
        %v1308 = vadd.f32 %v1194, %v1302
        %v1309 = vadd.f32 %v1195, %v1304
        %v1310 = vadd.f32 %v1196, %v1306
        %v1311 = vstv %s868
        %v1312 = vadd.f32 %v1307, %v1311
        %v1313 = vadd.f32 %v1308, %v1311
        %v1314 = vadd.f32 %v1309, %v1311
        %v1315 = vadd.f32 %v1310, %v1311
        %v1316 = vmax.f32 %v1312, 0.0
        %v1317 = vmax.f32 %v1313, 0.0
        %v1318 = vmax.f32 %v1314, 0.0
        %v1319 = vmax.f32 %v1315, 0.0
        %vm1324 = vcmask 1046528
        %v1325 = vrot.slane %v1316, 1
        %v1326 = vrot.slane %v1317, 1
        %v1327 = vsel %vm1324, %v1325, %v1326
        %v1328 = vrot.slane %v1318, 1
        %v1329 = vsel %vm1324, %v1326, %v1328
        %v1330 = vrot.slane %v1319, 1
        %v1331 = vsel %vm1324, %v1328, %v1330
        %v1336 = vmax.f32 %v1316, %v1327
        %v1337 = vmax.f32 %v1317, %v1329
        %v1338 = vmax.f32 %v1318, %v1331
        %v1339 = vmax.f32 %v1319, %v1330
        %1340 = vrot.lane.b32.xlu0 %v1336, 127
        %v1341 = vpop.permute.xlu0 %1340
        %1342 = vrot.lane.b32.xlu0 %v1337, 127
        %v1343 = vpop.permute.xlu0 %1342
        %1344 = vrot.lane.b32.xlu0 %v1338, 127
        %v1345 = vpop.permute.xlu0 %1344
        %1346 = vrot.lane.b32.xlu0 %v1339, 127
        %v1347 = vpop.permute.xlu0 %1346
        %v1348 = vmax.f32 %v1336, %v1341
        %v1349 = vmax.f32 %v1337, %v1343
        %v1350 = vmax.f32 %v1338, %v1345
        %v1351 = vmax.f32 %v1339, %v1347
        %v1352 = vld [vmem:[%s5] sm:$0xff]
        %v1353 = vld [vmem:[%s5 + $0x8] sm:$0xff]
        %v1354 = vld [vmem:[%s5 + $0x10] sm:$0x3]
        %v1356 = vsel %vm437, %v1352, 0
        %v1359 = vsel %vm437, %v1353, 0
        %v1362 = vsel %vm437, %v1354, 0
        %v1365 = vsel %vm450, %v1351, 0
        %1367 = vmatprep.subr.mxu0 0.0
        %1368 = vmatpush1.msra.mxu0 %v1348
        %1369 = vmatprep.subr.mxu0 0.0
        %1370 = vmatpush1.msra.mxu0 %v1349
        %1371 = vmatprep.subr.mxu0 0.0
        %1372 = vmatpush1.msra.mxu0 %v1350
        %1373 = vmatprep.subr.mxu0 0.0
        %1374 = vmatpush1.msra.mxu0 %v1365
        %1375 = vmatprep.subr.mxu0 0.0
        %1376 = vmatpush1.msra.mxu0 0.0
        %1377 = vmatprep.subr.mxu0 0.0
        %1378 = vmatpush1.msra.mxu0 0.0
        %1379 = vmatprep.subr.mxu0 0.0
        %1380 = vmatpush1.msra.mxu0 0.0
        %1381 = vmatprep.subr.mxu0 0.0
        %1382 = vmatpush1.msra.mxu0 0.0
        %1383 = vmatprep.subr.mxu0 0.0
        %1384 = vmatpush1.msra.mxu0 0.0
        %1385 = vmatprep.subr.mxu0 0.0
        %1386 = vmatpush1.msra.mxu0 0.0
        %1387 = vmatprep.subr.mxu0 0.0
        %1388 = vmatpush1.msra.mxu0 0.0
        %1389 = vmatprep.subr.mxu0 0.0
        %1390 = vmatpush1.msra.mxu0 0.0
        %1391 = vmatprep.subr.mxu0 0.0
        %1392 = vmatpush1.msra.mxu0 0.0
        %1393 = vmatprep.subr.mxu0 0.0
        %1394 = vmatpush1.msra.mxu0 0.0
        %1395 = vmatprep.subr.mxu0 0.0
        %1396 = vmatpush1.msra.mxu0 0.0
        %1397 = vmatprep.subr.mxu0 0.0
        %1398 = vmatpush1.msra.mxu0 0.0
        %1399 = vmatprep.subr.mxu0 0.0
        %1400 = vmatpush1.msra.mxu0 0.0
        %1401 = vmatprep.subr.mxu0 0.0
        %1402 = vmatpush1.msra.mxu0 0.0
        %1403 = vmatprep.subr.mxu0 0.0
        %1404 = vmatpush1.msra.mxu0 0.0
        %1405 = vmatprep.subr.mxu0 0.0
        %1406 = vmatpush1.msra.mxu0 0.0
        %1407 = vmatprep.subr.mxu0 0.0
        %1408 = vmatpush1.msra.mxu0 0.0
        %1409 = vmatprep.subr.mxu0 0.0
        %1410 = vmatpush1.msra.mxu0 0.0
        %1411 = vmatprep.subr.mxu0 0.0
        %1412 = vmatpush1.msra.mxu0 0.0
        %1413 = vmatprep.subr.mxu0 0.0
        %1414 = vmatpush1.msra.mxu0 0.0
        %1415 = vmatprep.subr.mxu0 0.0
        %1416 = vmatpush1.msra.mxu0 0.0
        %1417 = vmatprep.subr.mxu0 0.0
        %1418 = vmatpush1.msra.mxu0 0.0
        %1419 = vmatprep.subr.mxu0 0.0
        %1420 = vmatpush1.msra.mxu0 0.0
        %1421 = vmatprep.subr.mxu0 0.0
        %1422 = vmatpush1.msra.mxu0 0.0
        %1423 = vmatprep.subr.mxu0 0.0
        %1424 = vmatpush1.msra.mxu0 0.0
        %1425 = vmatprep.subr.mxu0 0.0
        %1426 = vmatpush1.msra.mxu0 0.0
        %1427 = vmatprep.subr.mxu0 0.0
        %1428 = vmatpush1.msra.mxu0 0.0
        %1429 = vmatprep.subr.mxu0 0.0
        %1430 = vmatpush1.msra.mxu0 0.0
        %1431 = vmatprep.mubr.f32.mxu0 0.0
        %1432 = vmatmul.mubr.f32.gmra.mrb[0].mxu0 %v1356
        %v1433 = vpop.f32.mrb[0].mxu0
        %v1434 = vadd.f32 0.0, %v1433
        %v1435 = vpop.f32.mrb[0].mxu0
        %1436 = vmatprep.mubr.f32.mxu0 0.0
        %1437 = vmatmul.mubr.f32.gmra.mrb[0].mxu0 %v1359
        %v1438 = vpop.f32.mrb[0].mxu0
        %v1439 = vadd.f32 0.0, %v1438
        %v1440 = vpop.f32.mrb[0].mxu0
        %1441 = vmatprep.mubr.f32.mxu0 0.0
        %1442 = vmatmul.mubr.f32.gmra.mrb[0].mxu0 %v1362
        %v1443 = vpop.f32.mrb[0].mxu0
        %v1444 = vadd.f32 0.0, %v1443
        %v1445 = vpop.f32.mrb[0].mxu0
        %1446 = vdwg.mxu0
        %v1447 = vld [vmem:[%s6] sm:$0xff]
        %v1448 = vld [vmem:[%s6 + $0x8] sm:$0xff]
        %v1449 = vld [vmem:[%s6 + $0x10] sm:$0xff]
        %v1450 = vld [vmem:[%s6 + $0x18] sm:$0xff]
        %v1451 = vld [vmem:[%s6 + $0x20] sm:$0xff]
        %v1452 = vld [vmem:[%s6 + $0x28] sm:$0xff]
        %v1453 = vld [vmem:[%s6 + $0x30] sm:$0xff]
        %v1454 = vld [vmem:[%s6 + $0x38] sm:$0xff]
        %v1455 = vld [vmem:[%s6 + $0x40] sm:$0xff]
        %v1456 = vld [vmem:[%s6 + $0x48] sm:$0xff]
        %v1457 = vld [vmem:[%s6 + $0x50] sm:$0xff]
        %v1458 = vld [vmem:[%s6 + $0x58] sm:$0xff]
        %v1459 = vld [vmem:[%s6 + $0x60] sm:$0xff]
        %v1460 = vld [vmem:[%s6 + $0x68] sm:$0xff]
        %v1461 = vld [vmem:[%s6 + $0x70] sm:$0xff]
        %v1462 = vld [vmem:[%s6 + $0x78] sm:$0xff]
        %1463 = vmatprep.subr.mxu0 0.0
        %1464 = vmatpush1.msra.mxu0 %v1447
        %1465 = vmatprep.subr.mxu0 0.0
        %1466 = vmatpush1.msra.mxu0 %v1448
        %1467 = vmatprep.subr.mxu0 0.0
        %1468 = vmatpush1.msra.mxu0 %v1449
        %1469 = vmatprep.subr.mxu0 0.0
        %1470 = vmatpush1.msra.mxu0 %v1450
        %1471 = vmatprep.subr.mxu0 0.0
        %1472 = vmatpush1.msra.mxu0 %v1451
        %1473 = vmatprep.subr.mxu0 0.0
        %1474 = vmatpush1.msra.mxu0 %v1452
        %1475 = vmatprep.subr.mxu0 0.0
        %1476 = vmatpush1.msra.mxu0 %v1453
        %1477 = vmatprep.subr.mxu0 0.0
        %1478 = vmatpush1.msra.mxu0 %v1454
        %1479 = vmatprep.subr.mxu0 0.0
        %1480 = vmatpush1.msra.mxu0 %v1455
        %1481 = vmatprep.subr.mxu0 0.0
        %1482 = vmatpush1.msra.mxu0 %v1456
        %1483 = vmatprep.subr.mxu0 0.0
        %1484 = vmatpush1.msra.mxu0 %v1457
        %1485 = vmatprep.subr.mxu0 0.0
        %1486 = vmatpush1.msra.mxu0 %v1458
        %1487 = vmatprep.subr.mxu0 0.0
        %1488 = vmatpush1.msra.mxu0 %v1459
        %1489 = vmatprep.subr.mxu0 0.0
        %1490 = vmatpush1.msra.mxu0 %v1460
        %1491 = vmatprep.subr.mxu0 0.0
        %1492 = vmatpush1.msra.mxu0 %v1461
        %1493 = vmatprep.subr.mxu0 0.0
        %1494 = vmatpush1.msra.mxu0 %v1462
        %1495 = vmatprep.subr.mxu0 0.0
        %1496 = vmatpush1.msra.mxu0 0.0
        %1497 = vmatprep.subr.mxu0 0.0
        %1498 = vmatpush1.msra.mxu0 0.0
        %1499 = vmatprep.subr.mxu0 0.0
        %1500 = vmatpush1.msra.mxu0 0.0
        %1501 = vmatprep.subr.mxu0 0.0
        %1502 = vmatpush1.msra.mxu0 0.0
        %1503 = vmatprep.subr.mxu0 0.0
        %1504 = vmatpush1.msra.mxu0 0.0
        %1505 = vmatprep.subr.mxu0 0.0
        %1506 = vmatpush1.msra.mxu0 0.0
        %1507 = vmatprep.subr.mxu0 0.0
        %1508 = vmatpush1.msra.mxu0 0.0
        %1509 = vmatprep.subr.mxu0 0.0
        %1510 = vmatpush1.msra.mxu0 0.0
        %1511 = vmatprep.subr.mxu0 0.0
        %1512 = vmatpush1.msra.mxu0 0.0
        %1513 = vmatprep.subr.mxu0 0.0
        %1514 = vmatpush1.msra.mxu0 0.0
        %1515 = vmatprep.subr.mxu0 0.0
        %1516 = vmatpush1.msra.mxu0 0.0
        %1517 = vmatprep.subr.mxu0 0.0
        %1518 = vmatpush1.msra.mxu0 0.0
        %1519 = vmatprep.subr.mxu0 0.0
        %1520 = vmatpush1.msra.mxu0 0.0
        %1521 = vmatprep.subr.mxu0 0.0
        %1522 = vmatpush1.msra.mxu0 0.0
        %1523 = vmatprep.subr.mxu0 0.0
        %1524 = vmatpush1.msra.mxu0 0.0
        %1525 = vmatprep.subr.mxu0 0.0
        %1526 = vmatpush1.msra.mxu0 0.0
        %1527 = vmatprep.mubr.f32.mxu0 0.0
        %1528 = vmatmul.mubr.f32.gmra.mrb[0].mxu0 %v1434
        %v1529 = vpop.f32.mrb[0].mxu0
        %v1530 = vadd.f32 0.0, %v1529
        %v1531 = vpop.f32.mrb[0].mxu0
        %1532 = vmatprep.mubr.f32.mxu0 0.0
        %1533 = vmatmul.mubr.f32.gmra.mrb[0].mxu0 %v1439
        %v1534 = vpop.f32.mrb[0].mxu0
        %v1535 = vadd.f32 0.0, %v1534
        %v1536 = vpop.f32.mrb[0].mxu0
        %1537 = vmatprep.mubr.f32.mxu0 0.0
        %1538 = vmatmul.mubr.f32.gmra.mrb[0].mxu0 %v1444
        %v1539 = vpop.f32.mrb[0].mxu0
        %v1540 = vadd.f32 0.0, %v1539
        %v1541 = vpop.f32.mrb[0].mxu0
        %1542 = vdwg.mxu0
        %s1543 = sadd.s32 %s867, 1
        %s1544 = sld [smem:[#allocation2 + %s1543]]
        %v1545 = vld [vmem:[%s411] sm:$0xff]
        %v1546 = vld [vmem:[%s411 + $0x8] sm:$0x7f]
        %s1547 = scalar_lea.vmem %s411, 16
        %v1548 = vld [vmem:[%s1547] sm:$0xff]
        %v1549 = vld [vmem:[%s1547 + $0x8] sm:$0x7f]
        %vm1550 = vcmask 146432
        %v1552 = vsel %vm1550, %v1548, 0
        %v1555 = vsel %vm1550, %v1549, 0
        %vm1557 = vcmask 1041408
        %v1559 = vsel %vm1557, %v1540, 0
        %1561 = vmatprep.subr.mxu0 0.0
        %1562 = vmatpush1.msra.mxu0 %v1530
        %1563 = vmatprep.subr.mxu0 0.0
        %1564 = vmatpush1.msra.mxu0 %v1535
        %1565 = vmatprep.subr.mxu0 0.0
        %1566 = vmatpush1.msra.mxu0 %v1559
        %1567 = vmatprep.subr.mxu0 0.0
        %1568 = vmatpush1.msra.mxu0 0.0
        %1569 = vmatprep.subr.mxu0 0.0
        %1570 = vmatpush1.msra.mxu0 0.0
        %1571 = vmatprep.subr.mxu0 0.0
        %1572 = vmatpush1.msra.mxu0 0.0
        %1573 = vmatprep.subr.mxu0 0.0
        %1574 = vmatpush1.msra.mxu0 0.0
        %1575 = vmatprep.subr.mxu0 0.0
        %1576 = vmatpush1.msra.mxu0 0.0
        %1577 = vmatprep.subr.mxu0 0.0
        %1578 = vmatpush1.msra.mxu0 0.0
        %1579 = vmatprep.subr.mxu0 0.0
        %1580 = vmatpush1.msra.mxu0 0.0
        %1581 = vmatprep.subr.mxu0 0.0
        %1582 = vmatpush1.msra.mxu0 0.0
        %1583 = vmatprep.subr.mxu0 0.0
        %1584 = vmatpush1.msra.mxu0 0.0
        %1585 = vmatprep.subr.mxu0 0.0
        %1586 = vmatpush1.msra.mxu0 0.0
        %1587 = vmatprep.subr.mxu0 0.0
        %1588 = vmatpush1.msra.mxu0 0.0
        %1589 = vmatprep.subr.mxu0 0.0
        %1590 = vmatpush1.msra.mxu0 0.0
        %1591 = vmatprep.subr.mxu0 0.0
        %1592 = vmatpush1.msra.mxu0 0.0
        %1593 = vmatprep.subr.mxu0 0.0
        %1594 = vmatpush1.msra.mxu0 0.0
        %1595 = vmatprep.subr.mxu0 0.0
        %1596 = vmatpush1.msra.mxu0 0.0
        %1597 = vmatprep.subr.mxu0 0.0
        %1598 = vmatpush1.msra.mxu0 0.0
        %1599 = vmatprep.subr.mxu0 0.0
        %1600 = vmatpush1.msra.mxu0 0.0
        %1601 = vmatprep.subr.mxu0 0.0
        %1602 = vmatpush1.msra.mxu0 0.0
        %1603 = vmatprep.subr.mxu0 0.0
        %1604 = vmatpush1.msra.mxu0 0.0
        %1605 = vmatprep.subr.mxu0 0.0
        %1606 = vmatpush1.msra.mxu0 0.0
        %1607 = vmatprep.subr.mxu0 0.0
        %1608 = vmatpush1.msra.mxu0 0.0
        %1609 = vmatprep.subr.mxu0 0.0
        %1610 = vmatpush1.msra.mxu0 0.0
        %1611 = vmatprep.subr.mxu0 0.0
        %1612 = vmatpush1.msra.mxu0 0.0
        %1613 = vmatprep.subr.mxu0 0.0
        %1614 = vmatpush1.msra.mxu0 0.0
        %1615 = vmatprep.subr.mxu0 0.0
        %1616 = vmatpush1.msra.mxu0 0.0
        %1617 = vmatprep.subr.mxu0 0.0
        %1618 = vmatpush1.msra.mxu0 0.0
        %1619 = vmatprep.subr.mxu0 0.0
        %1620 = vmatpush1.msra.mxu0 0.0
        %1621 = vmatprep.subr.mxu0 0.0
        %1622 = vmatpush1.msra.mxu0 0.0
        %1623 = vmatprep.subr.mxu0 0.0
        %1624 = vmatpush1.msra.mxu0 0.0
        %1625 = vmatprep.mubr.f32.mxu0 0.0
        %1626 = vmatmul.mubr.f32.gmra.mrb[0].mxu0 %v1552
        %v1627 = vpop.f32.mrb[0].mxu0
        %v1628 = vadd.f32 0.0, %v1627
        %v1629 = vpop.f32.mrb[0].mxu0
        %1630 = vmatprep.mubr.f32.mxu0 0.0
        %1631 = vmatmul.mubr.f32.gmra.mrb[0].mxu0 %v1555
        %v1632 = vpop.f32.mrb[0].mxu0
        %v1633 = vadd.f32 0.0, %v1632
        %v1634 = vpop.f32.mrb[0].mxu0
        %1635 = vdwg.mxu0
        %1636 = vrot.lane.b32.xlu0 %v1628, 127
        %v1637 = vpop.permute.xlu0 %1636
        %1638 = vrot.lane.b32.xlu0 %v1633, 127
        %v1639 = vpop.permute.xlu0 %1638
        %v1641 = vsel %vm1550, %v1545, 0
        %v1644 = vsel %vm1550, %v1546, 0
        %1646 = vmatprep.subr.mxu0 0.0
        %1647 = vmatpush1.msra.mxu0 %v1530
        %1648 = vmatprep.subr.mxu0 0.0
        %1649 = vmatpush1.msra.mxu0 %v1535
        %1650 = vmatprep.subr.mxu0 0.0
        %1651 = vmatpush1.msra.mxu0 %v1559
        %1652 = vmatprep.subr.mxu0 0.0
        %1653 = vmatpush1.msra.mxu0 0.0
        %1654 = vmatprep.subr.mxu0 0.0
        %1655 = vmatpush1.msra.mxu0 0.0
        %1656 = vmatprep.subr.mxu0 0.0
        %1657 = vmatpush1.msra.mxu0 0.0
        %1658 = vmatprep.subr.mxu0 0.0
        %1659 = vmatpush1.msra.mxu0 0.0
        %1660 = vmatprep.subr.mxu0 0.0
        %1661 = vmatpush1.msra.mxu0 0.0
        %1662 = vmatprep.subr.mxu0 0.0
        %1663 = vmatpush1.msra.mxu0 0.0
        %1664 = vmatprep.subr.mxu0 0.0
        %1665 = vmatpush1.msra.mxu0 0.0
        %1666 = vmatprep.subr.mxu0 0.0
        %1667 = vmatpush1.msra.mxu0 0.0
        %1668 = vmatprep.subr.mxu0 0.0
        %1669 = vmatpush1.msra.mxu0 0.0
        %1670 = vmatprep.subr.mxu0 0.0
        %1671 = vmatpush1.msra.mxu0 0.0
        %1672 = vmatprep.subr.mxu0 0.0
        %1673 = vmatpush1.msra.mxu0 0.0
        %1674 = vmatprep.subr.mxu0 0.0
        %1675 = vmatpush1.msra.mxu0 0.0
        %1676 = vmatprep.subr.mxu0 0.0
        %1677 = vmatpush1.msra.mxu0 0.0
        %1678 = vmatprep.subr.mxu0 0.0
        %1679 = vmatpush1.msra.mxu0 0.0
        %1680 = vmatprep.subr.mxu0 0.0
        %1681 = vmatpush1.msra.mxu0 0.0
        %1682 = vmatprep.subr.mxu0 0.0
        %1683 = vmatpush1.msra.mxu0 0.0
        %1684 = vmatprep.subr.mxu0 0.0
        %1685 = vmatpush1.msra.mxu0 0.0
        %1686 = vmatprep.subr.mxu0 0.0
        %1687 = vmatpush1.msra.mxu0 0.0
        %1688 = vmatprep.subr.mxu0 0.0
        %1689 = vmatpush1.msra.mxu0 0.0
        %1690 = vmatprep.subr.mxu0 0.0
        %1691 = vmatpush1.msra.mxu0 0.0
        %1692 = vmatprep.subr.mxu0 0.0
        %1693 = vmatpush1.msra.mxu0 0.0
        %1694 = vmatprep.subr.mxu0 0.0
        %1695 = vmatpush1.msra.mxu0 0.0
        %1696 = vmatprep.subr.mxu0 0.0
        %1697 = vmatpush1.msra.mxu0 0.0
        %1698 = vmatprep.subr.mxu0 0.0
        %1699 = vmatpush1.msra.mxu0 0.0
        %1700 = vmatprep.subr.mxu0 0.0
        %1701 = vmatpush1.msra.mxu0 0.0
        %1702 = vmatprep.subr.mxu0 0.0
        %1703 = vmatpush1.msra.mxu0 0.0
        %1704 = vmatprep.subr.mxu0 0.0
        %1705 = vmatpush1.msra.mxu0 0.0
        %1706 = vmatprep.subr.mxu0 0.0
        %1707 = vmatpush1.msra.mxu0 0.0
        %1708 = vmatprep.subr.mxu0 0.0
        %1709 = vmatpush1.msra.mxu0 0.0
        %1710 = vmatprep.mubr.f32.mxu0 0.0
        %1711 = vmatmul.mubr.f32.gmra.mrb[0].mxu0 %v1641
        %v1712 = vpop.f32.mrb[0].mxu0
        %v1713 = vadd.f32 %v1637, %v1712
        %v1714 = vpop.f32.mrb[0].mxu0
        %1715 = vmatprep.mubr.f32.mxu0 0.0
        %1716 = vmatmul.mubr.f32.gmra.mrb[0].mxu0 %v1644
        %v1717 = vpop.f32.mrb[0].mxu0
        %v1718 = vadd.f32 %v1639, %v1717
        %v1719 = vpop.f32.mrb[0].mxu0
        %1720 = vdwg.mxu0
        %s1721 = scalar_lea.vmem %s411, 32
        %v1722 = vld [vmem:[%s1721] sm:$0xff]
        %v1723 = vld [vmem:[%s1721 + $0x8] sm:$0x7f]
        %v1725 = vsel %vm1550, %v1722, 0
        %v1728 = vsel %vm1550, %v1723, 0
        %1730 = vmatprep.subr.mxu0 0.0
        %1731 = vmatpush1.msra.mxu0 %v1530
        %1732 = vmatprep.subr.mxu0 0.0
        %1733 = vmatpush1.msra.mxu0 %v1535
        %1734 = vmatprep.subr.mxu0 0.0
        %1735 = vmatpush1.msra.mxu0 %v1559
        %1736 = vmatprep.subr.mxu0 0.0
        %1737 = vmatpush1.msra.mxu0 0.0
        %1738 = vmatprep.subr.mxu0 0.0
        %1739 = vmatpush1.msra.mxu0 0.0
        %1740 = vmatprep.subr.mxu0 0.0
        %1741 = vmatpush1.msra.mxu0 0.0
        %1742 = vmatprep.subr.mxu0 0.0
        %1743 = vmatpush1.msra.mxu0 0.0
        %1744 = vmatprep.subr.mxu0 0.0
        %1745 = vmatpush1.msra.mxu0 0.0
        %1746 = vmatprep.subr.mxu0 0.0
        %1747 = vmatpush1.msra.mxu0 0.0
        %1748 = vmatprep.subr.mxu0 0.0
        %1749 = vmatpush1.msra.mxu0 0.0
        %1750 = vmatprep.subr.mxu0 0.0
        %1751 = vmatpush1.msra.mxu0 0.0
        %1752 = vmatprep.subr.mxu0 0.0
        %1753 = vmatpush1.msra.mxu0 0.0
        %1754 = vmatprep.subr.mxu0 0.0
        %1755 = vmatpush1.msra.mxu0 0.0
        %1756 = vmatprep.subr.mxu0 0.0
        %1757 = vmatpush1.msra.mxu0 0.0
        %1758 = vmatprep.subr.mxu0 0.0
        %1759 = vmatpush1.msra.mxu0 0.0
        %1760 = vmatprep.subr.mxu0 0.0
        %1761 = vmatpush1.msra.mxu0 0.0
        %1762 = vmatprep.subr.mxu0 0.0
        %1763 = vmatpush1.msra.mxu0 0.0
        %1764 = vmatprep.subr.mxu0 0.0
        %1765 = vmatpush1.msra.mxu0 0.0
        %1766 = vmatprep.subr.mxu0 0.0
        %1767 = vmatpush1.msra.mxu0 0.0
        %1768 = vmatprep.subr.mxu0 0.0
        %1769 = vmatpush1.msra.mxu0 0.0
        %1770 = vmatprep.subr.mxu0 0.0
        %1771 = vmatpush1.msra.mxu0 0.0
        %1772 = vmatprep.subr.mxu0 0.0
        %1773 = vmatpush1.msra.mxu0 0.0
        %1774 = vmatprep.subr.mxu0 0.0
        %1775 = vmatpush1.msra.mxu0 0.0
        %1776 = vmatprep.subr.mxu0 0.0
        %1777 = vmatpush1.msra.mxu0 0.0
        %1778 = vmatprep.subr.mxu0 0.0
        %1779 = vmatpush1.msra.mxu0 0.0
        %1780 = vmatprep.subr.mxu0 0.0
        %1781 = vmatpush1.msra.mxu0 0.0
        %1782 = vmatprep.subr.mxu0 0.0
        %1783 = vmatpush1.msra.mxu0 0.0
        %1784 = vmatprep.subr.mxu0 0.0
        %1785 = vmatpush1.msra.mxu0 0.0
        %1786 = vmatprep.subr.mxu0 0.0
        %1787 = vmatpush1.msra.mxu0 0.0
        %1788 = vmatprep.subr.mxu0 0.0
        %1789 = vmatpush1.msra.mxu0 0.0
        %1790 = vmatprep.subr.mxu0 0.0
        %1791 = vmatpush1.msra.mxu0 0.0
        %1792 = vmatprep.subr.mxu0 0.0
        %1793 = vmatpush1.msra.mxu0 0.0
        %1794 = vmatprep.mubr.f32.mxu0 0.0
        %1795 = vmatmul.mubr.f32.gmra.mrb[0].mxu0 %v1725
        %v1796 = vpop.f32.mrb[0].mxu0
        %v1797 = vadd.f32 0.0, %v1796
        %v1798 = vpop.f32.mrb[0].mxu0
        %1799 = vmatprep.mubr.f32.mxu0 0.0
        %1800 = vmatmul.mubr.f32.gmra.mrb[0].mxu0 %v1728
        %v1801 = vpop.f32.mrb[0].mxu0
        %v1802 = vadd.f32 0.0, %v1801
        %v1803 = vpop.f32.mrb[0].mxu0
        %1804 = vdwg.mxu0
        %1805 = vrot.lane.b32.xlu0 %v1797, 126
        %v1806 = vpop.permute.xlu0 %1805
        %1807 = vrot.lane.b32.xlu0 %v1802, 126
        %v1808 = vpop.permute.xlu0 %1807
        %v1809 = vadd.f32 %v1713, %v1806
        %v1810 = vadd.f32 %v1718, %v1808
        %s1811 = scalar_lea.vmem %s411, 48
        %v1812 = vld [vmem:[%s1811] sm:$0xff]
        %v1813 = vld [vmem:[%s1811 + $0x8] sm:$0x7f]
        %v1815 = vsel %vm1550, %v1812, 0
        %v1818 = vsel %vm1550, %v1813, 0
        %1820 = vmatprep.subr.mxu0 0.0
        %1821 = vmatpush1.msra.mxu0 %v1530
        %1822 = vmatprep.subr.mxu0 0.0
        %1823 = vmatpush1.msra.mxu0 %v1535
        %1824 = vmatprep.subr.mxu0 0.0
        %1825 = vmatpush1.msra.mxu0 %v1559
        %1826 = vmatprep.subr.mxu0 0.0
        %1827 = vmatpush1.msra.mxu0 0.0
        %1828 = vmatprep.subr.mxu0 0.0
        %1829 = vmatpush1.msra.mxu0 0.0
        %1830 = vmatprep.subr.mxu0 0.0
        %1831 = vmatpush1.msra.mxu0 0.0
        %1832 = vmatprep.subr.mxu0 0.0
        %1833 = vmatpush1.msra.mxu0 0.0
        %1834 = vmatprep.subr.mxu0 0.0
        %1835 = vmatpush1.msra.mxu0 0.0
        %1836 = vmatprep.subr.mxu0 0.0
        %1837 = vmatpush1.msra.mxu0 0.0
        %1838 = vmatprep.subr.mxu0 0.0
        %1839 = vmatpush1.msra.mxu0 0.0
        %1840 = vmatprep.subr.mxu0 0.0
        %1841 = vmatpush1.msra.mxu0 0.0
        %1842 = vmatprep.subr.mxu0 0.0
        %1843 = vmatpush1.msra.mxu0 0.0
        %1844 = vmatprep.subr.mxu0 0.0
        %1845 = vmatpush1.msra.mxu0 0.0
        %1846 = vmatprep.subr.mxu0 0.0
        %1847 = vmatpush1.msra.mxu0 0.0
        %1848 = vmatprep.subr.mxu0 0.0
        %1849 = vmatpush1.msra.mxu0 0.0
        %1850 = vmatprep.subr.mxu0 0.0
        %1851 = vmatpush1.msra.mxu0 0.0
        %1852 = vmatprep.subr.mxu0 0.0
        %1853 = vmatpush1.msra.mxu0 0.0
        %1854 = vmatprep.subr.mxu0 0.0
        %1855 = vmatpush1.msra.mxu0 0.0
        %1856 = vmatprep.subr.mxu0 0.0
        %1857 = vmatpush1.msra.mxu0 0.0
        %1858 = vmatprep.subr.mxu0 0.0
        %1859 = vmatpush1.msra.mxu0 0.0
        %1860 = vmatprep.subr.mxu0 0.0
        %1861 = vmatpush1.msra.mxu0 0.0
        %1862 = vmatprep.subr.mxu0 0.0
        %1863 = vmatpush1.msra.mxu0 0.0
        %1864 = vmatprep.subr.mxu0 0.0
        %1865 = vmatpush1.msra.mxu0 0.0
        %1866 = vmatprep.subr.mxu0 0.0
        %1867 = vmatpush1.msra.mxu0 0.0
        %1868 = vmatprep.subr.mxu0 0.0
        %1869 = vmatpush1.msra.mxu0 0.0
        %1870 = vmatprep.subr.mxu0 0.0
        %1871 = vmatpush1.msra.mxu0 0.0
        %1872 = vmatprep.subr.mxu0 0.0
        %1873 = vmatpush1.msra.mxu0 0.0
        %1874 = vmatprep.subr.mxu0 0.0
        %1875 = vmatpush1.msra.mxu0 0.0
        %1876 = vmatprep.subr.mxu0 0.0
        %1877 = vmatpush1.msra.mxu0 0.0
        %1878 = vmatprep.subr.mxu0 0.0
        %1879 = vmatpush1.msra.mxu0 0.0
        %1880 = vmatprep.subr.mxu0 0.0
        %1881 = vmatpush1.msra.mxu0 0.0
        %1882 = vmatprep.subr.mxu0 0.0
        %1883 = vmatpush1.msra.mxu0 0.0
        %1884 = vmatprep.mubr.f32.mxu0 0.0
        %1885 = vmatmul.mubr.f32.gmra.mrb[0].mxu0 %v1815
        %v1886 = vpop.f32.mrb[0].mxu0
        %v1887 = vadd.f32 0.0, %v1886
        %v1888 = vpop.f32.mrb[0].mxu0
        %1889 = vmatprep.mubr.f32.mxu0 0.0
        %1890 = vmatmul.mubr.f32.gmra.mrb[0].mxu0 %v1818
        %v1891 = vpop.f32.mrb[0].mxu0
        %v1892 = vadd.f32 0.0, %v1891
        %v1893 = vpop.f32.mrb[0].mxu0
        %1894 = vdwg.mxu0
        %1895 = vrot.lane.b32.xlu0 %v1887, 125
        %v1896 = vpop.permute.xlu0 %1895
        %1897 = vrot.lane.b32.xlu0 %v1892, 125
        %v1898 = vpop.permute.xlu0 %1897
        %v1899 = vadd.f32 %v1809, %v1896
        %v1900 = vadd.f32 %v1810, %v1898
        %v1901 = vstv %s1544
        %v1902 = vadd.f32 %v1899, %v1901
        %v1903 = vadd.f32 %v1900, %v1901
        %v1904 = vmax.f32 %v1902, 0.0
        %v1905 = vmax.f32 %v1903, 0.0
        %v1908 = vrot.slane %v1904, 1
        %v1909 = vrot.slane %v1905, 1
        %v1910 = vsel %vm1324, %v1908, %v1909
        %v1913 = vmax.f32 %v1904, %v1910
        %v1914 = vmax.f32 %v1905, %v1909
        %1915 = vrot.lane.b32.xlu0 %v1913, 127
        %v1916 = vpop.permute.xlu0 %1915
        %1917 = vrot.lane.b32.xlu0 %v1914, 127
        %v1918 = vpop.permute.xlu0 %1917
        %v1919 = vmax.f32 %v1913, %v1916
        %v1920 = vmax.f32 %v1914, %v1918
        %vm1921 = vcmask 1045504
        %v1922 = vsel %vm1921, %v1920, 0.0
        %v1923 = vld [vmem:[%s7] sm:$0xff]
        %v1924 = vld [vmem:[%s7 + $0x8] sm:$0xff]
        %v1925 = vld [vmem:[%s7 + $0x10] sm:$0xff]
        %v1926 = vld [vmem:[%s7 + $0x18] sm:$0xf]
        %1927 = vmatprep.subr.mxu0 0.0
        %1928 = vmatpush1.xpose.msra.mxu0 %v1919
        %1929 = vmatprep.subr.mxu0 0.0
        %1930 = vmatpush1.xpose.msra.mxu0 %v1922
        %1931 = vmatprep.subr.mxu0 0.0
        %1932 = vmatpush1.xpose.msra.mxu0 0.0
        %1933 = vmatprep.subr.mxu0 0.0
        %1934 = vmatpush1.xpose.msra.mxu0 0.0
        %1935 = vmatprep.subr.mxu0 0.0
        %1936 = vmatpush1.xpose.msra.mxu0 0.0
        %1937 = vmatprep.subr.mxu0 0.0
        %1938 = vmatpush1.xpose.msra.mxu0 0.0
        %1939 = vmatprep.subr.mxu0 0.0
        %1940 = vmatpush1.xpose.msra.mxu0 0.0
        %1941 = vmatprep.subr.mxu0 0.0
        %1942 = vmatpush1.xpose.msra.mxu0 0.0
        %1943 = vmatprep.subr.mxu0 0.0
        %1944 = vmatpush1.xpose.msra.mxu0 0.0
        %1945 = vmatprep.subr.mxu0 0.0
        %1946 = vmatpush1.xpose.msra.mxu0 0.0
        %1947 = vmatprep.subr.mxu0 0.0
        %1948 = vmatpush1.xpose.msra.mxu0 0.0
        %1949 = vmatprep.subr.mxu0 0.0
        %1950 = vmatpush1.xpose.msra.mxu0 0.0
        %1951 = vmatprep.subr.mxu0 0.0
        %1952 = vmatpush1.xpose.msra.mxu0 0.0
        %1953 = vmatprep.subr.mxu0 0.0
        %1954 = vmatpush1.xpose.msra.mxu0 0.0
        %1955 = vmatprep.subr.mxu0 0.0
        %1956 = vmatpush1.xpose.msra.mxu0 0.0
        %1957 = vmatprep.subr.mxu0 0.0
        %1958 = vmatpush1.xpose.msra.mxu0 0.0
        %1959 = vmatprep.subr.mxu0 0.0
        %1960 = vmatpush1.xpose.msra.mxu0 0.0
        %1961 = vmatprep.subr.mxu0 0.0
        %1962 = vmatpush1.xpose.msra.mxu0 0.0
        %1963 = vmatprep.subr.mxu0 0.0
        %1964 = vmatpush1.xpose.msra.mxu0 0.0
        %1965 = vmatprep.subr.mxu0 0.0
        %1966 = vmatpush1.xpose.msra.mxu0 0.0
        %1967 = vmatprep.subr.mxu0 0.0
        %1968 = vmatpush1.xpose.msra.mxu0 0.0
        %1969 = vmatprep.subr.mxu0 0.0
        %1970 = vmatpush1.xpose.msra.mxu0 0.0
        %1971 = vmatprep.subr.mxu0 0.0
        %1972 = vmatpush1.xpose.msra.mxu0 0.0
        %1973 = vmatprep.subr.mxu0 0.0
        %1974 = vmatpush1.xpose.msra.mxu0 0.0
        %1975 = vmatprep.subr.mxu0 0.0
        %1976 = vmatpush1.xpose.msra.mxu0 0.0
        %1977 = vmatprep.subr.mxu0 0.0
        %1978 = vmatpush1.xpose.msra.mxu0 0.0
        %1979 = vmatprep.subr.mxu0 0.0
        %1980 = vmatpush1.xpose.msra.mxu0 0.0
        %1981 = vmatprep.subr.mxu0 0.0
        %1982 = vmatpush1.xpose.msra.mxu0 0.0
        %1983 = vmatprep.subr.mxu0 0.0
        %1984 = vmatpush1.xpose.msra.mxu0 0.0
        %1985 = vmatprep.subr.mxu0 0.0
        %1986 = vmatpush1.xpose.msra.mxu0 0.0
        %1987 = vmatprep.subr.mxu0 0.0
        %1988 = vmatpush1.xpose.msra.mxu0 0.0
        %1989 = vmatprep.subr.mxu0 0.0
        %1990 = vmatpush1.xpose.msra.mxu0 0.0
        %1991 = vmatprep.mubr.f32.mxu0 0.0
        %1992 = vmatmul.mubr.f32.gmra.mrb[0].mxu0 %v1923
        %v1993 = vpop.f32.mrb[0].mxu0
        %v1994 = vadd.f32 0.0, %v1993
        %v1995 = vpop.f32.mrb[0].mxu0
        %1996 = vmatprep.mubr.f32.mxu0 0.0
        %1997 = vmatmul.mubr.f32.gmra.mrb[0].mxu0 %v1924
        %v1998 = vpop.f32.mrb[0].mxu0
        %v1999 = vadd.f32 0.0, %v1998
        %v2000 = vpop.f32.mrb[0].mxu0
        %2001 = vmatprep.mubr.f32.mxu0 0.0
        %2002 = vmatmul.mubr.f32.gmra.mrb[0].mxu0 %v1925
        %v2003 = vpop.f32.mrb[0].mxu0
        %v2004 = vadd.f32 0.0, %v2003
        %v2005 = vpop.f32.mrb[0].mxu0
        %2006 = vmatprep.mubr.f32.mxu0 0.0
        %2007 = vmatmul.mubr.f32.gmra.mrb[0].mxu0 %v1926
        %v2008 = vpop.f32.mrb[0].mxu0
        %v2009 = vadd.f32 0.0, %v2008
        %v2010 = vpop.f32.mrb[0].mxu0
        %2011 = vdwg.mxu0
        %v2012 = vld [vmem:[%s8] sm:$0xff]
        %v2013 = vld [vmem:[%s8 + $0x8] sm:$0xff]
        %s2014 = scalar_lea.vmem %s8, 16
        %v2015 = vld [vmem:[%s2014] sm:$0xff]
        %v2016 = vld [vmem:[%s2014 + $0x8] sm:$0xff]
        %v2018 = vrot.slane %v1994, 4
        %vm2019 = vcmask 130048
        %v2020 = vsel %vm2019, %v2018, 0
        %2022 = vmatprep.subr.mxu0 0.0
        %2023 = vmatpush1.msra.mxu0 %v2015
        %2024 = vmatprep.subr.mxu0 0.0
        %2025 = vmatpush1.msra.mxu0 %v2016
        %2026 = vmatprep.subr.mxu0 0.0
        %2027 = vmatpush1.msra.mxu0 0.0
        %2028 = vmatprep.subr.mxu0 0.0
        %2029 = vmatpush1.msra.mxu0 0.0
        %2030 = vmatprep.subr.mxu0 0.0
        %2031 = vmatpush1.msra.mxu0 0.0
        %2032 = vmatprep.subr.mxu0 0.0
        %2033 = vmatpush1.msra.mxu0 0.0
        %2034 = vmatprep.subr.mxu0 0.0
        %2035 = vmatpush1.msra.mxu0 0.0
        %2036 = vmatprep.subr.mxu0 0.0
        %2037 = vmatpush1.msra.mxu0 0.0
        %2038 = vmatprep.subr.mxu0 0.0
        %2039 = vmatpush1.msra.mxu0 0.0
        %2040 = vmatprep.subr.mxu0 0.0
        %2041 = vmatpush1.msra.mxu0 0.0
        %2042 = vmatprep.subr.mxu0 0.0
        %2043 = vmatpush1.msra.mxu0 0.0
        %2044 = vmatprep.subr.mxu0 0.0
        %2045 = vmatpush1.msra.mxu0 0.0
        %2046 = vmatprep.subr.mxu0 0.0
        %2047 = vmatpush1.msra.mxu0 0.0
        %2048 = vmatprep.subr.mxu0 0.0
        %2049 = vmatpush1.msra.mxu0 0.0
        %2050 = vmatprep.subr.mxu0 0.0
        %2051 = vmatpush1.msra.mxu0 0.0
        %2052 = vmatprep.subr.mxu0 0.0
        %2053 = vmatpush1.msra.mxu0 0.0
        %2054 = vmatprep.subr.mxu0 0.0
        %2055 = vmatpush1.msra.mxu0 0.0
        %2056 = vmatprep.subr.mxu0 0.0
        %2057 = vmatpush1.msra.mxu0 0.0
        %2058 = vmatprep.subr.mxu0 0.0
        %2059 = vmatpush1.msra.mxu0 0.0
        %2060 = vmatprep.subr.mxu0 0.0
        %2061 = vmatpush1.msra.mxu0 0.0
        %2062 = vmatprep.subr.mxu0 0.0
        %2063 = vmatpush1.msra.mxu0 0.0
        %2064 = vmatprep.subr.mxu0 0.0
        %2065 = vmatpush1.msra.mxu0 0.0
        %2066 = vmatprep.subr.mxu0 0.0
        %2067 = vmatpush1.msra.mxu0 0.0
        %2068 = vmatprep.subr.mxu0 0.0
        %2069 = vmatpush1.msra.mxu0 0.0
        %2070 = vmatprep.subr.mxu0 0.0
        %2071 = vmatpush1.msra.mxu0 0.0
        %2072 = vmatprep.subr.mxu0 0.0
        %2073 = vmatpush1.msra.mxu0 0.0
        %2074 = vmatprep.subr.mxu0 0.0
        %2075 = vmatpush1.msra.mxu0 0.0
        %2076 = vmatprep.subr.mxu0 0.0
        %2077 = vmatpush1.msra.mxu0 0.0
        %2078 = vmatprep.subr.mxu0 0.0
        %2079 = vmatpush1.msra.mxu0 0.0
        %2080 = vmatprep.subr.mxu0 0.0
        %2081 = vmatpush1.msra.mxu0 0.0
        %2082 = vmatprep.subr.mxu0 0.0
        %2083 = vmatpush1.msra.mxu0 0.0
        %2084 = vmatprep.subr.mxu0 0.0
        %2085 = vmatpush1.msra.mxu0 0.0
        %2086 = vmatprep.mubr.f32.mxu0 0.0
        %2087 = vmatmul.mubr.f32.gmra.mrb[0].mxu0 %v2020
        %v2088 = vpop.f32.mrb[0].mxu0
        %v2089 = vadd.f32 0.0, %v2088
        %v2090 = vpop.f32.mrb[0].mxu0
        %2091 = vdwg.mxu0
        %v2092 = vsel %vm2019, %v1994, 0
        %2094 = vmatprep.subr.mxu0 0.0
        %2095 = vmatpush1.msra.mxu0 %v2012
        %2096 = vmatprep.subr.mxu0 0.0
        %2097 = vmatpush1.msra.mxu0 %v2013
        %2098 = vmatprep.subr.mxu0 0.0
        %2099 = vmatpush1.msra.mxu0 0.0
        %2100 = vmatprep.subr.mxu0 0.0
        %2101 = vmatpush1.msra.mxu0 0.0
        %2102 = vmatprep.subr.mxu0 0.0
        %2103 = vmatpush1.msra.mxu0 0.0
        %2104 = vmatprep.subr.mxu0 0.0
        %2105 = vmatpush1.msra.mxu0 0.0
        %2106 = vmatprep.subr.mxu0 0.0
        %2107 = vmatpush1.msra.mxu0 0.0
        %2108 = vmatprep.subr.mxu0 0.0
        %2109 = vmatpush1.msra.mxu0 0.0
        %2110 = vmatprep.subr.mxu0 0.0
        %2111 = vmatpush1.msra.mxu0 0.0
        %2112 = vmatprep.subr.mxu0 0.0
        %2113 = vmatpush1.msra.mxu0 0.0
        %2114 = vmatprep.subr.mxu0 0.0
        %2115 = vmatpush1.msra.mxu0 0.0
        %2116 = vmatprep.subr.mxu0 0.0
        %2117 = vmatpush1.msra.mxu0 0.0
        %2118 = vmatprep.subr.mxu0 0.0
        %2119 = vmatpush1.msra.mxu0 0.0
        %2120 = vmatprep.subr.mxu0 0.0
        %2121 = vmatpush1.msra.mxu0 0.0
        %2122 = vmatprep.subr.mxu0 0.0
        %2123 = vmatpush1.msra.mxu0 0.0
        %2124 = vmatprep.subr.mxu0 0.0
        %2125 = vmatpush1.msra.mxu0 0.0
        %2126 = vmatprep.subr.mxu0 0.0
        %2127 = vmatpush1.msra.mxu0 0.0
        %2128 = vmatprep.subr.mxu0 0.0
        %2129 = vmatpush1.msra.mxu0 0.0
        %2130 = vmatprep.subr.mxu0 0.0
        %2131 = vmatpush1.msra.mxu0 0.0
        %2132 = vmatprep.subr.mxu0 0.0
        %2133 = vmatpush1.msra.mxu0 0.0
        %2134 = vmatprep.subr.mxu0 0.0
        %2135 = vmatpush1.msra.mxu0 0.0
        %2136 = vmatprep.subr.mxu0 0.0
        %2137 = vmatpush1.msra.mxu0 0.0
        %2138 = vmatprep.subr.mxu0 0.0
        %2139 = vmatpush1.msra.mxu0 0.0
        %2140 = vmatprep.subr.mxu0 0.0
        %2141 = vmatpush1.msra.mxu0 0.0
        %2142 = vmatprep.subr.mxu0 0.0
        %2143 = vmatpush1.msra.mxu0 0.0
        %2144 = vmatprep.subr.mxu0 0.0
        %2145 = vmatpush1.msra.mxu0 0.0
        %2146 = vmatprep.subr.mxu0 0.0
        %2147 = vmatpush1.msra.mxu0 0.0
        %2148 = vmatprep.subr.mxu0 0.0
        %2149 = vmatpush1.msra.mxu0 0.0
        %2150 = vmatprep.subr.mxu0 0.0
        %2151 = vmatpush1.msra.mxu0 0.0
        %2152 = vmatprep.subr.mxu0 0.0
        %2153 = vmatpush1.msra.mxu0 0.0
        %2154 = vmatprep.subr.mxu0 0.0
        %2155 = vmatpush1.msra.mxu0 0.0
        %2156 = vmatprep.subr.mxu0 0.0
        %2157 = vmatpush1.msra.mxu0 0.0
        %2158 = vmatprep.mubr.f32.mxu0 0.0
        %2159 = vmatmul.mubr.f32.gmra.mrb[0].mxu0 %v2092
        %v2160 = vpop.f32.mrb[0].mxu0
        %v2161 = vadd.f32 %v2089, %v2160
        %v2162 = vpop.f32.mrb[0].mxu0
        %2163 = vdwg.mxu0
        %s2164 = scalar_lea.vmem %s8, 32
        %v2165 = vld [vmem:[%s2164] sm:$0xff]
        %v2166 = vld [vmem:[%s2164 + $0x8] sm:$0xff]
        %v2168 = vsel %vm2019, %v1999, 0
        %2170 = vmatprep.subr.mxu0 0.0
        %2171 = vmatpush1.msra.mxu0 %v2165
        %2172 = vmatprep.subr.mxu0 0.0
        %2173 = vmatpush1.msra.mxu0 %v2166
        %2174 = vmatprep.subr.mxu0 0.0
        %2175 = vmatpush1.msra.mxu0 0.0
        %2176 = vmatprep.subr.mxu0 0.0
        %2177 = vmatpush1.msra.mxu0 0.0
        %2178 = vmatprep.subr.mxu0 0.0
        %2179 = vmatpush1.msra.mxu0 0.0
        %2180 = vmatprep.subr.mxu0 0.0
        %2181 = vmatpush1.msra.mxu0 0.0
        %2182 = vmatprep.subr.mxu0 0.0
        %2183 = vmatpush1.msra.mxu0 0.0
        %2184 = vmatprep.subr.mxu0 0.0
        %2185 = vmatpush1.msra.mxu0 0.0
        %2186 = vmatprep.subr.mxu0 0.0
        %2187 = vmatpush1.msra.mxu0 0.0
        %2188 = vmatprep.subr.mxu0 0.0
        %2189 = vmatpush1.msra.mxu0 0.0
        %2190 = vmatprep.subr.mxu0 0.0
        %2191 = vmatpush1.msra.mxu0 0.0
        %2192 = vmatprep.subr.mxu0 0.0
        %2193 = vmatpush1.msra.mxu0 0.0
        %2194 = vmatprep.subr.mxu0 0.0
        %2195 = vmatpush1.msra.mxu0 0.0
        %2196 = vmatprep.subr.mxu0 0.0
        %2197 = vmatpush1.msra.mxu0 0.0
        %2198 = vmatprep.subr.mxu0 0.0
        %2199 = vmatpush1.msra.mxu0 0.0
        %2200 = vmatprep.subr.mxu0 0.0
        %2201 = vmatpush1.msra.mxu0 0.0
        %2202 = vmatprep.subr.mxu0 0.0
        %2203 = vmatpush1.msra.mxu0 0.0
        %2204 = vmatprep.subr.mxu0 0.0
        %2205 = vmatpush1.msra.mxu0 0.0
        %2206 = vmatprep.subr.mxu0 0.0
        %2207 = vmatpush1.msra.mxu0 0.0
        %2208 = vmatprep.subr.mxu0 0.0
        %2209 = vmatpush1.msra.mxu0 0.0
        %2210 = vmatprep.subr.mxu0 0.0
        %2211 = vmatpush1.msra.mxu0 0.0
        %2212 = vmatprep.subr.mxu0 0.0
        %2213 = vmatpush1.msra.mxu0 0.0
        %2214 = vmatprep.subr.mxu0 0.0
        %2215 = vmatpush1.msra.mxu0 0.0
        %2216 = vmatprep.subr.mxu0 0.0
        %2217 = vmatpush1.msra.mxu0 0.0
        %2218 = vmatprep.subr.mxu0 0.0
        %2219 = vmatpush1.msra.mxu0 0.0
        %2220 = vmatprep.subr.mxu0 0.0
        %2221 = vmatpush1.msra.mxu0 0.0
        %2222 = vmatprep.subr.mxu0 0.0
        %2223 = vmatpush1.msra.mxu0 0.0
        %2224 = vmatprep.subr.mxu0 0.0
        %2225 = vmatpush1.msra.mxu0 0.0
        %2226 = vmatprep.subr.mxu0 0.0
        %2227 = vmatpush1.msra.mxu0 0.0
        %2228 = vmatprep.subr.mxu0 0.0
        %2229 = vmatpush1.msra.mxu0 0.0
        %2230 = vmatprep.subr.mxu0 0.0
        %2231 = vmatpush1.msra.mxu0 0.0
        %2232 = vmatprep.subr.mxu0 0.0
        %2233 = vmatpush1.msra.mxu0 0.0
        %2234 = vmatprep.mubr.f32.mxu0 0.0
        %2235 = vmatmul.mubr.f32.gmra.mrb[0].mxu0 %v2168
        %v2236 = vpop.f32.mrb[0].mxu0
        %v2237 = vadd.f32 0.0, %v2236
        %v2238 = vpop.f32.mrb[0].mxu0
        %2239 = vdwg.mxu0
        %v2240 = vadd.f32 %v2161, %v2237
        %s2241 = scalar_lea.vmem %s8, 48
        %v2242 = vld [vmem:[%s2241] sm:$0xff]
        %v2243 = vld [vmem:[%s2241 + $0x8] sm:$0xff]
        %v2244 = vrot.slane %v1999, 4
        %v2245 = vsel %vm2019, %v2244, 0
        %2247 = vmatprep.subr.mxu0 0.0
        %2248 = vmatpush1.msra.mxu0 %v2242
        %2249 = vmatprep.subr.mxu0 0.0
        %2250 = vmatpush1.msra.mxu0 %v2243
        %2251 = vmatprep.subr.mxu0 0.0
        %2252 = vmatpush1.msra.mxu0 0.0
        %2253 = vmatprep.subr.mxu0 0.0
        %2254 = vmatpush1.msra.mxu0 0.0
        %2255 = vmatprep.subr.mxu0 0.0
        %2256 = vmatpush1.msra.mxu0 0.0
        %2257 = vmatprep.subr.mxu0 0.0
        %2258 = vmatpush1.msra.mxu0 0.0
        %2259 = vmatprep.subr.mxu0 0.0
        %2260 = vmatpush1.msra.mxu0 0.0
        %2261 = vmatprep.subr.mxu0 0.0
        %2262 = vmatpush1.msra.mxu0 0.0
        %2263 = vmatprep.subr.mxu0 0.0
        %2264 = vmatpush1.msra.mxu0 0.0
        %2265 = vmatprep.subr.mxu0 0.0
        %2266 = vmatpush1.msra.mxu0 0.0
        %2267 = vmatprep.subr.mxu0 0.0
        %2268 = vmatpush1.msra.mxu0 0.0
        %2269 = vmatprep.subr.mxu0 0.0
        %2270 = vmatpush1.msra.mxu0 0.0
        %2271 = vmatprep.subr.mxu0 0.0
        %2272 = vmatpush1.msra.mxu0 0.0
        %2273 = vmatprep.subr.mxu0 0.0
        %2274 = vmatpush1.msra.mxu0 0.0
        %2275 = vmatprep.subr.mxu0 0.0
        %2276 = vmatpush1.msra.mxu0 0.0
        %2277 = vmatprep.subr.mxu0 0.0
        %2278 = vmatpush1.msra.mxu0 0.0
        %2279 = vmatprep.subr.mxu0 0.0
        %2280 = vmatpush1.msra.mxu0 0.0
        %2281 = vmatprep.subr.mxu0 0.0
        %2282 = vmatpush1.msra.mxu0 0.0
        %2283 = vmatprep.subr.mxu0 0.0
        %2284 = vmatpush1.msra.mxu0 0.0
        %2285 = vmatprep.subr.mxu0 0.0
        %2286 = vmatpush1.msra.mxu0 0.0
        %2287 = vmatprep.subr.mxu0 0.0
        %2288 = vmatpush1.msra.mxu0 0.0
        %2289 = vmatprep.subr.mxu0 0.0
        %2290 = vmatpush1.msra.mxu0 0.0
        %2291 = vmatprep.subr.mxu0 0.0
        %2292 = vmatpush1.msra.mxu0 0.0
        %2293 = vmatprep.subr.mxu0 0.0
        %2294 = vmatpush1.msra.mxu0 0.0
        %2295 = vmatprep.subr.mxu0 0.0
        %2296 = vmatpush1.msra.mxu0 0.0
        %2297 = vmatprep.subr.mxu0 0.0
        %2298 = vmatpush1.msra.mxu0 0.0
        %2299 = vmatprep.subr.mxu0 0.0
        %2300 = vmatpush1.msra.mxu0 0.0
        %2301 = vmatprep.subr.mxu0 0.0
        %2302 = vmatpush1.msra.mxu0 0.0
        %2303 = vmatprep.subr.mxu0 0.0
        %2304 = vmatpush1.msra.mxu0 0.0
        %2305 = vmatprep.subr.mxu0 0.0
        %2306 = vmatpush1.msra.mxu0 0.0
        %2307 = vmatprep.subr.mxu0 0.0
        %2308 = vmatpush1.msra.mxu0 0.0
        %2309 = vmatprep.subr.mxu0 0.0
        %2310 = vmatpush1.msra.mxu0 0.0
        %2311 = vmatprep.mubr.f32.mxu0 0.0
        %2312 = vmatmul.mubr.f32.gmra.mrb[0].mxu0 %v2245
        %v2313 = vpop.f32.mrb[0].mxu0
        %v2314 = vadd.f32 0.0, %v2313
        %v2315 = vpop.f32.mrb[0].mxu0
        %2316 = vdwg.mxu0
        %v2317 = vadd.f32 %v2240, %v2314
        %s2318 = scalar_lea.vmem %s8, 64
        %v2319 = vld [vmem:[%s2318] sm:$0xff]
        %v2320 = vld [vmem:[%s2318 + $0x8] sm:$0xff]
        %v2322 = vsel %vm2019, %v2004, 0
        %2324 = vmatprep.subr.mxu0 0.0
        %2325 = vmatpush1.msra.mxu0 %v2319
        %2326 = vmatprep.subr.mxu0 0.0
        %2327 = vmatpush1.msra.mxu0 %v2320
        %2328 = vmatprep.subr.mxu0 0.0
        %2329 = vmatpush1.msra.mxu0 0.0
        %2330 = vmatprep.subr.mxu0 0.0
        %2331 = vmatpush1.msra.mxu0 0.0
        %2332 = vmatprep.subr.mxu0 0.0
        %2333 = vmatpush1.msra.mxu0 0.0
        %2334 = vmatprep.subr.mxu0 0.0
        %2335 = vmatpush1.msra.mxu0 0.0
        %2336 = vmatprep.subr.mxu0 0.0
        %2337 = vmatpush1.msra.mxu0 0.0
        %2338 = vmatprep.subr.mxu0 0.0
        %2339 = vmatpush1.msra.mxu0 0.0
        %2340 = vmatprep.subr.mxu0 0.0
        %2341 = vmatpush1.msra.mxu0 0.0
        %2342 = vmatprep.subr.mxu0 0.0
        %2343 = vmatpush1.msra.mxu0 0.0
        %2344 = vmatprep.subr.mxu0 0.0
        %2345 = vmatpush1.msra.mxu0 0.0
        %2346 = vmatprep.subr.mxu0 0.0
        %2347 = vmatpush1.msra.mxu0 0.0
        %2348 = vmatprep.subr.mxu0 0.0
        %2349 = vmatpush1.msra.mxu0 0.0
        %2350 = vmatprep.subr.mxu0 0.0
        %2351 = vmatpush1.msra.mxu0 0.0
        %2352 = vmatprep.subr.mxu0 0.0
        %2353 = vmatpush1.msra.mxu0 0.0
        %2354 = vmatprep.subr.mxu0 0.0
        %2355 = vmatpush1.msra.mxu0 0.0
        %2356 = vmatprep.subr.mxu0 0.0
        %2357 = vmatpush1.msra.mxu0 0.0
        %2358 = vmatprep.subr.mxu0 0.0
        %2359 = vmatpush1.msra.mxu0 0.0
        %2360 = vmatprep.subr.mxu0 0.0
        %2361 = vmatpush1.msra.mxu0 0.0
        %2362 = vmatprep.subr.mxu0 0.0
        %2363 = vmatpush1.msra.mxu0 0.0
        %2364 = vmatprep.subr.mxu0 0.0
        %2365 = vmatpush1.msra.mxu0 0.0
        %2366 = vmatprep.subr.mxu0 0.0
        %2367 = vmatpush1.msra.mxu0 0.0
        %2368 = vmatprep.subr.mxu0 0.0
        %2369 = vmatpush1.msra.mxu0 0.0
        %2370 = vmatprep.subr.mxu0 0.0
        %2371 = vmatpush1.msra.mxu0 0.0
        %2372 = vmatprep.subr.mxu0 0.0
        %2373 = vmatpush1.msra.mxu0 0.0
        %2374 = vmatprep.subr.mxu0 0.0
        %2375 = vmatpush1.msra.mxu0 0.0
        %2376 = vmatprep.subr.mxu0 0.0
        %2377 = vmatpush1.msra.mxu0 0.0
        %2378 = vmatprep.subr.mxu0 0.0
        %2379 = vmatpush1.msra.mxu0 0.0
        %2380 = vmatprep.subr.mxu0 0.0
        %2381 = vmatpush1.msra.mxu0 0.0
        %2382 = vmatprep.subr.mxu0 0.0
        %2383 = vmatpush1.msra.mxu0 0.0
        %2384 = vmatprep.subr.mxu0 0.0
        %2385 = vmatpush1.msra.mxu0 0.0
        %2386 = vmatprep.subr.mxu0 0.0
        %2387 = vmatpush1.msra.mxu0 0.0
        %2388 = vmatprep.mubr.f32.mxu0 0.0
        %2389 = vmatmul.mubr.f32.gmra.mrb[0].mxu0 %v2322
        %v2390 = vpop.f32.mrb[0].mxu0
        %v2391 = vadd.f32 0.0, %v2390
        %v2392 = vpop.f32.mrb[0].mxu0
        %2393 = vdwg.mxu0
        %v2394 = vadd.f32 %v2317, %v2391
        %s2395 = scalar_lea.vmem %s8, 80
        %v2396 = vld [vmem:[%s2395] sm:$0xff]
        %v2397 = vld [vmem:[%s2395 + $0x8] sm:$0xff]
        %v2398 = vrot.slane %v2004, 4
        %v2399 = vsel %vm2019, %v2398, 0
        %2401 = vmatprep.subr.mxu0 0.0
        %2402 = vmatpush1.msra.mxu0 %v2396
        %2403 = vmatprep.subr.mxu0 0.0
        %2404 = vmatpush1.msra.mxu0 %v2397
        %2405 = vmatprep.subr.mxu0 0.0
        %2406 = vmatpush1.msra.mxu0 0.0
        %2407 = vmatprep.subr.mxu0 0.0
        %2408 = vmatpush1.msra.mxu0 0.0
        %2409 = vmatprep.subr.mxu0 0.0
        %2410 = vmatpush1.msra.mxu0 0.0
        %2411 = vmatprep.subr.mxu0 0.0
        %2412 = vmatpush1.msra.mxu0 0.0
        %2413 = vmatprep.subr.mxu0 0.0
        %2414 = vmatpush1.msra.mxu0 0.0
        %2415 = vmatprep.subr.mxu0 0.0
        %2416 = vmatpush1.msra.mxu0 0.0
        %2417 = vmatprep.subr.mxu0 0.0
        %2418 = vmatpush1.msra.mxu0 0.0
        %2419 = vmatprep.subr.mxu0 0.0
        %2420 = vmatpush1.msra.mxu0 0.0
        %2421 = vmatprep.subr.mxu0 0.0
        %2422 = vmatpush1.msra.mxu0 0.0
        %2423 = vmatprep.subr.mxu0 0.0
        %2424 = vmatpush1.msra.mxu0 0.0
        %2425 = vmatprep.subr.mxu0 0.0
        %2426 = vmatpush1.msra.mxu0 0.0
        %2427 = vmatprep.subr.mxu0 0.0
        %2428 = vmatpush1.msra.mxu0 0.0
        %2429 = vmatprep.subr.mxu0 0.0
        %2430 = vmatpush1.msra.mxu0 0.0
        %2431 = vmatprep.subr.mxu0 0.0
        %2432 = vmatpush1.msra.mxu0 0.0
        %2433 = vmatprep.subr.mxu0 0.0
        %2434 = vmatpush1.msra.mxu0 0.0
        %2435 = vmatprep.subr.mxu0 0.0
        %2436 = vmatpush1.msra.mxu0 0.0
        %2437 = vmatprep.subr.mxu0 0.0
        %2438 = vmatpush1.msra.mxu0 0.0
        %2439 = vmatprep.subr.mxu0 0.0
        %2440 = vmatpush1.msra.mxu0 0.0
        %2441 = vmatprep.subr.mxu0 0.0
        %2442 = vmatpush1.msra.mxu0 0.0
        %2443 = vmatprep.subr.mxu0 0.0
        %2444 = vmatpush1.msra.mxu0 0.0
        %2445 = vmatprep.subr.mxu0 0.0
        %2446 = vmatpush1.msra.mxu0 0.0
        %2447 = vmatprep.subr.mxu0 0.0
        %2448 = vmatpush1.msra.mxu0 0.0
        %2449 = vmatprep.subr.mxu0 0.0
        %2450 = vmatpush1.msra.mxu0 0.0
        %2451 = vmatprep.subr.mxu0 0.0
        %2452 = vmatpush1.msra.mxu0 0.0
        %2453 = vmatprep.subr.mxu0 0.0
        %2454 = vmatpush1.msra.mxu0 0.0
        %2455 = vmatprep.subr.mxu0 0.0
        %2456 = vmatpush1.msra.mxu0 0.0
        %2457 = vmatprep.subr.mxu0 0.0
        %2458 = vmatpush1.msra.mxu0 0.0
        %2459 = vmatprep.subr.mxu0 0.0
        %2460 = vmatpush1.msra.mxu0 0.0
        %2461 = vmatprep.subr.mxu0 0.0
        %2462 = vmatpush1.msra.mxu0 0.0
        %2463 = vmatprep.subr.mxu0 0.0
        %2464 = vmatpush1.msra.mxu0 0.0
        %2465 = vmatprep.mubr.f32.mxu0 0.0
        %2466 = vmatmul.mubr.f32.gmra.mrb[0].mxu0 %v2399
        %v2467 = vpop.f32.mrb[0].mxu0
        %v2468 = vadd.f32 0.0, %v2467
        %v2469 = vpop.f32.mrb[0].mxu0
        %2470 = vdwg.mxu0
        %v2471 = vadd.f32 %v2394, %v2468
        %s2472 = scalar_lea.vmem %s8, 96
        %v2473 = vld [vmem:[%s2472] sm:$0xff]
        %v2474 = vld [vmem:[%s2472 + $0x8] sm:$0xff]
        %v2476 = vsel %vm2019, %v2009, 0
        %2478 = vmatprep.subr.mxu0 0.0
        %2479 = vmatpush1.msra.mxu0 %v2473
        %2480 = vmatprep.subr.mxu0 0.0
        %2481 = vmatpush1.msra.mxu0 %v2474
        %2482 = vmatprep.subr.mxu0 0.0
        %2483 = vmatpush1.msra.mxu0 0.0
        %2484 = vmatprep.subr.mxu0 0.0
        %2485 = vmatpush1.msra.mxu0 0.0
        %2486 = vmatprep.subr.mxu0 0.0
        %2487 = vmatpush1.msra.mxu0 0.0
        %2488 = vmatprep.subr.mxu0 0.0
        %2489 = vmatpush1.msra.mxu0 0.0
        %2490 = vmatprep.subr.mxu0 0.0
        %2491 = vmatpush1.msra.mxu0 0.0
        %2492 = vmatprep.subr.mxu0 0.0
        %2493 = vmatpush1.msra.mxu0 0.0
        %2494 = vmatprep.subr.mxu0 0.0
        %2495 = vmatpush1.msra.mxu0 0.0
        %2496 = vmatprep.subr.mxu0 0.0
        %2497 = vmatpush1.msra.mxu0 0.0
        %2498 = vmatprep.subr.mxu0 0.0
        %2499 = vmatpush1.msra.mxu0 0.0
        %2500 = vmatprep.subr.mxu0 0.0
        %2501 = vmatpush1.msra.mxu0 0.0
        %2502 = vmatprep.subr.mxu0 0.0
        %2503 = vmatpush1.msra.mxu0 0.0
        %2504 = vmatprep.subr.mxu0 0.0
        %2505 = vmatpush1.msra.mxu0 0.0
        %2506 = vmatprep.subr.mxu0 0.0
        %2507 = vmatpush1.msra.mxu0 0.0
        %2508 = vmatprep.subr.mxu0 0.0
        %2509 = vmatpush1.msra.mxu0 0.0
        %2510 = vmatprep.subr.mxu0 0.0
        %2511 = vmatpush1.msra.mxu0 0.0
        %2512 = vmatprep.subr.mxu0 0.0
        %2513 = vmatpush1.msra.mxu0 0.0
        %2514 = vmatprep.subr.mxu0 0.0
        %2515 = vmatpush1.msra.mxu0 0.0
        %2516 = vmatprep.subr.mxu0 0.0
        %2517 = vmatpush1.msra.mxu0 0.0
        %2518 = vmatprep.subr.mxu0 0.0
        %2519 = vmatpush1.msra.mxu0 0.0
        %2520 = vmatprep.subr.mxu0 0.0
        %2521 = vmatpush1.msra.mxu0 0.0
        %2522 = vmatprep.subr.mxu0 0.0
        %2523 = vmatpush1.msra.mxu0 0.0
        %2524 = vmatprep.subr.mxu0 0.0
        %2525 = vmatpush1.msra.mxu0 0.0
        %2526 = vmatprep.subr.mxu0 0.0
        %2527 = vmatpush1.msra.mxu0 0.0
        %2528 = vmatprep.subr.mxu0 0.0
        %2529 = vmatpush1.msra.mxu0 0.0
        %2530 = vmatprep.subr.mxu0 0.0
        %2531 = vmatpush1.msra.mxu0 0.0
        %2532 = vmatprep.subr.mxu0 0.0
        %2533 = vmatpush1.msra.mxu0 0.0
        %2534 = vmatprep.subr.mxu0 0.0
        %2535 = vmatpush1.msra.mxu0 0.0
        %2536 = vmatprep.subr.mxu0 0.0
        %2537 = vmatpush1.msra.mxu0 0.0
        %2538 = vmatprep.subr.mxu0 0.0
        %2539 = vmatpush1.msra.mxu0 0.0
        %2540 = vmatprep.subr.mxu0 0.0
        %2541 = vmatpush1.msra.mxu0 0.0
        %2542 = vmatprep.mubr.f32.mxu0 0.0
        %2543 = vmatmul.mubr.f32.gmra.mrb[0].mxu0 %v2476
        %v2544 = vpop.f32.mrb[0].mxu0
        %v2545 = vadd.f32 0.0, %v2544
        %v2546 = vpop.f32.mrb[0].mxu0
        %2547 = vdwg.mxu0
        %v2548 = vadd.f32 %v2471, %v2545
        %vm2549 = vcmask 519168
        %2550 = vst.msk [vmem:[%s418] sm:$0xf] %vm2549, %v2548
        %p2551 = scmp.lt.s32.totalorder %s25, 1
        %s2552 = scalar_select %p2551, %s25, 1
        %p2553 = scmp.lt.s32.totalorder %s26, 0
        %s2554 = scalar_select %p2553, %s26, 0
        %s2555 = sadd.s32 %s2554, %s2552
        %s2556 = smul.addr %s2555, 4
        %s2557 = scalar_lea.vmem %s9, %s2556
        // Predicated region
        $region61: #{moco_forward.2} parent=55 // pred_check
          %p2558 = pneg %p259
        $region62: #{moco_forward.2} parent=55 // pred_check_branch
          %2560 = sbr.rel (%p2558) target = $region64
        $region63: #{moco_forward.2} parent=55 // pred_region
          _
        $region64: #{moco_forward.2} parent=55 // pred_fallthru
          _
      $region56: #{moco_forward.2} parent=5 // pred_fallthru
        _
      %p2561 = scmp.le.s32.totalorder 2, %s16
      // Predicated region
      $region65: #{moco_forward.2} parent=5 // pred_check
        %p2562 = pneg %p2561
      $region66: #{moco_forward.2} parent=5 // pred_check_branch
        %2564 = sbr.rel (%p2562) target = $region68
      $region67: #{moco_forward.2} parent=5 // pred_region
        %s2565 = ssub.s32 %s16, 2
        // Predicated region
        $region69: #{moco_forward.2} parent=67 // pred_check
          %p2566 = pneg %p265
        $region70: #{moco_forward.2} parent=67 // pred_check_branch
          %2568 = sbr.rel (%p2566) target = $region72
        $region71: #{moco_forward.2} parent=67 // pred_region
          %p2569 = scmp.lt.s32.totalorder %s27, 1
          %s2570 = scalar_select %p2569, %s27, 1
          %p2571 = scmp.lt.s32.totalorder %s28, 0
          %s2572 = scalar_select %p2571, %s28, 0
          %s2573 = sadd.s32 %s2572, %s2570
          %s2574 = smul.addr %s2573, 4
          %s2575 = scalar_lea.vmem %s9, %s2574
        $region72: #{moco_forward.2} parent=67 // pred_fallthru
          _
      $region68: #{moco_forward.2} parent=5 // pred_fallthru
        _
    $region6: #{moco_forward.2} parent=1 // loop_footer
      %s20 = sadd.s32 1, %s16
    $region7: #{moco_forward.2} parent=1 // loop_footer_branch
      %15 = sbr.rel target = $region3
    $region8: #{moco_forward.2} parent=1 // loop_exit
      _
    %2576 = vsyncpa [#allocation3], 1
    %s2577 = scalar_lea.sflag [#allocation3], 1
    %2578 = vsyncpa %s2577, 1

</llo_original>
